<compile_context>
chip_gen: v7x
topology: tpu7x:2x2x1
jax: 0.10.0
libtpu: 0.0.40
codegen_flags: <defaults>
</compile_context>

<pallas_src>
import math
import functools

import jax
import jax.numpy as jnp
from jax.experimental import pallas as pl
from jax.experimental.pallas import tpu as pltpu

DTYPE = jnp.bfloat16
RMS_EPS = 1e-6
NEG_INF = -1e30                       # large-but-safe mask value (avoid -inf NaNs)
_VMEM_LIMIT = 48 * 1024 * 1024        # leave headroom vs v7x's 64 MiB physical VMEM


def _pick_tile(dim, candidates=(512, 256, 128)):
    """Largest candidate tile that divides dim; else the full extent (always legal)."""
    for c in candidates:
        if dim % c == 0:
            return c
    return dim


# ----------------------------- Pallas kernels -----------------------------

def _matmul_kernel(x_ref, w_ref, o_ref):
    # o = x @ w ; bf16 inputs, f32 MXU accumulation.  K kept whole per block (K <= H here).
    # TODO(synk): add a K grid axis + f32 accumulator scratch if H ever exceeds VMEM-tile budget.
    o_ref[...] = jnp.dot(
        x_ref[...], w_ref[...], preferred_element_type=jnp.float32
    ).astype(o_ref.dtype)


def _matmul_add_kernel(x_ref, w_ref, r_ref, o_ref):
    # o = x @ w + r   (o_proj fused with the residual add)
    acc = jnp.dot(x_ref[...], w_ref[...], preferred_element_type=jnp.float32)
    o_ref[...] = (acc + r_ref[...].astype(jnp.float32)).astype(o_ref.dtype)


def _rms_matmul_kernel(x_ref, g_ref, w_ref, o_ref):
    # o = rmsnorm(x; g) @ w   (RMSNorm fused into the projection; norm recompute per N tile
    # is negligible VPU work vs the matmul).
    x = x_ref[...].astype(jnp.float32)
    var = jnp.mean(x * x, axis=-1, keepdims=True)
    xn = (x * jax.lax.rsqrt(var + RMS_EPS)) * g_ref[...].astype(jnp.float32)
    o_ref[...] = jnp.dot(
        xn.astype(x_ref.dtype), w_ref[...], preferred_element_type=jnp.float32
    ).astype(o_ref.dtype)


def _mlp_kernel(x_ref, g_ref, wg_ref, wu_ref, wd_ref, o_ref, acc_ref):
    # o = down( silu(rmsnorm(x) @ Wg) * (rmsnorm(x) @ Wu) ) + x
    # Tiled over the intermediate dim (grid axis 1) with an f32 accumulator for the
    # down-projection; gate/up/silu stay in f32 until the single cast before Wd.
    j = pl.program_id(1)

    @pl.when(j == 0)
    def _():
        acc_ref[...] = jnp.zeros_like(acc_ref)

    x = x_ref[...].astype(jnp.float32)
    var = jnp.mean(x * x, axis=-1, keepdims=True)
    xn = ((x * jax.lax.rsqrt(var + RMS_EPS)) * g_ref[...].astype(jnp.float32)
          ).astype(x_ref.dtype)

    gate = jnp.dot(xn, wg_ref[...], preferred_element_type=jnp.float32)
    up = jnp.dot(xn, wu_ref[...], preferred_element_type=jnp.float32)
    act = gate * jax.nn.sigmoid(gate) * up                       # SiLU(gate) * up, f32
    acc_ref[...] += jnp.dot(act.astype(x_ref.dtype), wd_ref[...],
                            preferred_element_type=jnp.float32)

    @pl.when(j == pl.num_programs(1) - 1)
    def _():
        o_ref[...] = (acc_ref[...] + x_ref[...].astype(jnp.float32)).astype(o_ref.dtype)


def _rope(x, cos, sin):
    # x: (nh, T, d) f32 ; cos/sin: (1, T, d) f32. rotate_half as in the reference.
    # TODO(synk): rotate_half via pltpu.roll + sign-folded sin table once validated on this layout.
    half = x.shape[-1] // 2
    x1 = x[..., :half]
    x2 = x[..., half:]
    rot = jnp.concatenate([-x2, x1], axis=-1)
    return x * cos + rot * sin


def _flash_attn_kernel(amask_ref, q_ref, k_ref, v_ref,
                       cosq_ref, sinq_ref, cosk_ref, sink_ref,
                       o_ref, qrot_ref, m_ref, l_ref, acc_ref, *, sm_scale):
    # grid = (batch, q_tiles, kv_tiles); all heads processed per step.
    qi = pl.program_id(1)
    ki = pl.program_id(2)
    nh, tq, d = q_ref.shape[1], q_ref.shape[2], q_ref.shape[3]
    tkv = k_ref.shape[2]
    q_start = qi * tq
    kv_start = ki * tkv

    @pl.when(ki == 0)
    def _():
        # RoPE q once per (batch, q-tile) in f32, fold in 1/sqrt(d), cache as bf16 in scratch.
        q = q_ref[0].astype(jnp.float32)                       # (nh, tq, d)
        cos = cosq_ref[0].astype(jnp.float32)[None]            # (1, tq, d)
        sin = sinq_ref[0].astype(jnp.float32)[None]
        qrot_ref[...] = (_rope(q, cos, sin) * sm_scale).astype(qrot_ref.dtype)
        m_ref[...] = jnp.full_like(m_ref, NEG_INF)
        l_ref[...] = jnp.zeros_like(l_ref)
        acc_ref[...] = jnp.zeros_like(acc_ref)

    @pl.when(kv_start <= q_start + tq - 1)                      # skip fully-causal-masked tiles
    def _():
        k = k_ref[0].astype(jnp.float32)                        # (nh, tkv, d)
        cos = cosk_ref[0].astype(jnp.float32)[None]
        sin = sink_ref[0].astype(jnp.float32)[None]
        kr = _rope(k, cos, sin).astype(k_ref.dtype)             # back to bf16 for the MXU
        v = v_ref[0]                                            # (nh, tkv, d) bf16
        qr = qrot_ref[...]                                      # (nh, tq, d) bf16

        s = jnp.einsum('hqd,hkd->hqk', qr, kr,
                       preferred_element_type=jnp.float32)      # (nh, tq, tkv)

        # In-kernel causal + padding mask (no materialized (B,1,S,S) mask in HBM).
        q_pos = q_start + jax.lax.broadcasted_iota(jnp.int32, (tq, tkv), 0)
        k_pos = kv_start + jax.lax.broadcasted_iota(jnp.int32, (tq, tkv), 1)
        pad_ok = amask_ref[0, :, :] > 0                         # (1, tkv)
        allowed = (k_pos <= q_pos) & pad_ok                     # (tq, tkv)
        s = jnp.where(allowed[None, :, :], s, NEG_INF)

        m_prev = m_ref[...]                                     # (nh, tq, 1)
        m_new = jnp.maximum(m_prev, jnp.max(s, axis=-1, keepdims=True))
        alpha = jnp.exp(m_prev - m_new)
        p = jnp.exp(s - m_new)
        l_ref[...] = alpha * l_ref[...] + jnp.sum(p, axis=-1, keepdims=True)
        acc_ref[...] = alpha * acc_ref[...] + jnp.einsum(
            'hqk,hkd->hqd', p.astype(v.dtype), v, preferred_element_type=jnp.float32)
        m_ref[...] = m_new
        # TODO(synk): attention dropout (training=True, p=0.1) skipped -> eval-mode forward.

    @pl.when(ki == pl.num_programs(2) - 1)
    def _():
        inv_l = pl.reciprocal(l_ref[...], approx=True)
        o_ref[0] = (acc_ref[...] * inv_l).astype(o_ref.dtype)


# ----------------------------- Pallas wrappers -----------------------------

def _mm_params():
    return pltpu.CompilerParams(dimension_semantics=("parallel", "parallel"),
                                vmem_limit_bytes=_VMEM_LIMIT)


def matmul(x2d, w):
    m, kdim = x2d.shape
    n = w.shape[1]
    tm, tn = _pick_tile(m), _pick_tile(n)
    return pl.pallas_call(
        _matmul_kernel,
        out_shape=jax.ShapeDtypeStruct((m, n), x2d.dtype),
        grid=(m // tm, n // tn),
        in_specs=[pl.BlockSpec((tm, kdim), lambda i, j: (i, 0)),
                  pl.BlockSpec((kdim, tn), lambda i, j: (0, j))],
        out_specs=pl.BlockSpec((tm, tn), lambda i, j: (i, j)),
        compiler_params=_mm_params(),
    )(x2d, w)


def matmul_add(x2d, w, r2d):
    m, kdim = x2d.shape
    n = w.shape[1]
    tm, tn = _pick_tile(m), _pick_tile(n)
    return pl.pallas_call(
        _matmul_add_kernel,
        out_shape=jax.ShapeDtypeStruct((m, n), x2d.dtype),
        grid=(m // tm, n // tn),
        in_specs=[pl.BlockSpec((tm, kdim), lambda i, j: (i, 0)),
                  pl.BlockSpec((kdim, tn), lambda i, j: (0, j)),
                  pl.BlockSpec((tm, tn), lambda i, j: (i, j))],
        out_specs=pl.BlockSpec((tm, tn), lambda i, j: (i, j)),
        compiler_params=_mm_params(),
    )(x2d, w, r2d)


def rms_matmul(x2d, g_row, w):
    m, kdim = x2d.shape
    n = w.shape[1]
    tm, tn = _pick_tile(m), _pick_tile(n)
    return pl.pallas_call(
        _rms_matmul_kernel,
        out_shape=jax.ShapeDtypeStruct((m, n), x2d.dtype),
        grid=(m // tm, n // tn),
        in_specs=[pl.BlockSpec((tm, kdim), lambda i, j: (i, 0)),
                  pl.BlockSpec((1, kdim), lambda i, j: (0, 0)),
                  pl.BlockSpec((kdim, tn), lambda i, j: (0, j))],
        out_specs=pl.BlockSpec((tm, tn), lambda i, j: (i, j)),
        compiler_params=_mm_params(),
    )(x2d, g_row, w)


def mlp_fused(x2d, g_row, wg, wu, wd):
    m, h = x2d.shape
    inter = wg.shape[1]
    tm = _pick_tile(m)
    tj = _pick_tile(inter)
    return pl.pallas_call(
        _mlp_kernel,
        out_shape=jax.ShapeDtypeStruct((m, h), x2d.dtype),
        grid=(m // tm, inter // tj),
        in_specs=[pl.BlockSpec((tm, h), lambda i, j: (i, 0)),
                  pl.BlockSpec((1, h), lambda i, j: (0, 0)),
                  pl.BlockSpec((h, tj), lambda i, j: (0, j)),
                  pl.BlockSpec((h, tj), lambda i, j: (0, j)),
                  pl.BlockSpec((tj, h), lambda i, j: (j, 0))],
        out_specs=pl.BlockSpec((tm, h), lambda i, j: (i, 0)),
        scratch_shapes=[pltpu.VMEM((tm, h), jnp.float32)],
        compiler_params=pltpu.CompilerParams(
            dimension_semantics=("parallel", "arbitrary"),
            vmem_limit_bytes=_VMEM_LIMIT),
    )(x2d, g_row, wg, wu, wd)


def flash_attention(q, k, v, cos, sin, attention_mask):
    b, nh, s, d = q.shape
    tq = _pick_tile(s, (256, 128))
    tkv = _pick_tile(s, (256, 128))
    sm_scale = 1.0 / math.sqrt(d)
    amask = attention_mask.reshape(b, 1, s).astype(jnp.int32)

    q_spec = pl.BlockSpec((1, nh, tq, d), lambda bi, qi, ki: (bi, 0, qi, 0))
    kv_spec = pl.BlockSpec((1, nh, tkv, d), lambda bi, qi, ki: (bi, 0, ki, 0))
    cq_spec = pl.BlockSpec((1, tq, d), lambda bi, qi, ki: (bi, qi, 0))
    ck_spec = pl.BlockSpec((1, tkv, d), lambda bi, qi, ki: (bi, ki, 0))
    am_spec = pl.BlockSpec((1, 1, tkv), lambda bi, qi, ki: (bi, 0, ki))
    o_spec = pl.BlockSpec((1, nh, tq, d), lambda bi, qi, ki: (bi, 0, qi, 0))

    return pl.pallas_call(
        functools.partial(_flash_attn_kernel, sm_scale=sm_scale),
        out_shape=jax.ShapeDtypeStruct((b, nh, s, d), q.dtype),
        grid=(b, s // tq, s // tkv),
        in_specs=[am_spec, q_spec, kv_spec, kv_spec, cq_spec, cq_spec, ck_spec, ck_spec],
        out_specs=o_spec,
        scratch_shapes=[
            pltpu.VMEM((nh, tq, d), q.dtype),      # cached roped & scaled q
            pltpu.VMEM((nh, tq, 1), jnp.float32),  # running max
            pltpu.VMEM((nh, tq, 1), jnp.float32),  # running sum
            pltpu.VMEM((nh, tq, d), jnp.float32),  # output accumulator
        ],
        compiler_params=pltpu.CompilerParams(
            dimension_semantics=("parallel", "parallel", "arbitrary"),
            vmem_limit_bytes=_VMEM_LIMIT),
    )(amask, q, k, v, cos, sin, cos, sin)


# ----------------------------- JAX glue -----------------------------

def rope_cos_sin(position_ids, dim, base=10000.0):
    # kept in f32 (no bf16 double rounding of the tables); kernels consume f32 directly.
    inv_freq = 1.0 / (base ** (jnp.arange(0, dim, 2, dtype=jnp.float32) / dim))
    freqs = position_ids[:, :, None].astype(jnp.float32) * inv_freq[None, None, :]
    emb = jnp.concatenate([freqs, freqs], axis=-1)               # (B, S, dim)
    return jnp.cos(emb), jnp.sin(emb)


def decoder_layer(hidden2d, cos, sin, attention_mask, lp, b, s, nh, d):
    h = hidden2d.shape[1]
    # fused input RMSNorm + QKV projection
    qkv = rms_matmul(hidden2d, lp["input_ln"], lp["wqkv"])       # (B*S, 3H)
    qkv = qkv.reshape(b, s, 3, nh, d)
    q = qkv[:, :, 0].transpose(0, 2, 1, 3)                       # (B, nH, S, D)
    k = qkv[:, :, 1].transpose(0, 2, 1, 3)
    v = qkv[:, :, 2].transpose(0, 2, 1, 3)

    attn = flash_attention(q, k, v, cos, sin, attention_mask)    # (B, nH, S, D)
    attn2d = attn.transpose(0, 2, 1, 3).reshape(b * s, h)

    # fused o_proj + residual add  ->  new residual
    res2 = matmul_add(attn2d, lp["wo"], hidden2d)
    # fused post-attn RMSNorm + SwiGLU MLP + residual add
    return mlp_fused(res2, lp["post_ln"], lp["wg"], lp["wu"], lp["wd"])


def forward(params, input_ids, attention_mask, cfg):
    b, s = input_ids.shape
    h = cfg["hidden_size"]
    nh = cfg["num_heads"]
    d = h // nh
    e = cfg["embedding_dim"]
    m = b * s

    inputs_embeddings = params["embed_tokens"][input_ids]        # (B, S, E) bf16 gather

    position_ids = jnp.cumsum(attention_mask, axis=-1) - 1
    position_ids = jnp.where(attention_mask == 0, 1, position_ids)
    cos, sin = rope_cos_sin(position_ids, d)                     # (B, S, D) f32

    hidden2d = matmul(inputs_embeddings.reshape(m, e), params["embedding_decoder"])

    for lp in params["layers"]:
        hidden2d = decoder_layer(hidden2d, cos, sin, attention_mask, lp, b, s, nh, d)

    # fused final RMSNorm + lm_head_decoder, then vocab-tiled lm_head
    output_states = rms_matmul(hidden2d, params["norm"], params["lm_head_decoder"])  # (B*S, E)
    logits = matmul(output_states, params["lm_head"])            # (B*S, V)
    return logits.reshape(b, s, cfg["vocab_size"])


# ----------------------------- Parameter init -----------------------------

def _linear_init(key, fan_in, fan_out):
    bound = 1.0 / math.sqrt(fan_in)
    return jax.random.uniform(
        key, (fan_in, fan_out), jnp.float32, -bound, bound).astype(DTYPE)


def init_params(key, cfg):
    h = cfg["hidden_size"]
    e = cfg["embedding_dim"]
    inter = cfg["MLP_intermediate"]
    v = cfg["vocab_size"]

    keys = jax.random.split(key, 4 + cfg["num_layers"])

    embed = jax.random.normal(keys[0], (v, e), jnp.float32).astype(DTYPE)
    embed = embed.at[cfg["padding_token_id"]].set(0.0)

    params = {
        "embed_tokens": embed,
        "embedding_decoder": _linear_init(keys[1], e, h),
        "lm_head_decoder": _linear_init(keys[2], h, e),
        "lm_head": _linear_init(keys[3], e, v),
        "norm": jnp.ones((1, h), jnp.float32),
        "layers": [],
    }
    for li in range(cfg["num_layers"]):
        ks = jax.random.split(keys[4 + li], 7)
        wq = _linear_init(ks[0], h, h)
        wk = _linear_init(ks[1], h, h)
        wv = _linear_init(ks[2], h, h)
        params["layers"].append({
            "wqkv": jnp.concatenate([wq, wk, wv], axis=1),       # (H, 3H)
            "wo": _linear_init(ks[3], h, h),
            "wg": _linear_init(ks[4], h, inter),
            "wu": _linear_init(ks[5], h, inter),
            "wd": _linear_init(ks[6], inter, h),
            "input_ln": jnp.ones((1, h), jnp.float32),
            "post_ln": jnp.ones((1, h), jnp.float32),
        })
    return params


# ----------------------------- Main -----------------------------

if __name__ == "__main__":
    cfg = {
        "vocab_size": 64,
        "padding_token_id": 0,
        "hidden_size": 32,
        "num_heads": 4,
        "MLP_intermediate": 64,
        "num_layers": 2,
        "embedding_dim": 16,
    }
    B, S = 2, 8

    key = jax.random.PRNGKey(0)
    pkey, ikey = jax.random.split(key)
    params = init_params(pkey, cfg)

    input_ids = jax.random.randint(ikey, (B, S), 1, cfg["vocab_size"], dtype=jnp.int32)
    attention_mask = jnp.ones((B, S), dtype=jnp.int32)

    fwd = jax.jit(functools.partial(forward, cfg=cfg))
    logits = fwd(params, input_ids, attention_mask)
    jax.block_until_ready(logits)

    assert logits.shape == (B, S, cfg["vocab_size"])
    assert logits.dtype == DTYPE
    print("KERNEL_OK")
</pallas_src>

<mosaic_0001>
module attributes {stable_mosaic.version = 11 : i64} {
  func.func @_matmul_kernel(%arg0: i32, %arg1: i32, %arg2: memref<16x16xbf16, #tpu.memory_space<vmem>>, %arg3: memref<16x32xbf16, #tpu.memory_space<vmem>>, %arg4: memref<16x32xbf16, #tpu.memory_space<vmem>>) attributes {dimension_semantics = [#tpu.dimension_semantics<parallel>, #tpu.dimension_semantics<parallel>], iteration_bounds = array<i64: 1, 1>, scalar_prefetch = 0 : i64, scratch_operands = 0 : i64, tpu.core_type = #tpu.core_type<tc>, window_params = [{transform_indices = @transform_0, window_bounds = array<i64: 16, 16>}, {transform_indices = @transform_1, window_bounds = array<i64: 16, 32>}, {transform_indices = @transform_2, window_bounds = array<i64: 16, 32>}]} {
    %c0 = arith.constant 0 : index
    %c0_0 = arith.constant 0 : index
    %0 = vector.load %arg2[%c0, %c0_0] : memref<16x16xbf16, #tpu.memory_space<vmem>>, vector<16x16xbf16>
    %c0_1 = arith.constant 0 : index
    %c0_2 = arith.constant 0 : index
    %1 = vector.load %arg3[%c0_1, %c0_2] : memref<16x32xbf16, #tpu.memory_space<vmem>>, vector<16x32xbf16>
    %cst = arith.constant dense<0.000000e+00> : vector<16x32xf32>
    %2 = tpu.matmul %0, %1, %cst {dimension_numbers = #tpu.dot_dimension_numbers<[1], [0], [0], [1], [0, 0, 1, 1], [], []>} : vector<16x16xbf16>, vector<16x32xbf16>, vector<16x32xf32> -> vector<16x32xf32>
    %3 = arith.truncf %2 : vector<16x32xf32> to vector<16x32xbf16>
    %c0_3 = arith.constant 0 : index
    %c0_4 = arith.constant 0 : index
    %4 = vector.load %arg4[%c0_3, %c0_4] : memref<16x32xbf16, #tpu.memory_space<vmem>>, vector<16x32xbf16>
    tpu.vector_store %arg4[%c0_3, %c0_4], %3 {strides = array<i32>} : memref<16x32xbf16, #tpu.memory_space<vmem>>, vector<16x32xbf16>,
    return
  }
  func.func @transform_0(%arg0: i32, %arg1: i32) -> (i32, i32) {
    %c0_i32 = arith.constant 0 : i32
    %c0_i32_0 = arith.constant 0 : i32
    return %arg0, %c0_i32 : i32, i32
  }
  func.func @transform_1(%arg0: i32, %arg1: i32) -> (i32, i32) {
    %c0_i32 = arith.constant 0 : i32
    %c0_i32_0 = arith.constant 0 : i32
    return %c0_i32, %arg1 : i32, i32
  }
  func.func @transform_2(%arg0: i32, %arg1: i32) -> (i32, i32) {
    %c0_i32 = arith.constant 0 : i32
    return %arg0, %arg1 : i32, i32
  }
}

module attributes {stable_mosaic.version = 11 : i64} {
  func.func @_rms_matmul_kernel(%arg0: i32, %arg1: i32, %arg2: memref<16x32xbf16, #tpu.memory_space<vmem>>, %arg3: memref<1x32xf32, #tpu.memory_space<vmem>>, %arg4: memref<32x96xbf16, #tpu.memory_space<vmem>>, %arg5: memref<16x96xbf16, #tpu.memory_space<vmem>>) attributes {dimension_semantics = [#tpu.dimension_semantics<parallel>, #tpu.dimension_semantics<parallel>], iteration_bounds = array<i64: 1, 1>, scalar_prefetch = 0 : i64, scratch_operands = 0 : i64, tpu.core_type = #tpu.core_type<tc>, window_params = [{transform_indices = @transform_0, window_bounds = array<i64: 16, 32>}, {pipeline_mode = #tpu.pipeline_mode<synchronous>, transform_indices = @transform_1, window_bounds = array<i64: 1, 32>}, {transform_indices = @transform_2, window_bounds = array<i64: 32, 96>}, {transform_indices = @transform_3, window_bounds = array<i64: 16, 96>}]} {
    %c0 = arith.constant 0 : index
    %c0_0 = arith.constant 0 : index
    %0 = vector.load %arg2[%c0, %c0_0] : memref<16x32xbf16, #tpu.memory_space<vmem>>, vector<16x32xbf16>
    %1 = arith.extf %0 : vector<16x32xbf16> to vector<16x32xf32>
    %2 = arith.mulf %1, %1 : vector<16x32xf32>
    %cst = arith.constant dense<0.000000e+00> : vector<16xf32>
    %3 = vector.multi_reduction <add>, %2, %cst [1] : vector<16x32xf32> to vector<16xf32>
    %4 = vector.shape_cast %3 : vector<16xf32> to vector<16x1xf32>
    %cst_1 = arith.constant 3.200000e+01 : f32
    %5 = vector.broadcast %cst_1 : f32 to vector<16x1xf32>
    %6 = arith.divf %4, %5 : vector<16x1xf32>
    %cst_2 = arith.constant 9.99999997E-7 : f32
    %7 = vector.broadcast %cst_2 : f32 to vector<16x1xf32>
    %8 = arith.addf %6, %7 : vector<16x1xf32>
    %9 = math.rsqrt %8 : vector<16x1xf32>
    %10 = vector.broadcast %9 : vector<16x1xf32> to vector<16x32xf32>
    %11 = arith.mulf %1, %10 : vector<16x32xf32>
    %c0_3 = arith.constant 0 : index
    %c0_4 = arith.constant 0 : index
    %12 = vector.load %arg3[%c0_3, %c0_4] : memref<1x32xf32, #tpu.memory_space<vmem>>, vector<1x32xf32>
    %13 = vector.broadcast %12 : vector<1x32xf32> to vector<16x32xf32>
    %14 = arith.mulf %11, %13 : vector<16x32xf32>
    %15 = arith.truncf %14 : vector<16x32xf32> to vector<16x32xbf16>
    %c0_5 = arith.constant 0 : index
    %c0_6 = arith.constant 0 : index
    %16 = vector.load %arg4[%c0_5, %c0_6] : memref<32x96xbf16, #tpu.memory_space<vmem>>, vector<32x96xbf16>
    %cst_7 = arith.constant dense<0.000000e+00> : vector<16x96xf32>
    %17 = tpu.matmul %15, %16, %cst_7 {dimension_numbers = #tpu.dot_dimension_numbers<[1], [0], [0], [1], [0, 0, 1, 1], [], []>} : vector<16x32xbf16>, vector<32x96xbf16>, vector<16x96xf32> -> vector<16x96xf32>
    %18 = arith.truncf %17 : vector<16x96xf32> to vector<16x96xbf16>
    %c0_8 = arith.constant 0 : index
    %c0_9 = arith.constant 0 : index
    %19 = vector.load %arg5[%c0_8, %c0_9] : memref<16x96xbf16, #tpu.memory_space<vmem>>, vector<16x96xbf16>
    tpu.vector_store %arg5[%c0_8, %c0_9], %18 {strides = array<i32>} : memref<16x96xbf16, #tpu.memory_space<vmem>>, vector<16x96xbf16>,
    return
  }
  func.func @transform_0(%arg0: i32, %arg1: i32) -> (i32, i32) {
    %c0_i32 = arith.constant 0 : i32
    %c0_i32_0 = arith.constant 0 : i32
    return %arg0, %c0_i32 : i32, i32
  }
  func.func @transform_1(%arg0: i32, %arg1: i32) -> (i32, i32) {
    %c0_i32 = arith.constant 0 : i32
    %c0_i32_0 = arith.constant 0 : i32
    %c0_i32_1 = arith.constant 0 : i32
    return %c0_i32, %c0_i32_0 : i32, i32
  }
  func.func @transform_2(%arg0: i32, %arg1: i32) -> (i32, i32) {
    %c0_i32 = arith.constant 0 : i32
    %c0_i32_0 = arith.constant 0 : i32
    return %c0_i32, %arg1 : i32, i32
  }
  func.func @transform_3(%arg0: i32, %arg1: i32) -> (i32, i32) {
    %c0_i32 = arith.constant 0 : i32
    return %arg0, %arg1 : i32, i32
  }
}

module attributes {stable_mosaic.version = 11 : i64} {
  func.func @_matmul_add_kernel(%arg0: i32, %arg1: i32, %arg2: memref<16x32xbf16, #tpu.memory_space<vmem>>, %arg3: memref<32x32xbf16, #tpu.memory_space<vmem>>, %arg4: memref<16x32xbf16, #tpu.memory_space<vmem>>, %arg5: memref<16x32xbf16, #tpu.memory_space<vmem>>) attributes {dimension_semantics = [#tpu.dimension_semantics<parallel>, #tpu.dimension_semantics<parallel>], iteration_bounds = array<i64: 1, 1>, scalar_prefetch = 0 : i64, scratch_operands = 0 : i64, tpu.core_type = #tpu.core_type<tc>, window_params = [{transform_indices = @transform_0, window_bounds = array<i64: 16, 32>}, {transform_indices = @transform_1, window_bounds = array<i64: 32, 32>}, {transform_indices = @transform_2, window_bounds = array<i64: 16, 32>}, {transform_indices = @transform_3, window_bounds = array<i64: 16, 32>}]} {
    %c0 = arith.constant 0 : index
    %c0_0 = arith.constant 0 : index
    %0 = vector.load %arg2[%c0, %c0_0] : memref<16x32xbf16, #tpu.memory_space<vmem>>, vector<16x32xbf16>
    %c0_1 = arith.constant 0 : index
    %c0_2 = arith.constant 0 : index
    %1 = vector.load %arg3[%c0_1, %c0_2] : memref<32x32xbf16, #tpu.memory_space<vmem>>, vector<32x32xbf16>
    %cst = arith.constant dense<0.000000e+00> : vector<16x32xf32>
    %2 = tpu.matmul %0, %1, %cst {dimension_numbers = #tpu.dot_dimension_numbers<[1], [0], [0], [1], [0, 0, 1, 1], [], []>} : vector<16x32xbf16>, vector<32x32xbf16>, vector<16x32xf32> -> vector<16x32xf32>
    %c0_3 = arith.constant 0 : index
    %c0_4 = arith.constant 0 : index
    %3 = vector.load %arg4[%c0_3, %c0_4] : memref<16x32xbf16, #tpu.memory_space<vmem>>, vector<16x32xbf16>
    %4 = arith.extf %3 : vector<16x32xbf16> to vector<16x32xf32>
    %5 = arith.addf %2, %4 : vector<16x32xf32>
    %6 = arith.truncf %5 : vector<16x32xf32> to vector<16x32xbf16>
    %c0_5 = arith.constant 0 : index
    %c0_6 = arith.constant 0 : index
    %7 = vector.load %arg5[%c0_5, %c0_6] : memref<16x32xbf16, #tpu.memory_space<vmem>>, vector<16x32xbf16>
    tpu.vector_store %arg5[%c0_5, %c0_6], %6 {strides = array<i32>} : memref<16x32xbf16, #tpu.memory_space<vmem>>, vector<16x32xbf16>,
    return
  }
  func.func @transform_0(%arg0: i32, %arg1: i32) -> (i32, i32) {
    %c0_i32 = arith.constant 0 : i32
    %c0_i32_0 = arith.constant 0 : i32
    return %arg0, %c0_i32 : i32, i32
  }
  func.func @transform_1(%arg0: i32, %arg1: i32) -> (i32, i32) {
    %c0_i32 = arith.constant 0 : i32
    %c0_i32_0 = arith.constant 0 : i32
    return %c0_i32, %arg1 : i32, i32
  }
  func.func @transform_2(%arg0: i32, %arg1: i32) -> (i32, i32) {
    %c0_i32 = arith.constant 0 : i32
    return %arg0, %arg1 : i32, i32
  }
  func.func @transform_3(%arg0: i32, %arg1: i32) -> (i32, i32) {
    %c0_i32 = arith.constant 0 : i32
    return %arg0, %arg1 : i32, i32
  }
}

module attributes {stable_mosaic.version = 11 : i64} {
  func.func @_flash_attn_kernel(%arg0: i32, %arg1: i32, %arg2: i32, %arg3: memref<1x1x8xi32, #tpu.memory_space<vmem>>, %arg4: memref<1x4x8x8xbf16, #tpu.memory_space<vmem>>, %arg5: memref<1x4x8x8xbf16, #tpu.memory_space<vmem>>, %arg6: memref<1x4x8x8xbf16, #tpu.memory_space<vmem>>, %arg7: memref<1x8x8xf32, #tpu.memory_space<vmem>>, %arg8: memref<1x8x8xf32, #tpu.memory_space<vmem>>, %arg9: memref<1x8x8xf32, #tpu.memory_space<vmem>>, %arg10: memref<1x8x8xf32, #tpu.memory_space<vmem>>, %arg11: memref<1x4x8x8xbf16, #tpu.memory_space<vmem>>, %arg12: memref<4x8x8xbf16, #tpu.memory_space<vmem>>, %arg13: memref<4x8x1xf32, #tpu.memory_space<vmem>>, %arg14: memref<4x8x1xf32, #tpu.memory_space<vmem>>, %arg15: memref<4x8x8xf32, #tpu.memory_space<vmem>>) attributes {dimension_semantics = [#tpu.dimension_semantics<parallel>, #tpu.dimension_semantics<parallel>, #tpu.dimension_semantics<arbitrary>], iteration_bounds = array<i64: 2, 1, 1>, scalar_prefetch = 0 : i64, scratch_operands = 4 : i64, tpu.core_type = #tpu.core_type<tc>, window_params = [{transform_indices = @transform_0, window_bounds = array<i64: 1, 1, 8>}, {transform_indices = @transform_1, window_bounds = array<i64: 1, 4, 8, 8>}, {transform_indices = @transform_2, window_bounds = array<i64: 1, 4, 8, 8>}, {transform_indices = @transform_3, window_bounds = array<i64: 1, 4, 8, 8>}, {transform_indices = @transform_4, window_bounds = array<i64: 1, 8, 8>}, {transform_indices = @transform_5, window_bounds = array<i64: 1, 8, 8>}, {transform_indices = @transform_6, window_bounds = array<i64: 1, 8, 8>}, {transform_indices = @transform_7, window_bounds = array<i64: 1, 8, 8>}, {transform_indices = @transform_8, window_bounds = array<i64: 1, 4, 8, 8>}]} {
    %c8_i32 = arith.constant 8 : i32
    %0 = arith.muli %arg1, %c8_i32 : i32
    %c8_i32_0 = arith.constant 8 : i32
    %1 = arith.muli %arg2, %c8_i32_0 : i32
    %c0_i32 = arith.constant 0 : i32
    %2 = arith.cmpi eq, %arg2, %c0_i32 : i32
    %3 = arith.extui %2 : i1 to i32
    %c0_i32_1 = arith.constant 0 : i32
    %4 = arith.cmpi ne, %3, %c0_i32_1 : i32
    scf.if %4 {
      %c0 = arith.constant 0 : index
      %c0_6 = arith.constant 0 : index
      %c0_7 = arith.constant 0 : index
      %c0_8 = arith.constant 0 : index
      %13 = vector.load %arg4[%c0, %c0_6, %c0_7, %c0_8] : memref<1x4x8x8xbf16, #tpu.memory_space<vmem>>, vector<1x4x8x8xbf16>
      %14 = vector.shape_cast %13 : vector<1x4x8x8xbf16> to vector<4x8x8xbf16>
      %15 = arith.extf %14 : vector<4x8x8xbf16> to vector<4x8x8xf32>
      %c0_9 = arith.constant 0 : index
      %c0_10 = arith.constant 0 : index
      %c0_11 = arith.constant 0 : index
      %16 = vector.load %arg7[%c0_9, %c0_10, %c0_11] : memref<1x8x8xf32, #tpu.memory_space<vmem>>, vector<1x8x8xf32>
      %17 = vector.shape_cast %16 : vector<1x8x8xf32> to vector<8x8xf32>
      %18 = vector.shape_cast %17 : vector<8x8xf32> to vector<1x8x8xf32>
      %c0_12 = arith.constant 0 : index
      %c0_13 = arith.constant 0 : index
      %c0_14 = arith.constant 0 : index
      %19 = vector.load %arg8[%c0_12, %c0_13, %c0_14] : memref<1x8x8xf32, #tpu.memory_space<vmem>>, vector<1x8x8xf32>
      %20 = vector.shape_cast %19 : vector<1x8x8xf32> to vector<8x8xf32>
      %21 = vector.shape_cast %20 : vector<8x8xf32> to vector<1x8x8xf32>
      %22 = vector.extract_strided_slice %15 {offsets = [0, 0, 0], sizes = [4, 8, 4], strides = [1, 1, 1]} : vector<4x8x8xf32> to vector<4x8x4xf32>
      %23 = vector.extract_strided_slice %15 {offsets = [0, 0, 4], sizes = [4, 8, 4], strides = [1, 1, 1]} : vector<4x8x8xf32> to vector<4x8x4xf32>
      %cst = arith.constant 0.000000e+00 : f32
      %24 = vector.broadcast %cst : f32 to vector<4x8x4xf32>
      %25 = arith.subf %24, %23 : vector<4x8x4xf32>
      %26 = tpu.concatenate %25, %22 in 2 : vector<4x8x4xf32>, vector<4x8x4xf32> -> vector<4x8x8xf32>
      %27 = vector.broadcast %18 : vector<1x8x8xf32> to vector<4x8x8xf32>
      %28 = arith.mulf %15, %27 : vector<4x8x8xf32>
      %29 = vector.broadcast %21 : vector<1x8x8xf32> to vector<4x8x8xf32>
      %30 = arith.mulf %26, %29 : vector<4x8x8xf32>
      %31 = arith.addf %28, %30 : vector<4x8x8xf32>
      %cst_15 = arith.constant 0.353553385 : f32
      %32 = vector.broadcast %cst_15 : f32 to vector<4x8x8xf32>
      %33 = arith.mulf %31, %32 : vector<4x8x8xf32>
      %34 = arith.truncf %33 : vector<4x8x8xf32> to vector<4x8x8xbf16>
      %c0_16 = arith.constant 0 : index
      %c0_17 = arith.constant 0 : index
      %c0_18 = arith.constant 0 : index
      %35 = vector.load %arg12[%c0_16, %c0_17, %c0_18] : memref<4x8x8xbf16, #tpu.memory_space<vmem>>, vector<4x8x8xbf16>
      tpu.vector_store %arg12[%c0_16, %c0_17, %c0_18], %34 {strides = array<i32>} : memref<4x8x8xbf16, #tpu.memory_space<vmem>>, vector<4x8x8xbf16>,
      %cst_19 = arith.constant -1.000000e+30 : f32
      %36 = vector.broadcast %cst_19 : f32 to vector<4x8x1xf32>
      %c0_20 = arith.constant 0 : index
      %c0_21 = arith.constant 0 : index
      %c0_22 = arith.constant 0 : index
      %37 = vector.load %arg13[%c0_20, %c0_21, %c0_22] : memref<4x8x1xf32, #tpu.memory_space<vmem>>, vector<4x8x1xf32>
      tpu.vector_store %arg13[%c0_20, %c0_21, %c0_22], %36 {strides = array<i32>} : memref<4x8x1xf32, #tpu.memory_space<vmem>>, vector<4x8x1xf32>,
      %cst_23 = arith.constant 0.000000e+00 : f32
      %38 = vector.broadcast %cst_23 : f32 to vector<4x8x1xf32>
      %c0_24 = arith.constant 0 : index
      %c0_25 = arith.constant 0 : index
      %c0_26 = arith.constant 0 : index
      %39 = vector.load %arg14[%c0_24, %c0_25, %c0_26] : memref<4x8x1xf32, #tpu.memory_space<vmem>>, vector<4x8x1xf32>
      tpu.vector_store %arg14[%c0_24, %c0_25, %c0_26], %38 {strides = array<i32>} : memref<4x8x1xf32, #tpu.memory_space<vmem>>, vector<4x8x1xf32>,
      %cst_27 = arith.constant 0.000000e+00 : f32
      %40 = vector.broadcast %cst_27 : f32 to vector<4x8x8xf32>
      %c0_28 = arith.constant 0 : index
      %c0_29 = arith.constant 0 : index
      %c0_30 = arith.constant 0 : index
      %41 = vector.load %arg15[%c0_28, %c0_29, %c0_30] : memref<4x8x8xf32, #tpu.memory_space<vmem>>, vector<4x8x8xf32>
      tpu.vector_store %arg15[%c0_28, %c0_29, %c0_30], %40 {strides = array<i32>} : memref<4x8x8xf32, #tpu.memory_space<vmem>>, vector<4x8x8xf32>,
    } else {
    }
    %c8_i32_2 = arith.constant 8 : i32
    %5 = arith.addi %0, %c8_i32_2 : i32
    %c1_i32 = arith.constant 1 : i32
    %6 = arith.subi %5, %c1_i32 : i32
    %7 = arith.cmpi sle, %1, %6 : i32
    %8 = arith.extui %7 : i1 to i32
    %c0_i32_3 = arith.constant 0 : i32
    %9 = arith.cmpi ne, %8, %c0_i32_3 : i32
    scf.if %9 {
      %c0 = arith.constant 0 : index
      %c0_6 = arith.constant 0 : index
      %c0_7 = arith.constant 0 : index
      %c0_8 = arith.constant 0 : index
      %13 = vector.load %arg5[%c0, %c0_6, %c0_7, %c0_8] : memref<1x4x8x8xbf16, #tpu.memory_space<vmem>>, vector<1x4x8x8xbf16>
      %14 = vector.shape_cast %13 : vector<1x4x8x8xbf16> to vector<4x8x8xbf16>
      %15 = arith.extf %14 : vector<4x8x8xbf16> to vector<4x8x8xf32>
      %c0_9 = arith.constant 0 : index
      %c0_10 = arith.constant 0 : index
      %c0_11 = arith.constant 0 : index
      %16 = vector.load %arg9[%c0_9, %c0_10, %c0_11] : memref<1x8x8xf32, #tpu.memory_space<vmem>>, vector<1x8x8xf32>
      %17 = vector.shape_cast %16 : vector<1x8x8xf32> to vector<8x8xf32>
      %18 = vector.shape_cast %17 : vector<8x8xf32> to vector<1x8x8xf32>
      %c0_12 = arith.constant 0 : index
      %c0_13 = arith.constant 0 : index
      %c0_14 = arith.constant 0 : index
      %19 = vector.load %arg10[%c0_12, %c0_13, %c0_14] : memref<1x8x8xf32, #tpu.memory_space<vmem>>, vector<1x8x8xf32>
      %20 = vector.shape_cast %19 : vector<1x8x8xf32> to vector<8x8xf32>
      %21 = vector.shape_cast %20 : vector<8x8xf32> to vector<1x8x8xf32>
      %22 = vector.extract_strided_slice %15 {offsets = [0, 0, 0], sizes = [4, 8, 4], strides = [1, 1, 1]} : vector<4x8x8xf32> to vector<4x8x4xf32>
      %23 = vector.extract_strided_slice %15 {offsets = [0, 0, 4], sizes = [4, 8, 4], strides = [1, 1, 1]} : vector<4x8x8xf32> to vector<4x8x4xf32>
      %cst = arith.constant 0.000000e+00 : f32
      %24 = vector.broadcast %cst : f32 to vector<4x8x4xf32>
      %25 = arith.subf %24, %23 : vector<4x8x4xf32>
      %26 = tpu.concatenate %25, %22 in 2 : vector<4x8x4xf32>, vector<4x8x4xf32> -> vector<4x8x8xf32>
      %27 = vector.broadcast %18 : vector<1x8x8xf32> to vector<4x8x8xf32>
      %28 = arith.mulf %15, %27 : vector<4x8x8xf32>
      %29 = vector.broadcast %21 : vector<1x8x8xf32> to vector<4x8x8xf32>
      %30 = arith.mulf %26, %29 : vector<4x8x8xf32>
      %31 = arith.addf %28, %30 : vector<4x8x8xf32>
      %32 = arith.truncf %31 : vector<4x8x8xf32> to vector<4x8x8xbf16>
      %c0_15 = arith.constant 0 : index
      %c0_16 = arith.constant 0 : index
      %c0_17 = arith.constant 0 : index
      %c0_18 = arith.constant 0 : index
      %33 = vector.load %arg6[%c0_15, %c0_16, %c0_17, %c0_18] : memref<1x4x8x8xbf16, #tpu.memory_space<vmem>>, vector<1x4x8x8xbf16>
      %34 = vector.shape_cast %33 : vector<1x4x8x8xbf16> to vector<4x8x8xbf16>
      %c0_19 = arith.constant 0 : index
      %c0_20 = arith.constant 0 : index
      %c0_21 = arith.constant 0 : index
      %35 = vector.load %arg12[%c0_19, %c0_20, %c0_21] : memref<4x8x8xbf16, #tpu.memory_space<vmem>>, vector<4x8x8xbf16>
      "tpu.trace_start"() <{level = 10 : i32, message = "hqd,hkd->hqk"}> : () -> ()
      %cst_22 = arith.constant dense<0.000000e+00> : vector<4x8x8xf32>
      %36 = tpu.matmul %35, %32, %cst_22 {dimension_numbers = #tpu.dot_dimension_numbers<[2], [2], [1], [1], [0, 0, 0, 1, 1, 1], [0], [0]>} : vector<4x8x8xbf16>, vector<4x8x8xbf16>, vector<4x8x8xf32> -> vector<4x8x8xf32>
      "tpu.trace_stop"() : () -> ()
      %37 = tpu.iota {dimensions = array<i32: 0>} : vector<8x8xi32>
      %38 = vector.broadcast %0 : i32 to vector<8x8xi32>
      %39 = arith.addi %38, %37 : vector<8x8xi32>
      %40 = tpu.iota {dimensions = array<i32: 1>} : vector<8x8xi32>
      %41 = vector.broadcast %1 : i32 to vector<8x8xi32>
      %42 = arith.addi %41, %40 : vector<8x8xi32>
      %c0_23 = arith.constant 0 : index
      %c0_24 = arith.constant 0 : index
      %c0_25 = arith.constant 0 : index
      %43 = vector.load %arg3[%c0_23, %c0_24, %c0_25] : memref<1x1x8xi32, #tpu.memory_space<vmem>>, vector<1x1x8xi32>
      %44 = vector.shape_cast %43 : vector<1x1x8xi32> to vector<1x8xi32>
      %c0_i32_26 = arith.constant 0 : i32
      %45 = vector.broadcast %c0_i32_26 : i32 to vector<1x8xi32>
      %46 = arith.cmpi sgt, %44, %45 : vector<1x8xi32>
      %47 = arith.cmpi sle, %42, %39 : vector<8x8xi32>
      %48 = vector.broadcast %46 : vector<1x8xi1> to vector<8x8xi1>
      %49 = arith.andi %47, %48 : vector<8x8xi1>
      %50 = vector.shape_cast %49 : vector<8x8xi1> to vector<1x8x8xi1>
      %cst_27 = arith.constant -1.000000e+30 : f32
      %51 = vector.shape_cast %50 : vector<1x8x8xi1> to vector<1x8x8xi1>
      %52 = vector.broadcast %51 : vector<1x8x8xi1> to vector<4x8x8xi1>
      %53 = vector.broadcast %cst_27 : f32 to vector<4x8x8xf32>
      %54 = arith.select %52, %36, %53 : vector<4x8x8xi1>, vector<4x8x8xf32>
      %c0_28 = arith.constant 0 : index
      %c0_29 = arith.constant 0 : index
      %c0_30 = arith.constant 0 : index
      %55 = vector.load %arg13[%c0_28, %c0_29, %c0_30] : memref<4x8x1xf32, #tpu.memory_space<vmem>>, vector<4x8x1xf32>
      %cst_31 = arith.constant dense<0xFF800000> : vector<4x8xf32>
      %56 = vector.multi_reduction <maximumf>, %54, %cst_31 [2] : vector<4x8x8xf32> to vector<4x8xf32>
      %57 = vector.shape_cast %56 : vector<4x8xf32> to vector<4x8x1xf32>
      %58 = arith.maximumf %55, %57 : vector<4x8x1xf32>
      %59 = arith.subf %55, %58 : vector<4x8x1xf32>
      %60 = math.exp %59 : vector<4x8x1xf32>
      %61 = vector.broadcast %58 : vector<4x8x1xf32> to vector<4x8x8xf32>
      %62 = arith.subf %54, %61 : vector<4x8x8xf32>
      %63 = math.exp %62 : vector<4x8x8xf32>
      %c0_32 = arith.constant 0 : index
      %c0_33 = arith.constant 0 : index
      %c0_34 = arith.constant 0 : index
      %64 = vector.load %arg14[%c0_32, %c0_33, %c0_34] : memref<4x8x1xf32, #tpu.memory_space<vmem>>, vector<4x8x1xf32>
      %65 = arith.mulf %60, %64 : vector<4x8x1xf32>
      %cst_35 = arith.constant dense<0.000000e+00> : vector<4x8xf32>
      %66 = vector.multi_reduction <add>, %63, %cst_35 [2] : vector<4x8x8xf32> to vector<4x8xf32>
      %67 = vector.shape_cast %66 : vector<4x8xf32> to vector<4x8x1xf32>
      %68 = arith.addf %65, %67 : vector<4x8x1xf32>
      %c0_36 = arith.constant 0 : index
      %c0_37 = arith.constant 0 : index
      %c0_38 = arith.constant 0 : index
      %69 = vector.load %arg14[%c0_36, %c0_37, %c0_38] : memref<4x8x1xf32, #tpu.memory_space<vmem>>, vector<4x8x1xf32>
      tpu.vector_store %arg14[%c0_36, %c0_37, %c0_38], %68 {strides = array<i32>} : memref<4x8x1xf32, #tpu.memory_space<vmem>>, vector<4x8x1xf32>,
      %c0_39 = arith.constant 0 : index
      %c0_40 = arith.constant 0 : index
      %c0_41 = arith.constant 0 : index
      %70 = vector.load %arg15[%c0_39, %c0_40, %c0_41] : memref<4x8x8xf32, #tpu.memory_space<vmem>>, vector<4x8x8xf32>
      %71 = vector.broadcast %60 : vector<4x8x1xf32> to vector<4x8x8xf32>
      %72 = arith.mulf %71, %70 : vector<4x8x8xf32>
      %73 = arith.truncf %63 : vector<4x8x8xf32> to vector<4x8x8xbf16>
      "tpu.trace_start"() <{level = 10 : i32, message = "hqk,hkd->hqd"}> : () -> ()
      %cst_42 = arith.constant dense<0.000000e+00> : vector<4x8x8xf32>
      %74 = tpu.matmul %73, %34, %cst_42 {dimension_numbers = #tpu.dot_dimension_numbers<[2], [1], [1], [2], [0, 0, 0, 1, 1, 2], [0], [0]>} : vector<4x8x8xbf16>, vector<4x8x8xbf16>, vector<4x8x8xf32> -> vector<4x8x8xf32>
      "tpu.trace_stop"() : () -> ()
      %75 = arith.addf %72, %74 : vector<4x8x8xf32>
      %c0_43 = arith.constant 0 : index
      %c0_44 = arith.constant 0 : index
      %c0_45 = arith.constant 0 : index
      %76 = vector.load %arg15[%c0_43, %c0_44, %c0_45] : memref<4x8x8xf32, #tpu.memory_space<vmem>>, vector<4x8x8xf32>
      tpu.vector_store %arg15[%c0_43, %c0_44, %c0_45], %75 {strides = array<i32>} : memref<4x8x8xf32, #tpu.memory_space<vmem>>, vector<4x8x8xf32>,
      %c0_46 = arith.constant 0 : index
      %c0_47 = arith.constant 0 : index
      %c0_48 = arith.constant 0 : index
      %77 = vector.load %arg13[%c0_46, %c0_47, %c0_48] : memref<4x8x1xf32, #tpu.memory_space<vmem>>, vector<4x8x1xf32>
      tpu.vector_store %arg13[%c0_46, %c0_47, %c0_48], %58 {strides = array<i32>} : memref<4x8x1xf32, #tpu.memory_space<vmem>>, vector<4x8x1xf32>,
    } else {
    }
    %c0_i32_4 = arith.constant 0 : i32
    %10 = arith.cmpi eq, %arg2, %c0_i32_4 : i32
    %11 = arith.extui %10 : i1 to i32
    %c0_i32_5 = arith.constant 0 : i32
    %12 = arith.cmpi ne, %11, %c0_i32_5 : i32
    scf.if %12 {
      %c0 = arith.constant 0 : index
      %c0_6 = arith.constant 0 : index
      %c0_7 = arith.constant 0 : index
      %13 = vector.load %arg14[%c0, %c0_6, %c0_7] : memref<4x8x1xf32, #tpu.memory_space<vmem>>, vector<4x8x1xf32>
      %14 = tpu.reciprocal %13 {approx = true} : vector<4x8x1xf32> -> vector<4x8x1xf32>
      %c0_8 = arith.constant 0 : index
      %c0_9 = arith.constant 0 : index
      %c0_10 = arith.constant 0 : index
      %15 = vector.load %arg15[%c0_8, %c0_9, %c0_10] : memref<4x8x8xf32, #tpu.memory_space<vmem>>, vector<4x8x8xf32>
      %16 = vector.broadcast %14 : vector<4x8x1xf32> to vector<4x8x8xf32>
      %17 = arith.mulf %15, %16 : vector<4x8x8xf32>
      %18 = arith.truncf %17 : vector<4x8x8xf32> to vector<4x8x8xbf16>
      %c0_11 = arith.constant 0 : index
      %c0_12 = arith.constant 0 : index
      %c0_13 = arith.constant 0 : index
      %c0_14 = arith.constant 0 : index
      %19 = vector.load %arg11[%c0_11, %c0_12, %c0_13, %c0_14] : memref<1x4x8x8xbf16, #tpu.memory_space<vmem>>, vector<1x4x8x8xbf16>
      %20 = vector.shape_cast %19 : vector<1x4x8x8xbf16> to vector<4x8x8xbf16>
      %21 = vector.shape_cast %18 : vector<4x8x8xbf16> to vector<1x4x8x8xbf16>
      tpu.vector_store %arg11[%c0_11, %c0_12, %c0_13, %c0_14], %21 {strides = array<i32>} : memref<1x4x8x8xbf16, #tpu.memory_space<vmem>>, vector<1x4x8x8xbf16>,
    } else {
    }
    return
  }
  func.func @transform_0(%arg0: i32, %arg1: i32, %arg2: i32) -> (i32, i32, i32) {
    %c0_i32 = arith.constant 0 : i32
    %c0_i32_0 = arith.constant 0 : i32
    return %arg0, %c0_i32, %arg2 : i32, i32, i32
  }
  func.func @transform_1(%arg0: i32, %arg1: i32, %arg2: i32) -> (i32, i32, i32, i32) {
    %c0_i32 = arith.constant 0 : i32
    %c0_i32_0 = arith.constant 0 : i32
    %c0_i32_1 = arith.constant 0 : i32
    return %arg0, %c0_i32, %arg1, %c0_i32_0 : i32, i32, i32, i32
  }
  func.func @transform_2(%arg0: i32, %arg1: i32, %arg2: i32) -> (i32, i32, i32, i32) {
    %c0_i32 = arith.constant 0 : i32
    %c0_i32_0 = arith.constant 0 : i32
    %c0_i32_1 = arith.constant 0 : i32
    return %arg0, %c0_i32, %arg2, %c0_i32_0 : i32, i32, i32, i32
  }
  func.func @transform_3(%arg0: i32, %arg1: i32, %arg2: i32) -> (i32, i32, i32, i32) {
    %c0_i32 = arith.constant 0 : i32
    %c0_i32_0 = arith.constant 0 : i32
    %c0_i32_1 = arith.constant 0 : i32
    return %arg0, %c0_i32, %arg2, %c0_i32_0 : i32, i32, i32, i32
  }
  func.func @transform_4(%arg0: i32, %arg1: i32, %arg2: i32) -> (i32, i32, i32) {
    %c0_i32 = arith.constant 0 : i32
    %c0_i32_0 = arith.constant 0 : i32
    return %arg0, %arg1, %c0_i32 : i32, i32, i32
  }
  func.func @transform_5(%arg0: i32, %arg1: i32, %arg2: i32) -> (i32, i32, i32) {
    %c0_i32 = arith.constant 0 : i32
    %c0_i32_0 = arith.constant 0 : i32
    return %arg0, %arg1, %c0_i32 : i32, i32, i32
  }
  func.func @transform_6(%arg0: i32, %arg1: i32, %arg2: i32) -> (i32, i32, i32) {
    %c0_i32 = arith.constant 0 : i32
    %c0_i32_0 = arith.constant 0 : i32
    return %arg0, %arg2, %c0_i32 : i32, i32, i32
  }
  func.func @transform_7(%arg0: i32, %arg1: i32, %arg2: i32) -> (i32, i32, i32) {
    %c0_i32 = arith.constant 0 : i32
    %c0_i32_0 = arith.constant 0 : i32
    return %arg0, %arg2, %c0_i32 : i32, i32, i32
  }
  func.func @transform_8(%arg0: i32, %arg1: i32, %arg2: i32) -> (i32, i32, i32, i32) {
    %c0_i32 = arith.constant 0 : i32
    %c0_i32_0 = arith.constant 0 : i32
    %c0_i32_1 = arith.constant 0 : i32
    return %arg0, %c0_i32, %arg1, %c0_i32_0 : i32, i32, i32, i32
  }
}

module attributes {stable_mosaic.version = 11 : i64} {
  func.func @_mlp_kernel(%arg0: i32, %arg1: i32, %arg2: memref<16x32xbf16, #tpu.memory_space<vmem>>, %arg3: memref<1x32xf32, #tpu.memory_space<vmem>>, %arg4: memref<32x64xbf16, #tpu.memory_space<vmem>>, %arg5: memref<32x64xbf16, #tpu.memory_space<vmem>>, %arg6: memref<64x32xbf16, #tpu.memory_space<vmem>>, %arg7: memref<16x32xbf16, #tpu.memory_space<vmem>>, %arg8: memref<16x32xf32, #tpu.memory_space<vmem>>) attributes {dimension_semantics = [#tpu.dimension_semantics<parallel>, #tpu.dimension_semantics<arbitrary>], iteration_bounds = array<i64: 1, 1>, scalar_prefetch = 0 : i64, scratch_operands = 1 : i64, tpu.core_type = #tpu.core_type<tc>, window_params = [{transform_indices = @transform_0, window_bounds = array<i64: 16, 32>}, {pipeline_mode = #tpu.pipeline_mode<synchronous>, transform_indices = @transform_1, window_bounds = array<i64: 1, 32>}, {transform_indices = @transform_2, window_bounds = array<i64: 32, 64>}, {transform_indices = @transform_3, window_bounds = array<i64: 32, 64>}, {transform_indices = @transform_4, window_bounds = array<i64: 64, 32>}, {transform_indices = @transform_5, window_bounds = array<i64: 16, 32>}]} {
    %c0_i32 = arith.constant 0 : i32
    %0 = arith.cmpi eq, %arg1, %c0_i32 : i32
    %1 = arith.extui %0 : i1 to i32
    %c0_i32_0 = arith.constant 0 : i32
    %2 = arith.cmpi ne, %1, %c0_i32_0 : i32
    scf.if %2 {
      %cst_22 = arith.constant 0.000000e+00 : f32
      %39 = vector.broadcast %cst_22 : f32 to vector<16x32xf32>
      %c0_23 = arith.constant 0 : index
      %c0_24 = arith.constant 0 : index
      %40 = vector.load %arg8[%c0_23, %c0_24] : memref<16x32xf32, #tpu.memory_space<vmem>>, vector<16x32xf32>
      tpu.vector_store %arg8[%c0_23, %c0_24], %39 {strides = array<i32>} : memref<16x32xf32, #tpu.memory_space<vmem>>, vector<16x32xf32>,
    } else {
    }
    %c0 = arith.constant 0 : index
    %c0_1 = arith.constant 0 : index
    %3 = vector.load %arg2[%c0, %c0_1] : memref<16x32xbf16, #tpu.memory_space<vmem>>, vector<16x32xbf16>
    %4 = arith.extf %3 : vector<16x32xbf16> to vector<16x32xf32>
    %5 = arith.mulf %4, %4 : vector<16x32xf32>
    %cst = arith.constant dense<0.000000e+00> : vector<16xf32>
    %6 = vector.multi_reduction <add>, %5, %cst [1] : vector<16x32xf32> to vector<16xf32>
    %7 = vector.shape_cast %6 : vector<16xf32> to vector<16x1xf32>
    %cst_2 = arith.constant 3.200000e+01 : f32
    %8 = vector.broadcast %cst_2 : f32 to vector<16x1xf32>
    %9 = arith.divf %7, %8 : vector<16x1xf32>
    %cst_3 = arith.constant 9.99999997E-7 : f32
    %10 = vector.broadcast %cst_3 : f32 to vector<16x1xf32>
    %11 = arith.addf %9, %10 : vector<16x1xf32>
    %12 = math.rsqrt %11 : vector<16x1xf32>
    %13 = vector.broadcast %12 : vector<16x1xf32> to vector<16x32xf32>
    %14 = arith.mulf %4, %13 : vector<16x32xf32>
    %c0_4 = arith.constant 0 : index
    %c0_5 = arith.constant 0 : index
    %15 = vector.load %arg3[%c0_4, %c0_5] : memref<1x32xf32, #tpu.memory_space<vmem>>, vector<1x32xf32>
    %16 = vector.broadcast %15 : vector<1x32xf32> to vector<16x32xf32>
    %17 = arith.mulf %14, %16 : vector<16x32xf32>
    %18 = arith.truncf %17 : vector<16x32xf32> to vector<16x32xbf16>
    %c0_6 = arith.constant 0 : index
    %c0_7 = arith.constant 0 : index
    %19 = vector.load %arg4[%c0_6, %c0_7] : memref<32x64xbf16, #tpu.memory_space<vmem>>, vector<32x64xbf16>
    %cst_8 = arith.constant dense<0.000000e+00> : vector<16x64xf32>
    %20 = tpu.matmul %18, %19, %cst_8 {dimension_numbers = #tpu.dot_dimension_numbers<[1], [0], [0], [1], [0, 0, 1, 1], [], []>} : vector<16x32xbf16>, vector<32x64xbf16>, vector<16x64xf32> -> vector<16x64xf32>
    %c0_9 = arith.constant 0 : index
    %c0_10 = arith.constant 0 : index
    %21 = vector.load %arg5[%c0_9, %c0_10] : memref<32x64xbf16, #tpu.memory_space<vmem>>, vector<32x64xbf16>
    %cst_11 = arith.constant dense<0.000000e+00> : vector<16x64xf32>
    %22 = tpu.matmul %18, %21, %cst_11 {dimension_numbers = #tpu.dot_dimension_numbers<[1], [0], [0], [1], [0, 0, 1, 1], [], []>} : vector<16x32xbf16>, vector<32x64xbf16>, vector<16x64xf32> -> vector<16x64xf32>
    %23 = arith.negf %20 : vector<16x64xf32>
    %24 = math.exp %23 : vector<16x64xf32>
    %cst_12 = arith.constant 1.000000e+00 : f32
    %25 = vector.broadcast %cst_12 : f32 to vector<16x64xf32>
    %26 = arith.addf %25, %24 : vector<16x64xf32>
    %27 = arith.divf %25, %26 : vector<16x64xf32>
    %28 = arith.mulf %20, %27 : vector<16x64xf32>
    %29 = arith.mulf %28, %22 : vector<16x64xf32>
    %c0_13 = arith.constant 0 : index
    %c0_14 = arith.constant 0 : index
    %30 = vector.load %arg8[%c0_13, %c0_14] : memref<16x32xf32, #tpu.memory_space<vmem>>, vector<16x32xf32>
    %31 = arith.truncf %29 : vector<16x64xf32> to vector<16x64xbf16>
    %c0_15 = arith.constant 0 : index
    %c0_16 = arith.constant 0 : index
    %32 = vector.load %arg6[%c0_15, %c0_16] : memref<64x32xbf16, #tpu.memory_space<vmem>>, vector<64x32xbf16>
    %cst_17 = arith.constant dense<0.000000e+00> : vector<16x32xf32>
    %33 = tpu.matmul %31, %32, %cst_17 {dimension_numbers = #tpu.dot_dimension_numbers<[1], [0], [0], [1], [0, 0, 1, 1], [], []>} : vector<16x64xbf16>, vector<64x32xbf16>, vector<16x32xf32> -> vector<16x32xf32>
    %34 = arith.addf %30, %33 : vector<16x32xf32>
    %c0_18 = arith.constant 0 : index
    %c0_19 = arith.constant 0 : index
    %35 = vector.load %arg8[%c0_18, %c0_19] : memref<16x32xf32, #tpu.memory_space<vmem>>, vector<16x32xf32>
    tpu.vector_store %arg8[%c0_18, %c0_19], %34 {strides = array<i32>} : memref<16x32xf32, #tpu.memory_space<vmem>>, vector<16x32xf32>,
    %c0_i32_20 = arith.constant 0 : i32
    %36 = arith.cmpi eq, %arg1, %c0_i32_20 : i32
    %37 = arith.extui %36 : i1 to i32
    %c0_i32_21 = arith.constant 0 : i32
    %38 = arith.cmpi ne, %37, %c0_i32_21 : i32
    scf.if %38 {
      %c0_22 = arith.constant 0 : index
      %c0_23 = arith.constant 0 : index
      %39 = vector.load %arg8[%c0_22, %c0_23] : memref<16x32xf32, #tpu.memory_space<vmem>>, vector<16x32xf32>
      %c0_24 = arith.constant 0 : index
      %c0_25 = arith.constant 0 : index
      %40 = vector.load %arg2[%c0_24, %c0_25] : memref<16x32xbf16, #tpu.memory_space<vmem>>, vector<16x32xbf16>
      %41 = arith.extf %40 : vector<16x32xbf16> to vector<16x32xf32>
      %42 = arith.addf %39, %41 : vector<16x32xf32>
      %43 = arith.truncf %42 : vector<16x32xf32> to vector<16x32xbf16>
      %c0_26 = arith.constant 0 : index
      %c0_27 = arith.constant 0 : index
      %44 = vector.load %arg7[%c0_26, %c0_27] : memref<16x32xbf16, #tpu.memory_space<vmem>>, vector<16x32xbf16>
      tpu.vector_store %arg7[%c0_26, %c0_27], %43 {strides = array<i32>} : memref<16x32xbf16, #tpu.memory_space<vmem>>, vector<16x32xbf16>,
    } else {
    }
    return
  }
  func.func @transform_0(%arg0: i32, %arg1: i32) -> (i32, i32) {
    %c0_i32 = arith.constant 0 : i32
    %c0_i32_0 = arith.constant 0 : i32
    return %arg0, %c0_i32 : i32, i32
  }
  func.func @transform_1(%arg0: i32, %arg1: i32) -> (i32, i32) {
    %c0_i32 = arith.constant 0 : i32
    %c0_i32_0 = arith.constant 0 : i32
    %c0_i32_1 = arith.constant 0 : i32
    return %c0_i32, %c0_i32_0 : i32, i32
  }
  func.func @transform_2(%arg0: i32, %arg1: i32) -> (i32, i32) {
    %c0_i32 = arith.constant 0 : i32
    %c0_i32_0 = arith.constant 0 : i32
    return %c0_i32, %arg1 : i32, i32
  }
  func.func @transform_3(%arg0: i32, %arg1: i32) -> (i32, i32) {
    %c0_i32 = arith.constant 0 : i32
    %c0_i32_0 = arith.constant 0 : i32
    return %c0_i32, %arg1 : i32, i32
  }
  func.func @transform_4(%arg0: i32, %arg1: i32) -> (i32, i32) {
    %c0_i32 = arith.constant 0 : i32
    %c0_i32_0 = arith.constant 0 : i32
    return %arg1, %c0_i32 : i32, i32
  }
  func.func @transform_5(%arg0: i32, %arg1: i32) -> (i32, i32) {
    %c0_i32 = arith.constant 0 : i32
    %c0_i32_0 = arith.constant 0 : i32
    return %arg0, %c0_i32 : i32, i32
  }
}

module attributes {stable_mosaic.version = 11 : i64} {
  func.func @_matmul_kernel(%arg0: i32, %arg1: i32, %arg2: memref<16x16xbf16, #tpu.memory_space<vmem>>, %arg3: memref<16x64xbf16, #tpu.memory_space<vmem>>, %arg4: memref<16x64xbf16, #tpu.memory_space<vmem>>) attributes {dimension_semantics = [#tpu.dimension_semantics<parallel>, #tpu.dimension_semantics<parallel>], iteration_bounds = array<i64: 1, 1>, scalar_prefetch = 0 : i64, scratch_operands = 0 : i64, tpu.core_type = #tpu.core_type<tc>, window_params = [{transform_indices = @transform_0, window_bounds = array<i64: 16, 16>}, {transform_indices = @transform_1, window_bounds = array<i64: 16, 64>}, {transform_indices = @transform_2, window_bounds = array<i64: 16, 64>}]} {
    %c0 = arith.constant 0 : index
    %c0_0 = arith.constant 0 : index
    %0 = vector.load %arg2[%c0, %c0_0] : memref<16x16xbf16, #tpu.memory_space<vmem>>, vector<16x16xbf16>
    %c0_1 = arith.constant 0 : index
    %c0_2 = arith.constant 0 : index
    %1 = vector.load %arg3[%c0_1, %c0_2] : memref<16x64xbf16, #tpu.memory_space<vmem>>, vector<16x64xbf16>
    %cst = arith.constant dense<0.000000e+00> : vector<16x64xf32>
    %2 = tpu.matmul %0, %1, %cst {dimension_numbers = #tpu.dot_dimension_numbers<[1], [0], [0], [1], [0, 0, 1, 1], [], []>} : vector<16x16xbf16>, vector<16x64xbf16>, vector<16x64xf32> -> vector<16x64xf32>
    %3 = arith.truncf %2 : vector<16x64xf32> to vector<16x64xbf16>
    %c0_3 = arith.constant 0 : index
    %c0_4 = arith.constant 0 : index
    %4 = vector.load %arg4[%c0_3, %c0_4] : memref<16x64xbf16, #tpu.memory_space<vmem>>, vector<16x64xbf16>
    tpu.vector_store %arg4[%c0_3, %c0_4], %3 {strides = array<i32>} : memref<16x64xbf16, #tpu.memory_space<vmem>>, vector<16x64xbf16>,
    return
  }
  func.func @transform_0(%arg0: i32, %arg1: i32) -> (i32, i32) {
    %c0_i32 = arith.constant 0 : i32
    %c0_i32_0 = arith.constant 0 : i32
    return %arg0, %c0_i32 : i32, i32
  }
  func.func @transform_1(%arg0: i32, %arg1: i32) -> (i32, i32) {
    %c0_i32 = arith.constant 0 : i32
    %c0_i32_0 = arith.constant 0 : i32
    return %c0_i32, %arg1 : i32, i32
  }
  func.func @transform_2(%arg0: i32, %arg1: i32) -> (i32, i32) {
    %c0_i32 = arith.constant 0 : i32
    return %arg0, %arg1 : i32, i32
  }
}

module attributes {stable_mosaic.version = 11 : i64} {
  func.func @_rms_matmul_kernel(%arg0: i32, %arg1: i32, %arg2: memref<16x32xbf16, #tpu.memory_space<vmem>>, %arg3: memref<1x32xf32, #tpu.memory_space<vmem>>, %arg4: memref<32x16xbf16, #tpu.memory_space<vmem>>, %arg5: memref<16x16xbf16, #tpu.memory_space<vmem>>) attributes {dimension_semantics = [#tpu.dimension_semantics<parallel>, #tpu.dimension_semantics<parallel>], iteration_bounds = array<i64: 1, 1>, scalar_prefetch = 0 : i64, scratch_operands = 0 : i64, tpu.core_type = #tpu.core_type<tc>, window_params = [{transform_indices = @transform_0, window_bounds = array<i64: 16, 32>}, {pipeline_mode = #tpu.pipeline_mode<synchronous>, transform_indices = @transform_1, window_bounds = array<i64: 1, 32>}, {transform_indices = @transform_2, window_bounds = array<i64: 32, 16>}, {transform_indices = @transform_3, window_bounds = array<i64: 16, 16>}]} {
    %c0 = arith.constant 0 : index
    %c0_0 = arith.constant 0 : index
    %0 = vector.load %arg2[%c0, %c0_0] : memref<16x32xbf16, #tpu.memory_space<vmem>>, vector<16x32xbf16>
    %1 = arith.extf %0 : vector<16x32xbf16> to vector<16x32xf32>
    %2 = arith.mulf %1, %1 : vector<16x32xf32>
    %cst = arith.constant dense<0.000000e+00> : vector<16xf32>
    %3 = vector.multi_reduction <add>, %2, %cst [1] : vector<16x32xf32> to vector<16xf32>
    %4 = vector.shape_cast %3 : vector<16xf32> to vector<16x1xf32>
    %cst_1 = arith.constant 3.200000e+01 : f32
    %5 = vector.broadcast %cst_1 : f32 to vector<16x1xf32>
    %6 = arith.divf %4, %5 : vector<16x1xf32>
    %cst_2 = arith.constant 9.99999997E-7 : f32
    %7 = vector.broadcast %cst_2 : f32 to vector<16x1xf32>
    %8 = arith.addf %6, %7 : vector<16x1xf32>
    %9 = math.rsqrt %8 : vector<16x1xf32>
    %10 = vector.broadcast %9 : vector<16x1xf32> to vector<16x32xf32>
    %11 = arith.mulf %1, %10 : vector<16x32xf32>
    %c0_3 = arith.constant 0 : index
    %c0_4 = arith.constant 0 : index
    %12 = vector.load %arg3[%c0_3, %c0_4] : memref<1x32xf32, #tpu.memory_space<vmem>>, vector<1x32xf32>
    %13 = vector.broadcast %12 : vector<1x32xf32> to vector<16x32xf32>
    %14 = arith.mulf %11, %13 : vector<16x32xf32>
    %15 = arith.truncf %14 : vector<16x32xf32> to vector<16x32xbf16>
    %c0_5 = arith.constant 0 : index
    %c0_6 = arith.constant 0 : index
    %16 = vector.load %arg4[%c0_5, %c0_6] : memref<32x16xbf16, #tpu.memory_space<vmem>>, vector<32x16xbf16>
    %cst_7 = arith.constant dense<0.000000e+00> : vector<16x16xf32>
    %17 = tpu.matmul %15, %16, %cst_7 {dimension_numbers = #tpu.dot_dimension_numbers<[1], [0], [0], [1], [0, 0, 1, 1], [], []>} : vector<16x32xbf16>, vector<32x16xbf16>, vector<16x16xf32> -> vector<16x16xf32>
    %18 = arith.truncf %17 : vector<16x16xf32> to vector<16x16xbf16>
    %c0_8 = arith.constant 0 : index
    %c0_9 = arith.constant 0 : index
    %19 = vector.load %arg5[%c0_8, %c0_9] : memref<16x16xbf16, #tpu.memory_space<vmem>>, vector<16x16xbf16>
    tpu.vector_store %arg5[%c0_8, %c0_9], %18 {strides = array<i32>} : memref<16x16xbf16, #tpu.memory_space<vmem>>, vector<16x16xbf16>,
    return
  }
  func.func @transform_0(%arg0: i32, %arg1: i32) -> (i32, i32) {
    %c0_i32 = arith.constant 0 : i32
    %c0_i32_0 = arith.constant 0 : i32
    return %arg0, %c0_i32 : i32, i32
  }
  func.func @transform_1(%arg0: i32, %arg1: i32) -> (i32, i32) {
    %c0_i32 = arith.constant 0 : i32
    %c0_i32_0 = arith.constant 0 : i32
    %c0_i32_1 = arith.constant 0 : i32
    return %c0_i32, %c0_i32_0 : i32, i32
  }
  func.func @transform_2(%arg0: i32, %arg1: i32) -> (i32, i32) {
    %c0_i32 = arith.constant 0 : i32
    %c0_i32_0 = arith.constant 0 : i32
    return %c0_i32, %arg1 : i32, i32
  }
  func.func @transform_3(%arg0: i32, %arg1: i32) -> (i32, i32) {
    %c0_i32 = arith.constant 0 : i32
    return %arg0, %arg1 : i32, i32
  }
}

</mosaic_0001>

<llo_original>
// kernel: forward.12
$region0: #{forward.12}
  #allocation0 [shape = 'u32[]', space=smem, size = 0x4, offset = 0x4, fixed_abs, tag = 'smem constant byte address 0x4 - core index']
  #allocation1 [shape = 'u32[144,128]{1,0:T(1,128)}', space=vmem, size = 0x12000, scoped, tag = 'internal scratch']
  %s0 = inlined_call_operand.vmem [shape: bf16[16,32], index: 0, kind: input, shape index: {}]
  %s1 = inlined_call_operand.vmem [shape: f32[1,32], index: 1, kind: input, shape index: {}]
  %s2 = inlined_call_operand.vmem [shape: bf16[32,96], index: 2, kind: input, shape index: {}]
  %s3 = inlined_call_operand.vmem [shape: bf16[16,96], index: 3, kind: output, shape index: {}]
  %s4 = sld [smem:[#allocation0]]
  $region22: #{forward.12} parent=0
    _
  %s6 = ssub.s32 1, %s4
  %s7 = scalar_select 0, %s6, %s4
  // Predicated region
  $region2: #{forward.12} parent=0 // pred_check
    _
  $region3: #{forward.12} parent=0 // pred_check_branch
    %9 = sbr.rel (0) target = $region5
  $region4: #{forward.12} parent=0 // pred_region
    _
  $region5: #{forward.12} parent=0 // pred_fallthru
    _
  // Predicated region
  $region6: #{forward.12} parent=0 // pred_check
    _
  $region7: #{forward.12} parent=0 // pred_check_branch
    %11 = sbr.rel (0) target = $region9
  $region8: #{forward.12} parent=0 // pred_region
    _
  $region9: #{forward.12} parent=0 // pred_fallthru
    _
  // Predicated region
  $region10: #{forward.12} parent=0 // pred_check
    _
  $region11: #{forward.12} parent=0 // pred_check_branch
    %13 = sbr.rel (0) target = $region13
  $region12: #{forward.12} parent=0 // pred_region
    _
  $region13: #{forward.12} parent=0 // pred_fallthru
    _
  %v15 = vld [vmem:[%s0] sm:$0xf]
  %v16 = vld [vmem:[%s0 + $0x4] sm:$0xf]
  %v17 = vunpack.c.l.bf16 %v15
  %v18 = vunpack.c.l.bf16 %v16
  %v19 = vmul.f32 %v17, %v17
  %v20 = vmul.f32 %v18, %v18
  %vm21 = vcmask 261120
  %v22 = vsel %vm21, %v19, 0.0
  %23 = vadd.xlane.f32.xlu0 %v22
  %v24 = vpop.xlane.xlu0 %23
  %v25 = vsel %vm21, %v20, 0.0
  %26 = vadd.xlane.f32.xlu0 %v25
  %v27 = vpop.xlane.xlu0 %26
  %v28 = vrcp.pop 32.0
  %v29 = vmul.f32 %v24, %v28
  %v30 = vmul.f32 %v27, %v28
  %v31 = vadd.f32 %v29, 1e-06
  %v32 = vadd.f32 %v30, 1e-06
  %v33 = vrsqrt.pop %v31
  %v34 = vrsqrt.pop %v32
  %v35 = vmul.f32 %v17, %v33
  %v36 = vmul.f32 %v18, %v34
  %v37 = vld [vmem:[%s1] sm:$0x1]
  %v39 = vlaneseq
  %v40 = vshrl.u32 %v39, 7
  %v41 = vsub.s32 0, %v40
  %v42 = vrot.slane %v37, %v41
  %v44 = vmul.f32 %v35, %v42
  %v45 = vmul.f32 %v36, %v42
  %v46 = vpack.c.bf16 %v45, %v44
  %v47 = vld [vmem:[%s2] sm:$0xf]
  %v48 = vld [vmem:[%s2 + $0x4] sm:$0xf]
  %v49 = vld [vmem:[%s2 + $0x8] sm:$0xf]
  %v50 = vld [vmem:[%s2 + $0xc] sm:$0xf]
  %v55 = vunpack.c.l.b16 %v47
  %v56 = vunpack.c.l.b16 %v48
  %v57 = vunpack.c.l.b16 %v49
  %v58 = vunpack.c.l.b16 %v50
  %v59 = vpack.c.b16 %v56, %v55
  %v60 = vpack.c.b16 %v58, %v57
  %v64 = vsel %vm21, %v46, 0
  %66 = vmatprep.subr.bf16.mxu0 0
  %67 = vmatpush1.bf16.msra.mxu0 %v59
  %68 = vmatprep.subr.bf16.mxu0 0
  %69 = vmatpush1.bf16.msra.mxu0 %v60
  %70 = vmatprep.subr.bf16.mxu0 0
  %71 = vmatpush1.bf16.msra.mxu0 0
  %72 = vmatprep.subr.bf16.mxu0 0
  %73 = vmatpush1.bf16.msra.mxu0 0
  %74 = vmatprep.subr.bf16.mxu0 0
  %75 = vmatpush1.bf16.msra.mxu0 0
  %76 = vmatprep.subr.bf16.mxu0 0
  %77 = vmatpush1.bf16.msra.mxu0 0
  %78 = vmatprep.subr.bf16.mxu0 0
  %79 = vmatpush1.bf16.msra.mxu0 0
  %80 = vmatprep.subr.bf16.mxu0 0
  %81 = vmatpush1.bf16.msra.mxu0 0
  %82 = vmatprep.subr.bf16.mxu0 0
  %83 = vmatpush1.bf16.msra.mxu0 0
  %84 = vmatprep.subr.bf16.mxu0 0
  %85 = vmatpush1.bf16.msra.mxu0 0
  %86 = vmatprep.subr.bf16.mxu0 0
  %87 = vmatpush1.bf16.msra.mxu0 0
  %88 = vmatprep.subr.bf16.mxu0 0
  %89 = vmatpush1.bf16.msra.mxu0 0
  %90 = vmatprep.subr.bf16.mxu0 0
  %91 = vmatpush1.bf16.msra.mxu0 0
  %92 = vmatprep.subr.bf16.mxu0 0
  %93 = vmatpush1.bf16.msra.mxu0 0
  %94 = vmatprep.subr.bf16.mxu0 0
  %95 = vmatpush1.bf16.msra.mxu0 0
  %96 = vmatprep.subr.bf16.mxu0 0
  %97 = vmatpush1.bf16.msra.mxu0 0
  %98 = vmatprep.mubr.bf16.mxu0 0
  %99 = vmatmul.mubr.bf16.gmra.mrb[0].mxu0 %v64
  %v100 = vpop.f32.mrb[0].mxu0
  %v101 = vadd.f32 0.0, %v100
  %v102 = vpop.f32.mrb[0].mxu0
  %v103 = vpop.f32.mrb[0].mxu0
  %v104 = vadd.f32 0.0, %v103
  %v105 = vpop.f32.mrb[0].mxu0
  %106 = vdwg.mxu0
  %v107 = vpack.c.bf16 %v104, %v101
  %v109 = vunpack.c.l.b16 %v107
  %v110 = vunpack.c.h.b16 %v107
  %v111 = vpack.c.b16 %v109, %v109
  %v112 = vpack.c.b16 %v110, %v110
  %vm115 = vcmask 781312
  %116 = vst.msk [vmem:[%s3] sm:$0xf] %vm115, %v111
  %117 = vst.msk [vmem:[%s3 + $0x4] sm:$0xf] %vm115, %v112
  // Predicated region
  $region14: #{forward.12} parent=0 // pred_check
    _
  $region15: #{forward.12} parent=0 // pred_check_branch
    %119 = sbr.rel (0) target = $region17
  $region16: #{forward.12} parent=0 // pred_region
    _
  $region17: #{forward.12} parent=0 // pred_fallthru
    _
  // Predicated region
  $region18: #{forward.12} parent=0 // pred_check
    _
  $region19: #{forward.12} parent=0 // pred_check_branch
    %121 = sbr.rel (0) target = $region21
  $region20: #{forward.12} parent=0 // pred_region
    _
  $region21: #{forward.12} parent=0 // pred_fallthru
    _

// kernel: forward.11
$region0: #{forward.11}
  #allocation0 [shape = 'u32[]', space=smem, size = 0x4, offset = 0x4, fixed_abs, tag = 'smem constant byte address 0x4 - core index']
  #allocation1 [shape = 'u32[144,128]{1,0:T(1,128)}', space=vmem, size = 0x12000, scoped, tag = 'internal scratch']
  %s0 = inlined_call_operand.vmem [shape: bf16[16,16], index: 0, kind: input, shape index: {}]
  %s1 = inlined_call_operand.vmem [shape: bf16[16,32], index: 1, kind: input, shape index: {}]
  %s2 = inlined_call_operand.vmem [shape: bf16[16,32], index: 2, kind: output, shape index: {}]
  %s3 = sld [smem:[#allocation0]]
  $region18: #{forward.11} parent=0
    _
  %s5 = ssub.s32 1, %s3
  %s6 = scalar_select 0, %s5, %s3
  // Predicated region
  $region2: #{forward.11} parent=0 // pred_check
    _
  $region3: #{forward.11} parent=0 // pred_check_branch
    %8 = sbr.rel (0) target = $region5
  $region4: #{forward.11} parent=0 // pred_region
    _
  $region5: #{forward.11} parent=0 // pred_fallthru
    _
  // Predicated region
  $region6: #{forward.11} parent=0 // pred_check
    _
  $region7: #{forward.11} parent=0 // pred_check_branch
    %10 = sbr.rel (0) target = $region9
  $region8: #{forward.11} parent=0 // pred_region
    _
  $region9: #{forward.11} parent=0 // pred_fallthru
    _
  %v12 = vld [vmem:[%s0] sm:$0xf]
  %v13 = vld [vmem:[%s0 + $0x4] sm:$0xf]
  %v14 = vld [vmem:[%s1] sm:$0xf]
  %v15 = vld [vmem:[%s1 + $0x4] sm:$0xf]
  %v18 = vunpack.c.l.b16 %v12
  %v19 = vunpack.c.l.b16 %v13
  %v20 = vpack.c.b16 %v19, %v18
  %v23 = vunpack.c.l.b16 %v14
  %v24 = vunpack.c.l.b16 %v15
  %v25 = vpack.c.b16 %v24, %v23
  %vm27 = vcmask 130048
  %v29 = vsel %vm27, %v20, 0
  %31 = vmatprep.subr.bf16.mxu0 0
  %32 = vmatpush1.bf16.msra.mxu0 %v25
  %33 = vmatprep.subr.bf16.mxu0 0
  %34 = vmatpush1.bf16.msra.mxu0 0
  %35 = vmatprep.subr.bf16.mxu0 0
  %36 = vmatpush1.bf16.msra.mxu0 0
  %37 = vmatprep.subr.bf16.mxu0 0
  %38 = vmatpush1.bf16.msra.mxu0 0
  %39 = vmatprep.subr.bf16.mxu0 0
  %40 = vmatpush1.bf16.msra.mxu0 0
  %41 = vmatprep.subr.bf16.mxu0 0
  %42 = vmatpush1.bf16.msra.mxu0 0
  %43 = vmatprep.subr.bf16.mxu0 0
  %44 = vmatpush1.bf16.msra.mxu0 0
  %45 = vmatprep.subr.bf16.mxu0 0
  %46 = vmatpush1.bf16.msra.mxu0 0
  %47 = vmatprep.subr.bf16.mxu0 0
  %48 = vmatpush1.bf16.msra.mxu0 0
  %49 = vmatprep.subr.bf16.mxu0 0
  %50 = vmatpush1.bf16.msra.mxu0 0
  %51 = vmatprep.subr.bf16.mxu0 0
  %52 = vmatpush1.bf16.msra.mxu0 0
  %53 = vmatprep.subr.bf16.mxu0 0
  %54 = vmatpush1.bf16.msra.mxu0 0
  %55 = vmatprep.subr.bf16.mxu0 0
  %56 = vmatpush1.bf16.msra.mxu0 0
  %57 = vmatprep.subr.bf16.mxu0 0
  %58 = vmatpush1.bf16.msra.mxu0 0
  %59 = vmatprep.subr.bf16.mxu0 0
  %60 = vmatpush1.bf16.msra.mxu0 0
  %61 = vmatprep.subr.bf16.mxu0 0
  %62 = vmatpush1.bf16.msra.mxu0 0
  %63 = vmatprep.mubr.bf16.mxu0 0
  %64 = vmatmul.mubr.bf16.gmra.mrb[0].mxu0 %v29
  %v65 = vpop.f32.mrb[0].mxu0
  %v66 = vadd.f32 0.0, %v65
  %v67 = vpop.f32.mrb[0].mxu0
  %v68 = vpop.f32.mrb[0].mxu0
  %v69 = vadd.f32 0.0, %v68
  %v70 = vpop.f32.mrb[0].mxu0
  %71 = vdwg.mxu0
  %v72 = vpack.c.bf16 %v69, %v66
  %v74 = vunpack.c.l.b16 %v72
  %v75 = vunpack.c.h.b16 %v72
  %v76 = vpack.c.b16 %v74, %v74
  %v77 = vpack.c.b16 %v75, %v75
  %vm80 = vcmask 257024
  %81 = vst.msk [vmem:[%s2] sm:$0xf] %vm80, %v76
  %82 = vst.msk [vmem:[%s2 + $0x4] sm:$0xf] %vm80, %v77
  // Predicated region
  $region10: #{forward.11} parent=0 // pred_check
    _
  $region11: #{forward.11} parent=0 // pred_check_branch
    %84 = sbr.rel (0) target = $region13
  $region12: #{forward.11} parent=0 // pred_region
    _
  $region13: #{forward.11} parent=0 // pred_fallthru
    _
  // Predicated region
  $region14: #{forward.11} parent=0 // pred_check
    _
  $region15: #{forward.11} parent=0 // pred_check_branch
    %86 = sbr.rel (0) target = $region17
  $region16: #{forward.11} parent=0 // pred_region
    _
  $region17: #{forward.11} parent=0 // pred_fallthru
    _

// kernel: forward.14
$region0: #{forward.14}
  #allocation0 [shape = 'u32[]', space=smem, size = 0x4, offset = 0x4, fixed_abs, tag = 'smem constant byte address 0x4 - core index']
  #allocation1 [shape = 'u32[144,128]{1,0:T(1,128)}', space=vmem, size = 0x12000, scoped, tag = 'internal scratch']
  %s0 = inlined_call_operand.vmem [shape: bf16[16,32], index: 0, kind: input, shape index: {}]
  %s1 = inlined_call_operand.vmem [shape: bf16[32,32], index: 1, kind: input, shape index: {}]
  %s2 = inlined_call_operand.vmem [shape: bf16[16,32], index: 2, kind: input, shape index: {}]
  %s3 = inlined_call_operand.vmem [shape: bf16[16,32], index: 3, kind: output, shape index: {}]
  %s4 = sld [smem:[#allocation0]]
  $region22: #{forward.14} parent=0
    _
  %s6 = ssub.s32 1, %s4
  %s7 = scalar_select 0, %s6, %s4
  // Predicated region
  $region2: #{forward.14} parent=0 // pred_check
    _
  $region3: #{forward.14} parent=0 // pred_check_branch
    %9 = sbr.rel (0) target = $region5
  $region4: #{forward.14} parent=0 // pred_region
    _
  $region5: #{forward.14} parent=0 // pred_fallthru
    _
  // Predicated region
  $region6: #{forward.14} parent=0 // pred_check
    _
  $region7: #{forward.14} parent=0 // pred_check_branch
    %11 = sbr.rel (0) target = $region9
  $region8: #{forward.14} parent=0 // pred_region
    _
  $region9: #{forward.14} parent=0 // pred_fallthru
    _
  // Predicated region
  $region10: #{forward.14} parent=0 // pred_check
    _
  $region11: #{forward.14} parent=0 // pred_check_branch
    %13 = sbr.rel (0) target = $region13
  $region12: #{forward.14} parent=0 // pred_region
    _
  $region13: #{forward.14} parent=0 // pred_fallthru
    _
  %v15 = vld [vmem:[%s0] sm:$0xf]
  %v16 = vld [vmem:[%s0 + $0x4] sm:$0xf]
  %v17 = vld [vmem:[%s1] sm:$0xf]
  %v18 = vld [vmem:[%s1 + $0x4] sm:$0xf]
  %v19 = vld [vmem:[%s1 + $0x8] sm:$0xf]
  %v20 = vld [vmem:[%s1 + $0xc] sm:$0xf]
  %v21 = vld [vmem:[%s2] sm:$0xf]
  %v22 = vld [vmem:[%s2 + $0x4] sm:$0xf]
  %v23 = vunpack.c.l.bf16 %v21
  %v24 = vunpack.c.l.bf16 %v22
  %v27 = vunpack.c.l.b16 %v15
  %v28 = vunpack.c.l.b16 %v16
  %v29 = vpack.c.b16 %v28, %v27
  %v34 = vunpack.c.l.b16 %v17
  %v35 = vunpack.c.l.b16 %v18
  %v36 = vunpack.c.l.b16 %v19
  %v37 = vunpack.c.l.b16 %v20
  %v38 = vpack.c.b16 %v35, %v34
  %v39 = vpack.c.b16 %v37, %v36
  %vm42 = vcmask 261120
  %v44 = vsel %vm42, %v29, 0
  %46 = vmatprep.subr.bf16.mxu0 0
  %47 = vmatpush1.bf16.msra.mxu0 %v38
  %48 = vmatprep.subr.bf16.mxu0 0
  %49 = vmatpush1.bf16.msra.mxu0 %v39
  %50 = vmatprep.subr.bf16.mxu0 0
  %51 = vmatpush1.bf16.msra.mxu0 0
  %52 = vmatprep.subr.bf16.mxu0 0
  %53 = vmatpush1.bf16.msra.mxu0 0
  %54 = vmatprep.subr.bf16.mxu0 0
  %55 = vmatpush1.bf16.msra.mxu0 0
  %56 = vmatprep.subr.bf16.mxu0 0
  %57 = vmatpush1.bf16.msra.mxu0 0
  %58 = vmatprep.subr.bf16.mxu0 0
  %59 = vmatpush1.bf16.msra.mxu0 0
  %60 = vmatprep.subr.bf16.mxu0 0
  %61 = vmatpush1.bf16.msra.mxu0 0
  %62 = vmatprep.subr.bf16.mxu0 0
  %63 = vmatpush1.bf16.msra.mxu0 0
  %64 = vmatprep.subr.bf16.mxu0 0
  %65 = vmatpush1.bf16.msra.mxu0 0
  %66 = vmatprep.subr.bf16.mxu0 0
  %67 = vmatpush1.bf16.msra.mxu0 0
  %68 = vmatprep.subr.bf16.mxu0 0
  %69 = vmatpush1.bf16.msra.mxu0 0
  %70 = vmatprep.subr.bf16.mxu0 0
  %71 = vmatpush1.bf16.msra.mxu0 0
  %72 = vmatprep.subr.bf16.mxu0 0
  %73 = vmatpush1.bf16.msra.mxu0 0
  %74 = vmatprep.subr.bf16.mxu0 0
  %75 = vmatpush1.bf16.msra.mxu0 0
  %76 = vmatprep.subr.bf16.mxu0 0
  %77 = vmatpush1.bf16.msra.mxu0 0
  %78 = vmatprep.mubr.bf16.mxu0 0
  %79 = vmatmul.mubr.bf16.gmra.mrb[0].mxu0 %v44
  %v80 = vpop.f32.mrb[0].mxu0
  %v81 = vadd.f32 %v23, %v80
  %v82 = vpop.f32.mrb[0].mxu0
  %v83 = vpop.f32.mrb[0].mxu0
  %v84 = vadd.f32 %v24, %v83
  %v85 = vpop.f32.mrb[0].mxu0
  %86 = vdwg.mxu0
  %v87 = vpack.c.bf16 %v84, %v81
  %v89 = vunpack.c.l.b16 %v87
  %v90 = vunpack.c.h.b16 %v87
  %v91 = vpack.c.b16 %v89, %v89
  %v92 = vpack.c.b16 %v90, %v90
  %vm95 = vcmask 257024
  %96 = vst.msk [vmem:[%s3] sm:$0xf] %vm95, %v91
  %97 = vst.msk [vmem:[%s3 + $0x4] sm:$0xf] %vm95, %v92
  // Predicated region
  $region14: #{forward.14} parent=0 // pred_check
    _
  $region15: #{forward.14} parent=0 // pred_check_branch
    %99 = sbr.rel (0) target = $region17
  $region16: #{forward.14} parent=0 // pred_region
    _
  $region17: #{forward.14} parent=0 // pred_fallthru
    _
  // Predicated region
  $region18: #{forward.14} parent=0 // pred_check
    _
  $region19: #{forward.14} parent=0 // pred_check_branch
    %101 = sbr.rel (0) target = $region21
  $region20: #{forward.14} parent=0 // pred_region
    _
  $region21: #{forward.14} parent=0 // pred_fallthru
    _

// kernel: forward.21
$region0: #{forward.21}
  #allocation0 [shape = 'u32[]', space=smem, size = 0x4, offset = 0x4, fixed_abs, tag = 'smem constant byte address 0x4 - core index']
  #allocation1 [shape = 'u32[144,128]{1,0:T(1,128)}', space=vmem, size = 0x12000, scoped, tag = 'internal scratch']
  %s0 = inlined_call_operand.vmem [shape: bf16[16,16], index: 0, kind: input, shape index: {}]
  %s1 = inlined_call_operand.vmem [shape: bf16[16,64], index: 1, kind: input, shape index: {}]
  %s2 = inlined_call_operand.hbm [shape: bf16[16,64], index: 2, kind: output, shape index: {}]
  %s3 = sld [smem:[#allocation0]]
  $region18: #{forward.21} parent=0
    _
  %s5 = ssub.s32 1, %s3
  %s6 = scalar_select 0, %s5, %s3
  $region1: #{forward.21} parent=0
    #allocation2 [shape = 'u8[4096]{0}', space=vmem, size = 0x1000, scoped, tag = 'output window, operand 0, single buffered']
    #allocation3 [shape = 's32[1]{0}', space=sflag, size = 0x4, scoped, tag = 'scoped memory for forward.21']
    %7 = vsyncpa [#allocation3], 0
    // Predicated region
    $region2: #{forward.21} parent=1 // pred_check
      _
    $region3: #{forward.21} parent=1 // pred_check_branch
      %9 = sbr.rel (0) target = $region5
    $region4: #{forward.21} parent=1 // pred_region
      _
    $region5: #{forward.21} parent=1 // pred_fallthru
      _
    // Predicated region
    $region6: #{forward.21} parent=1 // pred_check
      _
    $region7: #{forward.21} parent=1 // pred_check_branch
      %11 = sbr.rel (0) target = $region9
    $region8: #{forward.21} parent=1 // pred_region
      _
    $region9: #{forward.21} parent=1 // pred_fallthru
      _
    %v13 = vld [vmem:[%s0] sm:$0xf]
    %v14 = vld [vmem:[%s0 + $0x4] sm:$0xf]
    %v15 = vld [vmem:[%s1] sm:$0xf]
    %v16 = vld [vmem:[%s1 + $0x4] sm:$0xf]
    %v19 = vunpack.c.l.b16 %v13
    %v20 = vunpack.c.l.b16 %v14
    %v21 = vpack.c.b16 %v20, %v19
    %v24 = vunpack.c.l.b16 %v15
    %v25 = vunpack.c.l.b16 %v16
    %v26 = vpack.c.b16 %v25, %v24
    %vm28 = vcmask 130048
    %v30 = vsel %vm28, %v21, 0
    %32 = vmatprep.subr.bf16.mxu0 0
    %33 = vmatpush1.bf16.msra.mxu0 %v26
    %34 = vmatprep.subr.bf16.mxu0 0
    %35 = vmatpush1.bf16.msra.mxu0 0
    %36 = vmatprep.subr.bf16.mxu0 0
    %37 = vmatpush1.bf16.msra.mxu0 0
    %38 = vmatprep.subr.bf16.mxu0 0
    %39 = vmatpush1.bf16.msra.mxu0 0
    %40 = vmatprep.subr.bf16.mxu0 0
    %41 = vmatpush1.bf16.msra.mxu0 0
    %42 = vmatprep.subr.bf16.mxu0 0
    %43 = vmatpush1.bf16.msra.mxu0 0
    %44 = vmatprep.subr.bf16.mxu0 0
    %45 = vmatpush1.bf16.msra.mxu0 0
    %46 = vmatprep.subr.bf16.mxu0 0
    %47 = vmatpush1.bf16.msra.mxu0 0
    %48 = vmatprep.subr.bf16.mxu0 0
    %49 = vmatpush1.bf16.msra.mxu0 0
    %50 = vmatprep.subr.bf16.mxu0 0
    %51 = vmatpush1.bf16.msra.mxu0 0
    %52 = vmatprep.subr.bf16.mxu0 0
    %53 = vmatpush1.bf16.msra.mxu0 0
    %54 = vmatprep.subr.bf16.mxu0 0
    %55 = vmatpush1.bf16.msra.mxu0 0
    %56 = vmatprep.subr.bf16.mxu0 0
    %57 = vmatpush1.bf16.msra.mxu0 0
    %58 = vmatprep.subr.bf16.mxu0 0
    %59 = vmatpush1.bf16.msra.mxu0 0
    %60 = vmatprep.subr.bf16.mxu0 0
    %61 = vmatpush1.bf16.msra.mxu0 0
    %62 = vmatprep.subr.bf16.mxu0 0
    %63 = vmatpush1.bf16.msra.mxu0 0
    %64 = vmatprep.mubr.bf16.mxu0 0
    %65 = vmatmul.mubr.bf16.gmra.mrb[0].mxu0 %v30
    %v66 = vpop.f32.mrb[0].mxu0
    %v67 = vadd.f32 0.0, %v66
    %v68 = vpop.f32.mrb[0].mxu0
    %v69 = vpop.f32.mrb[0].mxu0
    %v70 = vadd.f32 0.0, %v69
    %v71 = vpop.f32.mrb[0].mxu0
    %72 = vdwg.mxu0
    %v73 = vpack.c.bf16 %v70, %v67
    %v75 = vunpack.c.l.b16 %v73
    %v76 = vunpack.c.h.b16 %v73
    %v77 = vpack.c.b16 %v75, %v75
    %v78 = vpack.c.b16 %v76, %v76
    %vm81 = vcmask 519168
    %82 = vst.msk [vmem:[#allocation2] sm:$0xf] %vm81, %v77
    %83 = vst.msk [vmem:[#allocation2 + $0x4] sm:$0xf] %vm81, %v78
    // Predicated region
    $region10: #{forward.21} parent=1 // pred_check
      _
    $region11: #{forward.21} parent=1 // pred_check_branch
      %85 = sbr.rel (0) target = $region13
    $region12: #{forward.21} parent=1 // pred_region
      %s87 = ssub.s32 128, 128
      %88 = vsyncadd [#allocation3], %s87
      %s89 = sshll.u32 [#allocation2], 4
      %s90 = int_to_ptr.vmem [resolvable:$true] %s89
      %95 = dma.vmem_to_hbm [thread:$0]  %s90, 128, %s2, [#allocation3], 64, 64, 4
    $region13: #{forward.21} parent=1 // pred_fallthru
      _
    // Predicated region
    $region14: #{forward.21} parent=1 // pred_check
      _
    $region15: #{forward.21} parent=1 // pred_check_branch
      %97 = sbr.rel (0) target = $region17
    $region16: #{forward.21} parent=1 // pred_region
      %98 = dma.done [#allocation3], 128
    $region17: #{forward.21} parent=1 // pred_fallthru
      _
    %99 = vsyncpa [#allocation3], 1

// kernel: forward.15
$region0: #{forward.15}
  #allocation0 [shape = 'u32[]', space=smem, size = 0x4, offset = 0x4, fixed_abs, tag = 'smem constant byte address 0x4 - core index']
  #allocation1 [shape = 'u32[144,128]{1,0:T(1,128)}', space=vmem, size = 0x12000, scoped, tag = 'internal scratch']
  #allocation2 [shape = 'f32[16,32]{1,0:T(8,128)}', space=vmem, size = 0x2000, scoped, tag = 'scratch operand']
  %s0 = inlined_call_operand.vmem [shape: bf16[16,32], index: 0, kind: input, shape index: {}]
  %s1 = inlined_call_operand.vmem [shape: f32[1,32], index: 1, kind: input, shape index: {}]
  %s2 = inlined_call_operand.vmem [shape: bf16[32,64], index: 2, kind: input, shape index: {}]
  %s3 = inlined_call_operand.vmem [shape: bf16[32,64], index: 3, kind: input, shape index: {}]
  %s4 = inlined_call_operand.vmem [shape: bf16[64,32], index: 4, kind: input, shape index: {}]
  %s5 = inlined_call_operand.vmem [shape: bf16[16,32], index: 5, kind: output, shape index: {}]
  %s6 = sld [smem:[#allocation0]]
  $region38: #{forward.15} parent=0
    _
  %s8 = ssub.s32 1, %s6
  %s9 = scalar_select 0, %s8, %s6
  // Predicated region
  $region2: #{forward.15} parent=0 // pred_check
    _
  $region3: #{forward.15} parent=0 // pred_check_branch
    %11 = sbr.rel (0) target = $region5
  $region4: #{forward.15} parent=0 // pred_region
    _
  $region5: #{forward.15} parent=0 // pred_fallthru
    _
  // Predicated region
  $region6: #{forward.15} parent=0 // pred_check
    _
  $region7: #{forward.15} parent=0 // pred_check_branch
    %13 = sbr.rel (0) target = $region9
  $region8: #{forward.15} parent=0 // pred_region
    _
  $region9: #{forward.15} parent=0 // pred_fallthru
    _
  // Predicated region
  $region10: #{forward.15} parent=0 // pred_check
    _
  $region11: #{forward.15} parent=0 // pred_check_branch
    %15 = sbr.rel (0) target = $region13
  $region12: #{forward.15} parent=0 // pred_region
    _
  $region13: #{forward.15} parent=0 // pred_fallthru
    _
  // Predicated region
  $region14: #{forward.15} parent=0 // pred_check
    _
  $region15: #{forward.15} parent=0 // pred_check_branch
    %17 = sbr.rel (0) target = $region17
  $region16: #{forward.15} parent=0 // pred_region
    _
  $region17: #{forward.15} parent=0 // pred_fallthru
    _
  // Predicated region
  $region18: #{forward.15} parent=0 // pred_check
    _
  $region19: #{forward.15} parent=0 // pred_check_branch
    %19 = sbr.rel (0) target = $region21
  $region20: #{forward.15} parent=0 // pred_region
    _
  $region21: #{forward.15} parent=0 // pred_fallthru
    _
  %p21 = scmp.eq.s32.totalorder 0, 0
  // Predicated region
  $region22: #{forward.15} parent=0 // pred_check
    %p22 = pneg %p21
  $region23: #{forward.15} parent=0 // pred_check_branch
    %24 = sbr.rel (%p22) target = $region25
  $region24: #{forward.15} parent=0 // pred_region
    %vm25 = vcmask 261120
    %26 = vst.msk [vmem:[#allocation2] sm:$0xff] %vm25, 0.0
    %27 = vst.msk [vmem:[#allocation2 + $0x8] sm:$0xff] %vm25, 0.0
  $region25: #{forward.15} parent=0 // pred_fallthru
    _
  %v28 = vld [vmem:[%s0] sm:$0xf]
  %v29 = vld [vmem:[%s0 + $0x4] sm:$0xf]
  %v30 = vunpack.c.l.bf16 %v28
  %v31 = vunpack.c.l.bf16 %v29
  %v32 = vmul.f32 %v30, %v30
  %v33 = vmul.f32 %v31, %v31
  %vm34 = vcmask 261120
  %v35 = vsel %vm34, %v32, 0.0
  %36 = vadd.xlane.f32.xlu0 %v35
  %v37 = vpop.xlane.xlu0 %36
  %v38 = vsel %vm34, %v33, 0.0
  %39 = vadd.xlane.f32.xlu0 %v38
  %v40 = vpop.xlane.xlu0 %39
  %v41 = vrcp.pop 32.0
  %v42 = vmul.f32 %v37, %v41
  %v43 = vmul.f32 %v40, %v41
  %v44 = vadd.f32 %v42, 1e-06
  %v45 = vadd.f32 %v43, 1e-06
  %v46 = vrsqrt.pop %v44
  %v47 = vrsqrt.pop %v45
  %v48 = vmul.f32 %v30, %v46
  %v49 = vmul.f32 %v31, %v47
  %v50 = vld [vmem:[%s1] sm:$0x1]
  %v52 = vlaneseq
  %v53 = vshrl.u32 %v52, 7
  %v54 = vsub.s32 0, %v53
  %v55 = vrot.slane %v50, %v54
  %v57 = vmul.f32 %v48, %v55
  %v58 = vmul.f32 %v49, %v55
  %v59 = vpack.c.bf16 %v58, %v57
  %v60 = vld [vmem:[%s2] sm:$0xf]
  %v61 = vld [vmem:[%s2 + $0x4] sm:$0xf]
  %v62 = vld [vmem:[%s2 + $0x8] sm:$0xf]
  %v63 = vld [vmem:[%s2 + $0xc] sm:$0xf]
  %v68 = vunpack.c.l.b16 %v60
  %v69 = vunpack.c.l.b16 %v61
  %v70 = vunpack.c.l.b16 %v62
  %v71 = vunpack.c.l.b16 %v63
  %v72 = vpack.c.b16 %v69, %v68
  %v73 = vpack.c.b16 %v71, %v70
  %v77 = vsel %vm34, %v59, 0
  %79 = vmatprep.subr.bf16.mxu0 0
  %80 = vmatpush1.bf16.msra.mxu0 %v72
  %81 = vmatprep.subr.bf16.mxu0 0
  %82 = vmatpush1.bf16.msra.mxu0 %v73
  %83 = vmatprep.subr.bf16.mxu0 0
  %84 = vmatpush1.bf16.msra.mxu0 0
  %85 = vmatprep.subr.bf16.mxu0 0
  %86 = vmatpush1.bf16.msra.mxu0 0
  %87 = vmatprep.subr.bf16.mxu0 0
  %88 = vmatpush1.bf16.msra.mxu0 0
  %89 = vmatprep.subr.bf16.mxu0 0
  %90 = vmatpush1.bf16.msra.mxu0 0
  %91 = vmatprep.subr.bf16.mxu0 0
  %92 = vmatpush1.bf16.msra.mxu0 0
  %93 = vmatprep.subr.bf16.mxu0 0
  %94 = vmatpush1.bf16.msra.mxu0 0
  %95 = vmatprep.subr.bf16.mxu0 0
  %96 = vmatpush1.bf16.msra.mxu0 0
  %97 = vmatprep.subr.bf16.mxu0 0
  %98 = vmatpush1.bf16.msra.mxu0 0
  %99 = vmatprep.subr.bf16.mxu0 0
  %100 = vmatpush1.bf16.msra.mxu0 0
  %101 = vmatprep.subr.bf16.mxu0 0
  %102 = vmatpush1.bf16.msra.mxu0 0
  %103 = vmatprep.subr.bf16.mxu0 0
  %104 = vmatpush1.bf16.msra.mxu0 0
  %105 = vmatprep.subr.bf16.mxu0 0
  %106 = vmatpush1.bf16.msra.mxu0 0
  %107 = vmatprep.subr.bf16.mxu0 0
  %108 = vmatpush1.bf16.msra.mxu0 0
  %109 = vmatprep.subr.bf16.mxu0 0
  %110 = vmatpush1.bf16.msra.mxu0 0
  %111 = vmatprep.mubr.bf16.mxu0 0
  %112 = vmatmul.mubr.bf16.gmra.mrb[0].mxu0 %v77
  %v113 = vpop.f32.mrb[0].mxu0
  %v114 = vadd.f32 0.0, %v113
  %v115 = vpop.f32.mrb[0].mxu0
  %v116 = vpop.f32.mrb[0].mxu0
  %v117 = vadd.f32 0.0, %v116
  %v118 = vpop.f32.mrb[0].mxu0
  %119 = vdwg.mxu0
  %v120 = vld [vmem:[%s3] sm:$0xf]
  %v121 = vld [vmem:[%s3 + $0x4] sm:$0xf]
  %v122 = vld [vmem:[%s3 + $0x8] sm:$0xf]
  %v123 = vld [vmem:[%s3 + $0xc] sm:$0xf]
  %v128 = vunpack.c.l.b16 %v120
  %v129 = vunpack.c.l.b16 %v121
  %v130 = vunpack.c.l.b16 %v122
  %v131 = vunpack.c.l.b16 %v123
  %v132 = vpack.c.b16 %v129, %v128
  %v133 = vpack.c.b16 %v131, %v130
  %136 = vmatprep.subr.bf16.mxu0 0
  %137 = vmatpush1.bf16.msra.mxu0 %v132
  %138 = vmatprep.subr.bf16.mxu0 0
  %139 = vmatpush1.bf16.msra.mxu0 %v133
  %140 = vmatprep.subr.bf16.mxu0 0
  %141 = vmatpush1.bf16.msra.mxu0 0
  %142 = vmatprep.subr.bf16.mxu0 0
  %143 = vmatpush1.bf16.msra.mxu0 0
  %144 = vmatprep.subr.bf16.mxu0 0
  %145 = vmatpush1.bf16.msra.mxu0 0
  %146 = vmatprep.subr.bf16.mxu0 0
  %147 = vmatpush1.bf16.msra.mxu0 0
  %148 = vmatprep.subr.bf16.mxu0 0
  %149 = vmatpush1.bf16.msra.mxu0 0
  %150 = vmatprep.subr.bf16.mxu0 0
  %151 = vmatpush1.bf16.msra.mxu0 0
  %152 = vmatprep.subr.bf16.mxu0 0
  %153 = vmatpush1.bf16.msra.mxu0 0
  %154 = vmatprep.subr.bf16.mxu0 0
  %155 = vmatpush1.bf16.msra.mxu0 0
  %156 = vmatprep.subr.bf16.mxu0 0
  %157 = vmatpush1.bf16.msra.mxu0 0
  %158 = vmatprep.subr.bf16.mxu0 0
  %159 = vmatpush1.bf16.msra.mxu0 0
  %160 = vmatprep.subr.bf16.mxu0 0
  %161 = vmatpush1.bf16.msra.mxu0 0
  %162 = vmatprep.subr.bf16.mxu0 0
  %163 = vmatpush1.bf16.msra.mxu0 0
  %164 = vmatprep.subr.bf16.mxu0 0
  %165 = vmatpush1.bf16.msra.mxu0 0
  %166 = vmatprep.subr.bf16.mxu0 0
  %167 = vmatpush1.bf16.msra.mxu0 0
  %168 = vmatprep.mubr.bf16.mxu0 0
  %169 = vmatmul.mubr.bf16.gmra.mrb[0].mxu0 %v77
  %v170 = vpop.f32.mrb[0].mxu0
  %v171 = vadd.f32 0.0, %v170
  %v172 = vpop.f32.mrb[0].mxu0
  %v173 = vpop.f32.mrb[0].mxu0
  %v174 = vadd.f32 0.0, %v173
  %v175 = vpop.f32.mrb[0].mxu0
  %176 = vdwg.mxu0
  %v177 = vxor.u32 %v114, 2147483648
  %v178 = vxor.u32 %v117, 2147483648
  %v179 = vmul.f32 %v177, 1.442695
  %v180 = vpow.pop %v179
  %v181 = vmul.f32 %v178, 1.442695
  %v182 = vpow.pop %v181
  %v183 = vadd.f32 %v180, 1.0
  %v184 = vadd.f32 %v182, 1.0
  %v185 = vrcp.pop %v183
  %v186 = vmul.f32 1.0, %v185
  %v187 = vrcp.pop %v184
  %v188 = vmul.f32 1.0, %v187
  %v189 = vmul.f32 %v114, %v186
  %v190 = vmul.f32 %v117, %v188
  %v191 = vmul.f32 %v189, %v171
  %v192 = vmul.f32 %v190, %v174
  %v193 = vld [vmem:[#allocation2] sm:$0xff]
  %v194 = vld [vmem:[#allocation2 + $0x8] sm:$0xff]
  %v195 = vpack.c.bf16 %v192, %v191
  %v196 = vld [vmem:[%s4] sm:$0xf]
  %v197 = vld [vmem:[%s4 + $0x4] sm:$0xf]
  %v198 = vld [vmem:[%s4 + $0x8] sm:$0xf]
  %v199 = vld [vmem:[%s4 + $0xc] sm:$0xf]
  %v200 = vld [vmem:[%s4 + $0x10] sm:$0xf]
  %v201 = vld [vmem:[%s4 + $0x14] sm:$0xf]
  %v202 = vld [vmem:[%s4 + $0x18] sm:$0xf]
  %v203 = vld [vmem:[%s4 + $0x1c] sm:$0xf]
  %v212 = vunpack.c.l.b16 %v196
  %v213 = vunpack.c.l.b16 %v197
  %v214 = vunpack.c.l.b16 %v198
  %v215 = vunpack.c.l.b16 %v199
  %v216 = vunpack.c.l.b16 %v200
  %v217 = vunpack.c.l.b16 %v201
  %v218 = vunpack.c.l.b16 %v202
  %v219 = vunpack.c.l.b16 %v203
  %v220 = vpack.c.b16 %v213, %v212
  %v221 = vpack.c.b16 %v215, %v214
  %v222 = vpack.c.b16 %v217, %v216
  %v223 = vpack.c.b16 %v219, %v218
  %vm228 = vcmask 523264
  %v230 = vsel %vm228, %v195, 0
  %232 = vmatprep.subr.bf16.mxu0 0
  %233 = vmatpush1.bf16.msra.mxu0 %v220
  %234 = vmatprep.subr.bf16.mxu0 0
  %235 = vmatpush1.bf16.msra.mxu0 %v221
  %236 = vmatprep.subr.bf16.mxu0 0
  %237 = vmatpush1.bf16.msra.mxu0 %v222
  %238 = vmatprep.subr.bf16.mxu0 0
  %239 = vmatpush1.bf16.msra.mxu0 %v223
  %240 = vmatprep.subr.bf16.mxu0 0
  %241 = vmatpush1.bf16.msra.mxu0 0
  %242 = vmatprep.subr.bf16.mxu0 0
  %243 = vmatpush1.bf16.msra.mxu0 0
  %244 = vmatprep.subr.bf16.mxu0 0
  %245 = vmatpush1.bf16.msra.mxu0 0
  %246 = vmatprep.subr.bf16.mxu0 0
  %247 = vmatpush1.bf16.msra.mxu0 0
  %248 = vmatprep.subr.bf16.mxu0 0
  %249 = vmatpush1.bf16.msra.mxu0 0
  %250 = vmatprep.subr.bf16.mxu0 0
  %251 = vmatpush1.bf16.msra.mxu0 0
  %252 = vmatprep.subr.bf16.mxu0 0
  %253 = vmatpush1.bf16.msra.mxu0 0
  %254 = vmatprep.subr.bf16.mxu0 0
  %255 = vmatpush1.bf16.msra.mxu0 0
  %256 = vmatprep.subr.bf16.mxu0 0
  %257 = vmatpush1.bf16.msra.mxu0 0
  %258 = vmatprep.subr.bf16.mxu0 0
  %259 = vmatpush1.bf16.msra.mxu0 0
  %260 = vmatprep.subr.bf16.mxu0 0
  %261 = vmatpush1.bf16.msra.mxu0 0
  %262 = vmatprep.subr.bf16.mxu0 0
  %263 = vmatpush1.bf16.msra.mxu0 0
  %264 = vmatprep.mubr.bf16.mxu0 0
  %265 = vmatmul.mubr.bf16.gmra.mrb[0].mxu0 %v230
  %v266 = vpop.f32.mrb[0].mxu0
  %v267 = vadd.f32 0.0, %v266
  %v268 = vpop.f32.mrb[0].mxu0
  %v269 = vpop.f32.mrb[0].mxu0
  %v270 = vadd.f32 0.0, %v269
  %v271 = vpop.f32.mrb[0].mxu0
  %272 = vdwg.mxu0
  %v273 = vadd.f32 %v193, %v267
  %v274 = vadd.f32 %v194, %v270
  %275 = vst.msk [vmem:[#allocation2] sm:$0xff] %vm34, %v273
  %276 = vst.msk [vmem:[#allocation2 + $0x8] sm:$0xff] %vm34, %v274
  // Predicated region
  $region26: #{forward.15} parent=0 // pred_check
    %p277 = pneg %p21
  $region27: #{forward.15} parent=0 // pred_check_branch
    %279 = sbr.rel (%p277) target = $region29
  $region28: #{forward.15} parent=0 // pred_region
    %v280 = vld [vmem:[#allocation2] sm:$0xff]
    %v281 = vld [vmem:[#allocation2 + $0x8] sm:$0xff]
    %v282 = vld [vmem:[%s0] sm:$0xf]
    %v283 = vld [vmem:[%s0 + $0x4] sm:$0xf]
    %v284 = vunpack.c.l.bf16 %v282
    %v285 = vunpack.c.l.bf16 %v283
    %v286 = vadd.f32 %v280, %v284
    %v287 = vadd.f32 %v281, %v285
    %v288 = vpack.c.bf16 %v287, %v286
    %v290 = vunpack.c.l.b16 %v288
    %v291 = vunpack.c.h.b16 %v288
    %v292 = vpack.c.b16 %v290, %v290
    %v293 = vpack.c.b16 %v291, %v291
    %vm296 = vcmask 257024
    %297 = vst.msk [vmem:[%s5] sm:$0xf] %vm296, %v292
    %298 = vst.msk [vmem:[%s5 + $0x4] sm:$0xf] %vm296, %v293
  $region29: #{forward.15} parent=0 // pred_fallthru
    _
  // Predicated region
  $region30: #{forward.15} parent=0 // pred_check
    _
  $region31: #{forward.15} parent=0 // pred_check_branch
    %300 = sbr.rel (0) target = $region33
  $region32: #{forward.15} parent=0 // pred_region
    _
  $region33: #{forward.15} parent=0 // pred_fallthru
    _
  // Predicated region
  $region34: #{forward.15} parent=0 // pred_check
    _
  $region35: #{forward.15} parent=0 // pred_check_branch
    %302 = sbr.rel (0) target = $region37
  $region36: #{forward.15} parent=0 // pred_region
    _
  $region37: #{forward.15} parent=0 // pred_fallthru
    _

// kernel: forward.20
$region0: #{forward.20}
  #allocation0 [shape = 'u32[]', space=smem, size = 0x4, offset = 0x4, fixed_abs, tag = 'smem constant byte address 0x4 - core index']
  #allocation1 [shape = 'u32[144,128]{1,0:T(1,128)}', space=vmem, size = 0x12000, scoped, tag = 'internal scratch']
  %s0 = inlined_call_operand.vmem [shape: bf16[16,32], index: 0, kind: input, shape index: {}]
  %s1 = inlined_call_operand.vmem [shape: f32[1,32], index: 1, kind: input, shape index: {}]
  %s2 = inlined_call_operand.vmem [shape: bf16[32,16], index: 2, kind: input, shape index: {}]
  %s3 = inlined_call_operand.vmem [shape: bf16[16,16], index: 3, kind: output, shape index: {}]
  %s4 = sld [smem:[#allocation0]]
  $region22: #{forward.20} parent=0
    _
  %s6 = ssub.s32 1, %s4
  %s7 = scalar_select 0, %s6, %s4
  // Predicated region
  $region2: #{forward.20} parent=0 // pred_check
    _
  $region3: #{forward.20} parent=0 // pred_check_branch
    %9 = sbr.rel (0) target = $region5
  $region4: #{forward.20} parent=0 // pred_region
    _
  $region5: #{forward.20} parent=0 // pred_fallthru
    _
  // Predicated region
  $region6: #{forward.20} parent=0 // pred_check
    _
  $region7: #{forward.20} parent=0 // pred_check_branch
    %11 = sbr.rel (0) target = $region9
  $region8: #{forward.20} parent=0 // pred_region
    _
  $region9: #{forward.20} parent=0 // pred_fallthru
    _
  // Predicated region
  $region10: #{forward.20} parent=0 // pred_check
    _
  $region11: #{forward.20} parent=0 // pred_check_branch
    %13 = sbr.rel (0) target = $region13
  $region12: #{forward.20} parent=0 // pred_region
    _
  $region13: #{forward.20} parent=0 // pred_fallthru
    _
  %v15 = vld [vmem:[%s0] sm:$0xf]
  %v16 = vld [vmem:[%s0 + $0x4] sm:$0xf]
  %v17 = vunpack.c.l.bf16 %v15
  %v18 = vunpack.c.l.bf16 %v16
  %v19 = vmul.f32 %v17, %v17
  %v20 = vmul.f32 %v18, %v18
  %vm21 = vcmask 261120
  %v22 = vsel %vm21, %v19, 0.0
  %23 = vadd.xlane.f32.xlu0 %v22
  %v24 = vpop.xlane.xlu0 %23
  %v25 = vsel %vm21, %v20, 0.0
  %26 = vadd.xlane.f32.xlu0 %v25
  %v27 = vpop.xlane.xlu0 %26
  %v28 = vrcp.pop 32.0
  %v29 = vmul.f32 %v24, %v28
  %v30 = vmul.f32 %v27, %v28
  %v31 = vadd.f32 %v29, 1e-06
  %v32 = vadd.f32 %v30, 1e-06
  %v33 = vrsqrt.pop %v31
  %v34 = vrsqrt.pop %v32
  %v35 = vmul.f32 %v17, %v33
  %v36 = vmul.f32 %v18, %v34
  %v37 = vld [vmem:[%s1] sm:$0x1]
  %v39 = vlaneseq
  %v40 = vshrl.u32 %v39, 7
  %v41 = vsub.s32 0, %v40
  %v42 = vrot.slane %v37, %v41
  %v44 = vmul.f32 %v35, %v42
  %v45 = vmul.f32 %v36, %v42
  %v46 = vpack.c.bf16 %v45, %v44
  %v47 = vld [vmem:[%s2] sm:$0xf]
  %v48 = vld [vmem:[%s2 + $0x4] sm:$0xf]
  %v49 = vld [vmem:[%s2 + $0x8] sm:$0xf]
  %v50 = vld [vmem:[%s2 + $0xc] sm:$0xf]
  %v55 = vunpack.c.l.b16 %v47
  %v56 = vunpack.c.l.b16 %v48
  %v57 = vunpack.c.l.b16 %v49
  %v58 = vunpack.c.l.b16 %v50
  %v59 = vpack.c.b16 %v56, %v55
  %v60 = vpack.c.b16 %v58, %v57
  %v64 = vsel %vm21, %v46, 0
  %66 = vmatprep.subr.bf16.mxu0 0
  %67 = vmatpush1.bf16.msra.mxu0 %v59
  %68 = vmatprep.subr.bf16.mxu0 0
  %69 = vmatpush1.bf16.msra.mxu0 %v60
  %70 = vmatprep.subr.bf16.mxu0 0
  %71 = vmatpush1.bf16.msra.mxu0 0
  %72 = vmatprep.subr.bf16.mxu0 0
  %73 = vmatpush1.bf16.msra.mxu0 0
  %74 = vmatprep.subr.bf16.mxu0 0
  %75 = vmatpush1.bf16.msra.mxu0 0
  %76 = vmatprep.subr.bf16.mxu0 0
  %77 = vmatpush1.bf16.msra.mxu0 0
  %78 = vmatprep.subr.bf16.mxu0 0
  %79 = vmatpush1.bf16.msra.mxu0 0
  %80 = vmatprep.subr.bf16.mxu0 0
  %81 = vmatpush1.bf16.msra.mxu0 0
  %82 = vmatprep.subr.bf16.mxu0 0
  %83 = vmatpush1.bf16.msra.mxu0 0
  %84 = vmatprep.subr.bf16.mxu0 0
  %85 = vmatpush1.bf16.msra.mxu0 0
  %86 = vmatprep.subr.bf16.mxu0 0
  %87 = vmatpush1.bf16.msra.mxu0 0
  %88 = vmatprep.subr.bf16.mxu0 0
  %89 = vmatpush1.bf16.msra.mxu0 0
  %90 = vmatprep.subr.bf16.mxu0 0
  %91 = vmatpush1.bf16.msra.mxu0 0
  %92 = vmatprep.subr.bf16.mxu0 0
  %93 = vmatpush1.bf16.msra.mxu0 0
  %94 = vmatprep.subr.bf16.mxu0 0
  %95 = vmatpush1.bf16.msra.mxu0 0
  %96 = vmatprep.subr.bf16.mxu0 0
  %97 = vmatpush1.bf16.msra.mxu0 0
  %98 = vmatprep.mubr.bf16.mxu0 0
  %99 = vmatmul.mubr.bf16.gmra.mrb[0].mxu0 %v64
  %v100 = vpop.f32.mrb[0].mxu0
  %v101 = vadd.f32 0.0, %v100
  %v102 = vpop.f32.mrb[0].mxu0
  %v103 = vpop.f32.mrb[0].mxu0
  %v104 = vadd.f32 0.0, %v103
  %v105 = vpop.f32.mrb[0].mxu0
  %106 = vdwg.mxu0
  %v107 = vpack.c.bf16 %v104, %v101
  %v109 = vunpack.c.l.b16 %v107
  %v110 = vunpack.c.h.b16 %v107
  %v111 = vpack.c.b16 %v109, %v109
  %v112 = vpack.c.b16 %v110, %v110
  %vm115 = vcmask 125952
  %116 = vst.msk [vmem:[%s3] sm:$0xf] %vm115, %v111
  %117 = vst.msk [vmem:[%s3 + $0x4] sm:$0xf] %vm115, %v112
  // Predicated region
  $region14: #{forward.20} parent=0 // pred_check
    _
  $region15: #{forward.20} parent=0 // pred_check_branch
    %119 = sbr.rel (0) target = $region17
  $region16: #{forward.20} parent=0 // pred_region
    _
  $region17: #{forward.20} parent=0 // pred_fallthru
    _
  // Predicated region
  $region18: #{forward.20} parent=0 // pred_check
    _
  $region19: #{forward.20} parent=0 // pred_check_branch
    %121 = sbr.rel (0) target = $region21
  $region20: #{forward.20} parent=0 // pred_region
    _
  $region21: #{forward.20} parent=0 // pred_fallthru
    _

// kernel: forward.13
$region0: #{forward.13}
  #allocation0 [shape = 'u32[]', space=smem, size = 0x4, offset = 0x4, fixed_abs, tag = 'smem constant byte address 0x4 - core index']
  #allocation1 [shape = 'u32[144,128]{1,0:T(1,128)}', space=vmem, size = 0x12000, scoped, tag = 'internal scratch']
  #allocation2 [shape = 'bf16[4,8,8]{2,1,0:T(8,128)(2,1)}', space=vmem, size = 0x2000, scoped, tag = 'scratch operand']
  #allocation3 [shape = 'f32[4,8,1]{2,1,0:T(8,128)}', space=vmem, size = 0x4000, scoped, tag = 'scratch operand']
  #allocation4 [shape = 'f32[4,8,1]{2,1,0:T(8,128)}', space=vmem, size = 0x4000, scoped, tag = 'scratch operand']
  #allocation5 [shape = 'f32[4,8,8]{2,1,0:T(8,128)}', space=vmem, size = 0x4000, scoped, tag = 'scratch operand']
  %s0 = inlined_call_operand.vmem [shape: s32[2,1,8], index: 0, kind: input, shape index: {}]
  %s1 = inlined_call_operand.vmem [shape: bf16[2,4,8,8], index: 1, kind: input, shape index: {}]
  %s2 = inlined_call_operand.vmem [shape: bf16[2,4,8,8], index: 2, kind: input, shape index: {}]
  %s3 = inlined_call_operand.vmem [shape: bf16[2,4,8,8], index: 3, kind: input, shape index: {}]
  %s4 = inlined_call_operand.vmem [shape: f32[2,8,8], index: 4, kind: input, shape index: {}, may-alias: {4,6}]
  %s5 = inlined_call_operand.vmem [shape: f32[2,8,8], index: 5, kind: input, shape index: {}, may-alias: {5,7}]
  %s6 = inlined_call_operand.vmem [shape: f32[2,8,8], index: 6, kind: input, shape index: {}, may-alias: {4,6}]
  %s7 = inlined_call_operand.vmem [shape: f32[2,8,8], index: 7, kind: input, shape index: {}, may-alias: {5,7}]
  %s8 = inlined_call_operand.vmem [shape: bf16[2,4,8,8], index: 8, kind: output, shape index: {}]
  %s9 = sld [smem:[#allocation0]]
  $region77: #{forward.13} parent=0
    _
  %s11 = ssub.s32 1, %s9
  %s12 = scalar_select 0, %s11, %s9
  loop: start=0, step=1, limit=4
  $region2: #{forward.13} parent=0 // loop_pre_header
    _
  $region3: #{forward.13} parent=0 // loop_header
    %s14 = sphi 0, %s18
    %p15 = scmp.ge.s32.totalorder %s14, 4
    %s21 = sphi 0, %s40
    %s22 = sphi 0, %s36
    %s23 = sphi 0, %s32
    %s24 = sphi 0, %s21
    %s25 = sphi 0, %s22
    %s26 = sphi 0, %s23
    %s27 = sphi 0, %s24
    %s28 = sphi 0, %s25
    %s29 = sphi 0, %s26
    %s45 = sphi 0, %s47
    %s48 = sphi 0, %s45
    %s49 = sphi 0, %s48
    %s65 = sphi 0, %s49
    %s73 = sphi 0, %s75
    %s76 = sphi 0, %s73
    %s77 = sphi 0, %s76
    %s93 = sphi 0, %s77
    %s101 = sphi 0, %s103
    %s104 = sphi 0, %s101
    %s105 = sphi 0, %s104
    %s121 = sphi 0, %s105
    %s129 = sphi 0, %s131
    %s132 = sphi 0, %s129
    %s133 = sphi 0, %s132
    %s149 = sphi 0, %s133
    %s157 = sphi 0, %s159
    %s160 = sphi 0, %s157
    %s161 = sphi 0, %s160
    %s177 = sphi 0, %s161
    %s185 = sphi 0, %s187
    %s188 = sphi 0, %s185
    %s189 = sphi 0, %s188
    %s205 = sphi 0, %s189
    %s213 = sphi 0, %s215
    %s216 = sphi 0, %s213
    %s217 = sphi 0, %s216
    %s233 = sphi 0, %s217
    %s241 = sphi 0, %s243
    %s244 = sphi 0, %s241
    %s245 = sphi 0, %s244
    %s261 = sphi 0, %s245
    %s269 = sphi 0, %s271
    %s272 = sphi 0, %s269
    %s273 = sphi 0, %s272
    %s289 = sphi 0, %s273
  $region4: #{forward.13} parent=0 // loop_header_branch
    %17 = sbr.rel (%p15) target = $region8
  $region5: #{forward.13} parent=0 // loop_body
    %s19 = ssub.s32 %s14, 1
    %s20 = ssub.s32 %s14, 2
    %s30 = sadd.s32 1, %s23
    %p31 = scmp.ge.s32.totalorder %s30, 1
    %s32 = scalar_select %p31, 0, %s30
    %s33 = sadd.s32 1, %s22
    %s34 = scalar_select %p31, %s33, %s22
    %p35 = scmp.ge.s32.totalorder %s34, 1
    %s36 = scalar_select %p35, 0, %s34
    %s37 = sadd.s32 1, %s21
    %s38 = scalar_select %p35, %s37, %s21
    %p39 = scmp.ge.s32.totalorder %s38, 2
    %s40 = scalar_select %p39, 0, %s38
    %s41 = ssub.s32 %s21, %s40
    %s42 = ssub.s32 %s23, %s32
    %s43 = sor.u32 %s41, %s42
    %p44 = scmp.eq.s32.totalorder %s43, 0
    %s46 = sadd.s32 %s45, 1
    %s47 = scalar_select %p44, %s45, %s46
    %p50 = pneg %p44
    %p51 = scmp.eq.s32.totalorder %s14, 1
    %p52 = por %p50, %p51
    %p53 = scmp.ne.s32.totalorder %s45, %s48
    %p54 = scmp.eq.s32.totalorder %s14, 0
    %p55 = por %p53, %p54
    %p56 = scmp.ne.s32.totalorder %s45, %s48
    %p57 = scmp.eq.s32.totalorder %s19, 1
    %p58 = por %p56, %p57
    %p59 = scmp.ne.s32.totalorder %s48, %s49
    %p60 = scmp.eq.s32.totalorder %s19, 0
    %p61 = por %p59, %p60
    %p62 = scmp.ne.s32.totalorder %s48, %s49
    %p63 = scmp.eq.s32.totalorder %s20, 1
    %p64 = por %p62, %p63
    %p66 = scmp.ne.s32.totalorder %s49, %s65
    %p67 = scmp.eq.s32.totalorder %s20, 0
    %p68 = por %p66, %p67
    %s69 = ssub.s32 %s21, %s40
    %s70 = ssub.s32 %s22, %s36
    %s71 = sor.u32 %s69, %s70
    %p72 = scmp.eq.s32.totalorder %s71, 0
    %s74 = sadd.s32 %s73, 1
    %s75 = scalar_select %p72, %s73, %s74
    %p78 = pneg %p72
    %p79 = scmp.eq.s32.totalorder %s14, 1
    %p80 = por %p78, %p79
    %p81 = scmp.ne.s32.totalorder %s73, %s76
    %p82 = scmp.eq.s32.totalorder %s14, 0
    %p83 = por %p81, %p82
    %p84 = scmp.ne.s32.totalorder %s73, %s76
    %p85 = scmp.eq.s32.totalorder %s19, 1
    %p86 = por %p84, %p85
    %p87 = scmp.ne.s32.totalorder %s76, %s77
    %p88 = scmp.eq.s32.totalorder %s19, 0
    %p89 = por %p87, %p88
    %p90 = scmp.ne.s32.totalorder %s76, %s77
    %p91 = scmp.eq.s32.totalorder %s20, 1
    %p92 = por %p90, %p91
    %p94 = scmp.ne.s32.totalorder %s77, %s93
    %p95 = scmp.eq.s32.totalorder %s20, 0
    %p96 = por %p94, %p95
    %s97 = ssub.s32 %s21, %s40
    %s98 = ssub.s32 %s23, %s32
    %s99 = sor.u32 %s97, %s98
    %p100 = scmp.eq.s32.totalorder %s99, 0
    %s102 = sadd.s32 %s101, 1
    %s103 = scalar_select %p100, %s101, %s102
    %p106 = pneg %p100
    %p107 = scmp.eq.s32.totalorder %s14, 1
    %p108 = por %p106, %p107
    %p109 = scmp.ne.s32.totalorder %s101, %s104
    %p110 = scmp.eq.s32.totalorder %s14, 0
    %p111 = por %p109, %p110
    %p112 = scmp.ne.s32.totalorder %s101, %s104
    %p113 = scmp.eq.s32.totalorder %s19, 1
    %p114 = por %p112, %p113
    %p115 = scmp.ne.s32.totalorder %s104, %s105
    %p116 = scmp.eq.s32.totalorder %s19, 0
    %p117 = por %p115, %p116
    %p118 = scmp.ne.s32.totalorder %s104, %s105
    %p119 = scmp.eq.s32.totalorder %s20, 1
    %p120 = por %p118, %p119
    %p122 = scmp.ne.s32.totalorder %s105, %s121
    %p123 = scmp.eq.s32.totalorder %s20, 0
    %p124 = por %p122, %p123
    %s125 = ssub.s32 %s21, %s40
    %s126 = ssub.s32 %s23, %s32
    %s127 = sor.u32 %s125, %s126
    %p128 = scmp.eq.s32.totalorder %s127, 0
    %s130 = sadd.s32 %s129, 1
    %s131 = scalar_select %p128, %s129, %s130
    %p134 = pneg %p128
    %p135 = scmp.eq.s32.totalorder %s14, 1
    %p136 = por %p134, %p135
    %p137 = scmp.ne.s32.totalorder %s129, %s132
    %p138 = scmp.eq.s32.totalorder %s14, 0
    %p139 = por %p137, %p138
    %p140 = scmp.ne.s32.totalorder %s129, %s132
    %p141 = scmp.eq.s32.totalorder %s19, 1
    %p142 = por %p140, %p141
    %p143 = scmp.ne.s32.totalorder %s132, %s133
    %p144 = scmp.eq.s32.totalorder %s19, 0
    %p145 = por %p143, %p144
    %p146 = scmp.ne.s32.totalorder %s132, %s133
    %p147 = scmp.eq.s32.totalorder %s20, 1
    %p148 = por %p146, %p147
    %p150 = scmp.ne.s32.totalorder %s133, %s149
    %p151 = scmp.eq.s32.totalorder %s20, 0
    %p152 = por %p150, %p151
    %s153 = ssub.s32 %s21, %s40
    %s154 = ssub.s32 %s22, %s36
    %s155 = sor.u32 %s153, %s154
    %p156 = scmp.eq.s32.totalorder %s155, 0
    %s158 = sadd.s32 %s157, 1
    %s159 = scalar_select %p156, %s157, %s158
    %p162 = pneg %p156
    %p163 = scmp.eq.s32.totalorder %s14, 1
    %p164 = por %p162, %p163
    %p165 = scmp.ne.s32.totalorder %s157, %s160
    %p166 = scmp.eq.s32.totalorder %s14, 0
    %p167 = por %p165, %p166
    %p168 = scmp.ne.s32.totalorder %s157, %s160
    %p169 = scmp.eq.s32.totalorder %s19, 1
    %p170 = por %p168, %p169
    %p171 = scmp.ne.s32.totalorder %s160, %s161
    %p172 = scmp.eq.s32.totalorder %s19, 0
    %p173 = por %p171, %p172
    %p174 = scmp.ne.s32.totalorder %s160, %s161
    %p175 = scmp.eq.s32.totalorder %s20, 1
    %p176 = por %p174, %p175
    %p178 = scmp.ne.s32.totalorder %s161, %s177
    %p179 = scmp.eq.s32.totalorder %s20, 0
    %p180 = por %p178, %p179
    %s181 = ssub.s32 %s21, %s40
    %s182 = ssub.s32 %s22, %s36
    %s183 = sor.u32 %s181, %s182
    %p184 = scmp.eq.s32.totalorder %s183, 0
    %s186 = sadd.s32 %s185, 1
    %s187 = scalar_select %p184, %s185, %s186
    %p190 = pneg %p184
    %p191 = scmp.eq.s32.totalorder %s14, 1
    %p192 = por %p190, %p191
    %p193 = scmp.ne.s32.totalorder %s185, %s188
    %p194 = scmp.eq.s32.totalorder %s14, 0
    %p195 = por %p193, %p194
    %p196 = scmp.ne.s32.totalorder %s185, %s188
    %p197 = scmp.eq.s32.totalorder %s19, 1
    %p198 = por %p196, %p197
    %p199 = scmp.ne.s32.totalorder %s188, %s189
    %p200 = scmp.eq.s32.totalorder %s19, 0
    %p201 = por %p199, %p200
    %p202 = scmp.ne.s32.totalorder %s188, %s189
    %p203 = scmp.eq.s32.totalorder %s20, 1
    %p204 = por %p202, %p203
    %p206 = scmp.ne.s32.totalorder %s189, %s205
    %p207 = scmp.eq.s32.totalorder %s20, 0
    %p208 = por %p206, %p207
    %s209 = ssub.s32 %s21, %s40
    %s210 = ssub.s32 %s23, %s32
    %s211 = sor.u32 %s209, %s210
    %p212 = scmp.eq.s32.totalorder %s211, 0
    %s214 = sadd.s32 %s213, 1
    %s215 = scalar_select %p212, %s213, %s214
    %p218 = pneg %p212
    %p219 = scmp.eq.s32.totalorder %s14, 1
    %p220 = por %p218, %p219
    %p221 = scmp.ne.s32.totalorder %s213, %s216
    %p222 = scmp.eq.s32.totalorder %s14, 0
    %p223 = por %p221, %p222
    %p224 = scmp.ne.s32.totalorder %s213, %s216
    %p225 = scmp.eq.s32.totalorder %s19, 1
    %p226 = por %p224, %p225
    %p227 = scmp.ne.s32.totalorder %s216, %s217
    %p228 = scmp.eq.s32.totalorder %s19, 0
    %p229 = por %p227, %p228
    %p230 = scmp.ne.s32.totalorder %s216, %s217
    %p231 = scmp.eq.s32.totalorder %s20, 1
    %p232 = por %p230, %p231
    %p234 = scmp.ne.s32.totalorder %s217, %s233
    %p235 = scmp.eq.s32.totalorder %s20, 0
    %p236 = por %p234, %p235
    %s237 = ssub.s32 %s21, %s40
    %s238 = ssub.s32 %s23, %s32
    %s239 = sor.u32 %s237, %s238
    %p240 = scmp.eq.s32.totalorder %s239, 0
    %s242 = sadd.s32 %s241, 1
    %s243 = scalar_select %p240, %s241, %s242
    %p246 = pneg %p240
    %p247 = scmp.eq.s32.totalorder %s14, 1
    %p248 = por %p246, %p247
    %p249 = scmp.ne.s32.totalorder %s241, %s244
    %p250 = scmp.eq.s32.totalorder %s14, 0
    %p251 = por %p249, %p250
    %p252 = scmp.ne.s32.totalorder %s241, %s244
    %p253 = scmp.eq.s32.totalorder %s19, 1
    %p254 = por %p252, %p253
    %p255 = scmp.ne.s32.totalorder %s244, %s245
    %p256 = scmp.eq.s32.totalorder %s19, 0
    %p257 = por %p255, %p256
    %p258 = scmp.ne.s32.totalorder %s244, %s245
    %p259 = scmp.eq.s32.totalorder %s20, 1
    %p260 = por %p258, %p259
    %p262 = scmp.ne.s32.totalorder %s245, %s261
    %p263 = scmp.eq.s32.totalorder %s20, 0
    %p264 = por %p262, %p263
    %s265 = ssub.s32 %s21, %s40
    %s266 = ssub.s32 %s22, %s36
    %s267 = sor.u32 %s265, %s266
    %p268 = scmp.eq.s32.totalorder %s267, 0
    %s270 = sadd.s32 %s269, 1
    %s271 = scalar_select %p268, %s269, %s270
    %p274 = pneg %p268
    %p275 = scmp.eq.s32.totalorder %s14, 1
    %p276 = por %p274, %p275
    %p277 = scmp.ne.s32.totalorder %s269, %s272
    %p278 = scmp.eq.s32.totalorder %s14, 0
    %p279 = por %p277, %p278
    %p280 = scmp.ne.s32.totalorder %s269, %s272
    %p281 = scmp.eq.s32.totalorder %s19, 1
    %p282 = por %p280, %p281
    %p283 = scmp.ne.s32.totalorder %s272, %s273
    %p284 = scmp.eq.s32.totalorder %s19, 0
    %p285 = por %p283, %p284
    %p286 = scmp.ne.s32.totalorder %s272, %s273
    %p287 = scmp.eq.s32.totalorder %s20, 1
    %p288 = por %p286, %p287
    %p290 = scmp.ne.s32.totalorder %s273, %s289
    %p291 = scmp.eq.s32.totalorder %s20, 0
    %p292 = por %p290, %p291
    %p293 = scmp.le.s32.totalorder 1, %s14
    %p294 = scmp.lt.s32.totalorder %s14, 3
    %p295 = pnand %p293, %p294
    %p296 = pneg %p295
    // Predicated region
    $region9: #{forward.13} parent=5 // pred_check
      _
    $region10: #{forward.13} parent=5 // pred_check_branch
      %298 = sbr.rel (%p295) target = $region12
    $region11: #{forward.13} parent=5 // pred_region
      %s299 = ssub.s32 %s14, 1
    $region12: #{forward.13} parent=5 // pred_fallthru
      _
    %p300 = scmp.lt.s32.totalorder %s14, 2
    // Predicated region
    $region13: #{forward.13} parent=5 // pred_check
      %p301 = pneg %p300
    $region14: #{forward.13} parent=5 // pred_check_branch
      %303 = sbr.rel (%p301) target = $region16
    $region15: #{forward.13} parent=5 // pred_region
      // Predicated region
      $region17: #{forward.13} parent=15 // pred_check
        %p304 = pneg %p55
      $region18: #{forward.13} parent=15 // pred_check_branch
        %306 = sbr.rel (%p304) target = $region20
      $region19: #{forward.13} parent=15 // pred_region
        %p307 = scmp.lt.s32.totalorder %s21, 1
        %s308 = scalar_select %p307, %s21, 1
        %p309 = scmp.lt.s32.totalorder %s23, 0
        %s310 = scalar_select %p309, %s23, 0
        %s311 = sadd.s32 %s310, %s308
        %s312 = scalar_lea.vmem %s0, %s311
      $region20: #{forward.13} parent=15 // pred_fallthru
        _
      // Predicated region
      $region21: #{forward.13} parent=15 // pred_check
        %p313 = pneg %p83
      $region22: #{forward.13} parent=15 // pred_check_branch
        %315 = sbr.rel (%p313) target = $region24
      $region23: #{forward.13} parent=15 // pred_region
        %p316 = scmp.lt.s32.totalorder %s21, 1
        %s317 = scalar_select %p316, %s21, 1
        %p318 = scmp.lt.s32.totalorder %s22, 0
        %s319 = scalar_select %p318, %s22, 0
        %s320 = smul.addr %s317, 4
        %s321 = sadd.s32 %s319, %s320
        %s322 = smul.addr %s321, 4
        %s323 = scalar_lea.vmem %s1, %s322
      $region24: #{forward.13} parent=15 // pred_fallthru
        _
      // Predicated region
      $region25: #{forward.13} parent=15 // pred_check
        %p324 = pneg %p111
      $region26: #{forward.13} parent=15 // pred_check_branch
        %326 = sbr.rel (%p324) target = $region28
      $region27: #{forward.13} parent=15 // pred_region
        %p327 = scmp.lt.s32.totalorder %s21, 1
        %s328 = scalar_select %p327, %s21, 1
        %p329 = scmp.lt.s32.totalorder %s23, 0
        %s330 = scalar_select %p329, %s23, 0
        %s331 = smul.addr %s328, 4
        %s332 = sadd.s32 %s330, %s331
        %s333 = smul.addr %s332, 4
        %s334 = scalar_lea.vmem %s2, %s333
      $region28: #{forward.13} parent=15 // pred_fallthru
        _
      // Predicated region
      $region29: #{forward.13} parent=15 // pred_check
        %p335 = pneg %p139
      $region30: #{forward.13} parent=15 // pred_check_branch
        %337 = sbr.rel (%p335) target = $region32
      $region31: #{forward.13} parent=15 // pred_region
        %p338 = scmp.lt.s32.totalorder %s21, 1
        %s339 = scalar_select %p338, %s21, 1
        %p340 = scmp.lt.s32.totalorder %s23, 0
        %s341 = scalar_select %p340, %s23, 0
        %s342 = smul.addr %s339, 4
        %s343 = sadd.s32 %s341, %s342
        %s344 = smul.addr %s343, 4
        %s345 = scalar_lea.vmem %s3, %s344
      $region32: #{forward.13} parent=15 // pred_fallthru
        _
      // Predicated region
      $region33: #{forward.13} parent=15 // pred_check
        %p346 = pneg %p167
      $region34: #{forward.13} parent=15 // pred_check_branch
        %348 = sbr.rel (%p346) target = $region36
      $region35: #{forward.13} parent=15 // pred_region
        %p349 = scmp.lt.s32.totalorder %s21, 1
        %s350 = scalar_select %p349, %s21, 1
        %p351 = scmp.lt.s32.totalorder %s22, 0
        %s352 = scalar_select %p351, %s22, 0
        %s353 = sadd.s32 %s352, %s350
        %s354 = smul.addr %s353, 8
        %s355 = scalar_lea.vmem %s4, %s354
      $region36: #{forward.13} parent=15 // pred_fallthru
        _
      // Predicated region
      $region37: #{forward.13} parent=15 // pred_check
        %p356 = pneg %p195
      $region38: #{forward.13} parent=15 // pred_check_branch
        %358 = sbr.rel (%p356) target = $region40
      $region39: #{forward.13} parent=15 // pred_region
        %p359 = scmp.lt.s32.totalorder %s21, 1
        %s360 = scalar_select %p359, %s21, 1
        %p361 = scmp.lt.s32.totalorder %s22, 0
        %s362 = scalar_select %p361, %s22, 0
        %s363 = sadd.s32 %s362, %s360
        %s364 = smul.addr %s363, 8
        %s365 = scalar_lea.vmem %s5, %s364
      $region40: #{forward.13} parent=15 // pred_fallthru
        _
      // Predicated region
      $region41: #{forward.13} parent=15 // pred_check
        %p366 = pneg %p223
      $region42: #{forward.13} parent=15 // pred_check_branch
        %368 = sbr.rel (%p366) target = $region44
      $region43: #{forward.13} parent=15 // pred_region
        %p369 = scmp.lt.s32.totalorder %s21, 1
        %s370 = scalar_select %p369, %s21, 1
        %p371 = scmp.lt.s32.totalorder %s23, 0
        %s372 = scalar_select %p371, %s23, 0
        %s373 = sadd.s32 %s372, %s370
        %s374 = smul.addr %s373, 8
        %s375 = scalar_lea.vmem %s6, %s374
      $region44: #{forward.13} parent=15 // pred_fallthru
        _
      // Predicated region
      $region45: #{forward.13} parent=15 // pred_check
        %p376 = pneg %p251
      $region46: #{forward.13} parent=15 // pred_check_branch
        %378 = sbr.rel (%p376) target = $region48
      $region47: #{forward.13} parent=15 // pred_region
        %p379 = scmp.lt.s32.totalorder %s21, 1
        %s380 = scalar_select %p379, %s21, 1
        %p381 = scmp.lt.s32.totalorder %s23, 0
        %s382 = scalar_select %p381, %s23, 0
        %s383 = sadd.s32 %s382, %s380
        %s384 = smul.addr %s383, 8
        %s385 = scalar_lea.vmem %s7, %s384
      $region48: #{forward.13} parent=15 // pred_fallthru
        _
    $region16: #{forward.13} parent=5 // pred_fallthru
      _
    %p386 = scmp.le.s32.totalorder 1, %s14
    %p387 = scmp.lt.s32.totalorder %s14, 3
    %p388 = pnand %p386, %p387
    %p389 = pneg %p388
    // Predicated region
    $region49: #{forward.13} parent=5 // pred_check
      _
    $region50: #{forward.13} parent=5 // pred_check_branch
      %391 = sbr.rel (%p388) target = $region52
    $region51: #{forward.13} parent=5 // pred_region
      %s392 = ssub.s32 %s14, 1
      %p393 = scmp.lt.s32.totalorder %s24, 1
      %s394 = scalar_select %p393, %s24, 1
      %p395 = scmp.lt.s32.totalorder %s26, 0
      %s396 = scalar_select %p395, %s26, 0
      %s397 = sadd.s32 %s396, %s394
      %s398 = scalar_lea.vmem %s0, %s397
      %p399 = pneg %p61
      %p400 = pneg %p58
      %p401 = scmp.lt.s32.totalorder %s24, 1
      %s402 = scalar_select %p401, %s24, 1
      %p403 = scmp.lt.s32.totalorder %s25, 0
      %s404 = scalar_select %p403, %s25, 0
      %s405 = smul.addr %s402, 4
      %s406 = sadd.s32 %s404, %s405
      %s407 = smul.addr %s406, 4
      %s408 = scalar_lea.vmem %s1, %s407
      %p409 = pneg %p89
      %p410 = pneg %p86
      %p411 = scmp.lt.s32.totalorder %s24, 1
      %s412 = scalar_select %p411, %s24, 1
      %p413 = scmp.lt.s32.totalorder %s26, 0
      %s414 = scalar_select %p413, %s26, 0
      %s415 = smul.addr %s412, 4
      %s416 = sadd.s32 %s414, %s415
      %s417 = smul.addr %s416, 4
      %s418 = scalar_lea.vmem %s2, %s417
      %p419 = pneg %p117
      %p420 = pneg %p114
      %p421 = scmp.lt.s32.totalorder %s24, 1
      %s422 = scalar_select %p421, %s24, 1
      %p423 = scmp.lt.s32.totalorder %s26, 0
      %s424 = scalar_select %p423, %s26, 0
      %s425 = smul.addr %s422, 4
      %s426 = sadd.s32 %s424, %s425
      %s427 = smul.addr %s426, 4
      %s428 = scalar_lea.vmem %s3, %s427
      %p429 = pneg %p145
      %p430 = pneg %p142
      %p431 = scmp.lt.s32.totalorder %s24, 1
      %s432 = scalar_select %p431, %s24, 1
      %p433 = scmp.lt.s32.totalorder %s25, 0
      %s434 = scalar_select %p433, %s25, 0
      %s435 = sadd.s32 %s434, %s432
      %s436 = smul.addr %s435, 8
      %s437 = scalar_lea.vmem %s4, %s436
      %p438 = pneg %p173
      %p439 = pneg %p170
      %p440 = scmp.lt.s32.totalorder %s24, 1
      %s441 = scalar_select %p440, %s24, 1
      %p442 = scmp.lt.s32.totalorder %s25, 0
      %s443 = scalar_select %p442, %s25, 0
      %s444 = sadd.s32 %s443, %s441
      %s445 = smul.addr %s444, 8
      %s446 = scalar_lea.vmem %s5, %s445
      %p447 = pneg %p201
      %p448 = pneg %p198
      %p449 = scmp.lt.s32.totalorder %s24, 1
      %s450 = scalar_select %p449, %s24, 1
      %p451 = scmp.lt.s32.totalorder %s26, 0
      %s452 = scalar_select %p451, %s26, 0
      %s453 = sadd.s32 %s452, %s450
      %s454 = smul.addr %s453, 8
      %s455 = scalar_lea.vmem %s6, %s454
      %p456 = pneg %p229
      %p457 = pneg %p226
      %p458 = scmp.lt.s32.totalorder %s24, 1
      %s459 = scalar_select %p458, %s24, 1
      %p460 = scmp.lt.s32.totalorder %s26, 0
      %s461 = scalar_select %p460, %s26, 0
      %s462 = sadd.s32 %s461, %s459
      %s463 = smul.addr %s462, 8
      %s464 = scalar_lea.vmem %s7, %s463
      %p465 = pneg %p257
      %p466 = pneg %p254
      %p467 = pneg %p285
      %p468 = pneg %p282
      %p469 = scmp.lt.s32.totalorder %s24, 1
      %s470 = scalar_select %p469, %s24, 1
      %p471 = scmp.lt.s32.totalorder %s25, 0
      %s472 = scalar_select %p471, %s25, 0
      %s473 = smul.addr %s470, 4
      %s474 = sadd.s32 %s472, %s473
      %s475 = smul.addr %s474, 4
      %s476 = scalar_lea.vmem %s8, %s475
      %p477 = scmp.lt.s32.totalorder %s24, 1
      %s478 = scalar_select %p477, %s24, 1
      %p479 = scmp.lt.s32.totalorder %s26, 0
      %s480 = scalar_select %p479, %s26, 0
      %s481 = sadd.s32 %s480, %s478
      %s482 = scalar_lea.vmem %s0, %s481
      %p483 = scmp.lt.s32.totalorder %s24, 1
      %s484 = scalar_select %p483, %s24, 1
      %p485 = scmp.lt.s32.totalorder %s25, 0
      %s486 = scalar_select %p485, %s25, 0
      %s487 = smul.addr %s484, 4
      %s488 = sadd.s32 %s486, %s487
      %s489 = smul.addr %s488, 4
      %s490 = scalar_lea.vmem %s1, %s489
      %p491 = scmp.lt.s32.totalorder %s24, 1
      %s492 = scalar_select %p491, %s24, 1
      %p493 = scmp.lt.s32.totalorder %s26, 0
      %s494 = scalar_select %p493, %s26, 0
      %s495 = smul.addr %s492, 4
      %s496 = sadd.s32 %s494, %s495
      %s497 = smul.addr %s496, 4
      %s498 = scalar_lea.vmem %s2, %s497
      %p499 = scmp.lt.s32.totalorder %s24, 1
      %s500 = scalar_select %p499, %s24, 1
      %p501 = scmp.lt.s32.totalorder %s26, 0
      %s502 = scalar_select %p501, %s26, 0
      %s503 = smul.addr %s500, 4
      %s504 = sadd.s32 %s502, %s503
      %s505 = smul.addr %s504, 4
      %s506 = scalar_lea.vmem %s3, %s505
      %p507 = scmp.lt.s32.totalorder %s24, 1
      %s508 = scalar_select %p507, %s24, 1
      %p509 = scmp.lt.s32.totalorder %s25, 0
      %s510 = scalar_select %p509, %s25, 0
      %s511 = sadd.s32 %s510, %s508
      %s512 = smul.addr %s511, 8
      %s513 = scalar_lea.vmem %s4, %s512
      %p514 = scmp.lt.s32.totalorder %s24, 1
      %s515 = scalar_select %p514, %s24, 1
      %p516 = scmp.lt.s32.totalorder %s25, 0
      %s517 = scalar_select %p516, %s25, 0
      %s518 = sadd.s32 %s517, %s515
      %s519 = smul.addr %s518, 8
      %s520 = scalar_lea.vmem %s5, %s519
      %p521 = scmp.lt.s32.totalorder %s24, 1
      %s522 = scalar_select %p521, %s24, 1
      %p523 = scmp.lt.s32.totalorder %s26, 0
      %s524 = scalar_select %p523, %s26, 0
      %s525 = sadd.s32 %s524, %s522
      %s526 = smul.addr %s525, 8
      %s527 = scalar_lea.vmem %s6, %s526
      %p528 = scmp.lt.s32.totalorder %s24, 1
      %s529 = scalar_select %p528, %s24, 1
      %p530 = scmp.lt.s32.totalorder %s26, 0
      %s531 = scalar_select %p530, %s26, 0
      %s532 = sadd.s32 %s531, %s529
      %s533 = smul.addr %s532, 8
      %s534 = scalar_lea.vmem %s7, %s533
      %p535 = scmp.lt.s32.totalorder %s24, 1
      %s536 = scalar_select %p535, %s24, 1
      %p537 = scmp.lt.s32.totalorder %s25, 0
      %s538 = scalar_select %p537, %s25, 0
      %s539 = smul.addr %s536, 4
      %s540 = sadd.s32 %s538, %s539
      %s541 = smul.addr %s540, 4
      %s542 = scalar_lea.vmem %s8, %s541
      %s544 = smul.u32 %s25, 8
      %s545 = smul.u32 %s26, 8
      %p546 = scmp.eq.s32.totalorder %s26, 0
      // Predicated region
      $region53: #{forward.13} parent=51 // pred_check
        %p547 = pneg %p546
      $region54: #{forward.13} parent=51 // pred_check_branch
        %549 = sbr.rel (%p547) target = $region56
      $region55: #{forward.13} parent=51 // pred_region
        %v550 = vld [vmem:[%s490] sm:$0xf]
        %v551 = vld [vmem:[%s490 + $0x4] sm:$0xf]
        %v552 = vld [vmem:[%s490 + $0x8] sm:$0xf]
        %v553 = vld [vmem:[%s490 + $0xc] sm:$0xf]
        %v554 = vunpack.c.l.bf16 %v550
        %v555 = vunpack.c.l.bf16 %v551
        %v556 = vunpack.c.l.bf16 %v552
        %v557 = vunpack.c.l.bf16 %v553
        %v558 = vld [vmem:[%s513] sm:$0xff]
        %v559 = vld [vmem:[%s520] sm:$0xff]
        %v560 = vsub.f32 0.0, %v554
        %v561 = vsub.f32 0.0, %v555
        %v562 = vsub.f32 0.0, %v556
        %v563 = vsub.f32 0.0, %v557
        %568 = vrot.lane.b32.xlu0 %v560, 124
        %v569 = vpop.permute.xlu0 %568
        %570 = vrot.lane.b32.xlu0 %v561, 124
        %v571 = vpop.permute.xlu0 %570
        %572 = vrot.lane.b32.xlu0 %v562, 124
        %v573 = vpop.permute.xlu0 %572
        %574 = vrot.lane.b32.xlu0 %v563, 124
        %v575 = vpop.permute.xlu0 %574
        %584 = vrot.lane.b32.xlu0 %v554, 4
        %v585 = vpop.permute.xlu0 %584
        %586 = vrot.lane.b32.xlu0 %v555, 4
        %v587 = vpop.permute.xlu0 %586
        %588 = vrot.lane.b32.xlu0 %v556, 4
        %v589 = vpop.permute.xlu0 %588
        %590 = vrot.lane.b32.xlu0 %v557, 4
        %v591 = vpop.permute.xlu0 %590
        %vm596 = vcmask 31744
        %v597 = vsel %vm596, %v569, %v585
        %v598 = vsel %vm596, %v571, %v587
        %v599 = vsel %vm596, %v573, %v589
        %v600 = vsel %vm596, %v575, %v591
        %v601 = vmul.f32 %v554, %v558
        %v602 = vmul.f32 %v555, %v558
        %v603 = vmul.f32 %v556, %v558
        %v604 = vmul.f32 %v557, %v558
        %v605 = vmul.f32 %v597, %v559
        %v606 = vmul.f32 %v598, %v559
        %v607 = vmul.f32 %v599, %v559
        %v608 = vmul.f32 %v600, %v559
        %v609 = vadd.f32 %v601, %v605
        %v610 = vadd.f32 %v602, %v606
        %v611 = vadd.f32 %v603, %v607
        %v612 = vadd.f32 %v604, %v608
        %v613 = vmul.f32 %v609, 0.35355338
        %v614 = vmul.f32 %v610, 0.35355338
        %v615 = vmul.f32 %v611, 0.35355338
        %v616 = vmul.f32 %v612, 0.35355338
        %v617 = vpack.c.bf16 %v613, %v613
        %v618 = vpack.c.bf16 %v614, %v614
        %v619 = vpack.c.bf16 %v615, %v615
        %v620 = vpack.c.bf16 %v616, %v616
        %vm621 = vcmask 60416
        %622 = vst.msk [vmem:[#allocation2] sm:$0xf] %vm621, %v617
        %623 = vst.msk [vmem:[#allocation2 + $0x4] sm:$0xf] %vm621, %v618
        %624 = vst.msk [vmem:[#allocation2 + $0x8] sm:$0xf] %vm621, %v619
        %625 = vst.msk [vmem:[#allocation2 + $0xc] sm:$0xf] %vm621, %v620
        %vm626 = vcmask 7168
        %627 = vst.msk [vmem:[#allocation3] sm:$0xff] %vm626, -1e+30
        %628 = vst.msk [vmem:[#allocation3 + $0x8] sm:$0xff] %vm626, -1e+30
        %629 = vst.msk [vmem:[#allocation3 + $0x10] sm:$0xff] %vm626, -1e+30
        %630 = vst.msk [vmem:[#allocation3 + $0x18] sm:$0xff] %vm626, -1e+30
        %631 = vst.msk [vmem:[#allocation4] sm:$0xff] %vm626, 0.0
        %632 = vst.msk [vmem:[#allocation4 + $0x8] sm:$0xff] %vm626, 0.0
        %633 = vst.msk [vmem:[#allocation4 + $0x10] sm:$0xff] %vm626, 0.0
        %634 = vst.msk [vmem:[#allocation4 + $0x18] sm:$0xff] %vm626, 0.0
        %vm635 = vcmask 64512
        %636 = vst.msk [vmem:[#allocation5] sm:$0xff] %vm635, 0.0
        %637 = vst.msk [vmem:[#allocation5 + $0x8] sm:$0xff] %vm635, 0.0
        %638 = vst.msk [vmem:[#allocation5 + $0x10] sm:$0xff] %vm635, 0.0
        %639 = vst.msk [vmem:[#allocation5 + $0x18] sm:$0xff] %vm635, 0.0
      $region56: #{forward.13} parent=51 // pred_fallthru
        _
      %s640 = sadd.s32 %s544, 7
      %p641 = scmp.le.s32.totalorder %s545, %s640
      // Predicated region
      $region57: #{forward.13} parent=51 // pred_check
        %p642 = pneg %p641
      $region58: #{forward.13} parent=51 // pred_check_branch
        %644 = sbr.rel (%p642) target = $region60
      $region59: #{forward.13} parent=51 // pred_region
        %v645 = vld [vmem:[%s498] sm:$0xf]
        %v646 = vld [vmem:[%s498 + $0x4] sm:$0xf]
        %v647 = vld [vmem:[%s498 + $0x8] sm:$0xf]
        %v648 = vld [vmem:[%s498 + $0xc] sm:$0xf]
        %v649 = vunpack.c.l.bf16 %v645
        %v650 = vunpack.c.l.bf16 %v646
        %v651 = vunpack.c.l.bf16 %v647
        %v652 = vunpack.c.l.bf16 %v648
        %v653 = vld [vmem:[%s527] sm:$0xff]
        %v654 = vld [vmem:[%s534] sm:$0xff]
        %v655 = vsub.f32 0.0, %v649
        %v656 = vsub.f32 0.0, %v650
        %v657 = vsub.f32 0.0, %v651
        %v658 = vsub.f32 0.0, %v652
        %663 = vrot.lane.b32.xlu0 %v655, 124
        %v664 = vpop.permute.xlu0 %663
        %665 = vrot.lane.b32.xlu0 %v656, 124
        %v666 = vpop.permute.xlu0 %665
        %667 = vrot.lane.b32.xlu0 %v657, 124
        %v668 = vpop.permute.xlu0 %667
        %669 = vrot.lane.b32.xlu0 %v658, 124
        %v670 = vpop.permute.xlu0 %669
        %679 = vrot.lane.b32.xlu0 %v649, 4
        %v680 = vpop.permute.xlu0 %679
        %681 = vrot.lane.b32.xlu0 %v650, 4
        %v682 = vpop.permute.xlu0 %681
        %683 = vrot.lane.b32.xlu0 %v651, 4
        %v684 = vpop.permute.xlu0 %683
        %685 = vrot.lane.b32.xlu0 %v652, 4
        %v686 = vpop.permute.xlu0 %685
        %vm691 = vcmask 31744
        %v692 = vsel %vm691, %v664, %v680
        %v693 = vsel %vm691, %v666, %v682
        %v694 = vsel %vm691, %v668, %v684
        %v695 = vsel %vm691, %v670, %v686
        %v696 = vmul.f32 %v649, %v653
        %v697 = vmul.f32 %v650, %v653
        %v698 = vmul.f32 %v651, %v653
        %v699 = vmul.f32 %v652, %v653
        %v700 = vmul.f32 %v692, %v654
        %v701 = vmul.f32 %v693, %v654
        %v702 = vmul.f32 %v694, %v654
        %v703 = vmul.f32 %v695, %v654
        %v704 = vadd.f32 %v696, %v700
        %v705 = vadd.f32 %v697, %v701
        %v706 = vadd.f32 %v698, %v702
        %v707 = vadd.f32 %v699, %v703
        %v708 = vpack.c.bf16 %v704, %v704
        %v709 = vpack.c.bf16 %v705, %v705
        %v710 = vpack.c.bf16 %v706, %v706
        %v711 = vpack.c.bf16 %v707, %v707
        %v712 = vld [vmem:[%s506] sm:$0xf]
        %v713 = vld [vmem:[%s506 + $0x4] sm:$0xf]
        %v714 = vld [vmem:[%s506 + $0x8] sm:$0xf]
        %v715 = vld [vmem:[%s506 + $0xc] sm:$0xf]
        %v716 = vld [vmem:[#allocation2] sm:$0xf]
        %v717 = vld [vmem:[#allocation2 + $0x4] sm:$0xf]
        %v718 = vld [vmem:[#allocation2 + $0x8] sm:$0xf]
        %v719 = vld [vmem:[#allocation2 + $0xc] sm:$0xf]
        %vm720 = vcmask 64512
        %v722 = vsel %vm720, %v716, 0
        %v725 = vsel %vm720, %v708, 0
        %727 = vmatprep.subr.bf16.mxu0 0
        %728 = vmatpush1.bf16.xpose.msra.mxu0 %v725
        %729 = vmatprep.subr.bf16.mxu0 0
        %730 = vmatpush1.bf16.xpose.msra.mxu0 0
        %731 = vmatprep.subr.bf16.mxu0 0
        %732 = vmatpush1.bf16.xpose.msra.mxu0 0
        %733 = vmatprep.subr.bf16.mxu0 0
        %734 = vmatpush1.bf16.xpose.msra.mxu0 0
        %735 = vmatprep.subr.bf16.mxu0 0
        %736 = vmatpush1.bf16.xpose.msra.mxu0 0
        %737 = vmatprep.subr.bf16.mxu0 0
        %738 = vmatpush1.bf16.xpose.msra.mxu0 0
        %739 = vmatprep.subr.bf16.mxu0 0
        %740 = vmatpush1.bf16.xpose.msra.mxu0 0
        %741 = vmatprep.subr.bf16.mxu0 0
        %742 = vmatpush1.bf16.xpose.msra.mxu0 0
        %743 = vmatprep.subr.bf16.mxu0 0
        %744 = vmatpush1.bf16.xpose.msra.mxu0 0
        %745 = vmatprep.subr.bf16.mxu0 0
        %746 = vmatpush1.bf16.xpose.msra.mxu0 0
        %747 = vmatprep.subr.bf16.mxu0 0
        %748 = vmatpush1.bf16.xpose.msra.mxu0 0
        %749 = vmatprep.subr.bf16.mxu0 0
        %750 = vmatpush1.bf16.xpose.msra.mxu0 0
        %751 = vmatprep.subr.bf16.mxu0 0
        %752 = vmatpush1.bf16.xpose.msra.mxu0 0
        %753 = vmatprep.subr.bf16.mxu0 0
        %754 = vmatpush1.bf16.xpose.msra.mxu0 0
        %755 = vmatprep.subr.bf16.mxu0 0
        %756 = vmatpush1.bf16.xpose.msra.mxu0 0
        %757 = vmatprep.subr.bf16.mxu0 0
        %758 = vmatpush1.bf16.xpose.msra.mxu0 0
        %759 = vmatprep.mubr.bf16.mxu0 0
        %760 = vmatmul.mubr.bf16.gmra.mrb[0].mxu0 %v722
        %v761 = vpop.f32.mrb[0].mxu0
        %v762 = vadd.f32 0.0, %v761
        %v763 = vpop.f32.mrb[0].mxu0
        %v764 = vpop.f32.mrb[0].mxu0
        %v765 = vpop.f32.mrb[0].mxu0
        %766 = vdwg.mxu0
        %v768 = vsel %vm720, %v717, 0
        %v771 = vsel %vm720, %v709, 0
        %773 = vmatprep.subr.bf16.mxu0 0
        %774 = vmatpush1.bf16.xpose.msra.mxu0 %v771
        %775 = vmatprep.subr.bf16.mxu0 0
        %776 = vmatpush1.bf16.xpose.msra.mxu0 0
        %777 = vmatprep.subr.bf16.mxu0 0
        %778 = vmatpush1.bf16.xpose.msra.mxu0 0
        %779 = vmatprep.subr.bf16.mxu0 0
        %780 = vmatpush1.bf16.xpose.msra.mxu0 0
        %781 = vmatprep.subr.bf16.mxu0 0
        %782 = vmatpush1.bf16.xpose.msra.mxu0 0
        %783 = vmatprep.subr.bf16.mxu0 0
        %784 = vmatpush1.bf16.xpose.msra.mxu0 0
        %785 = vmatprep.subr.bf16.mxu0 0
        %786 = vmatpush1.bf16.xpose.msra.mxu0 0
        %787 = vmatprep.subr.bf16.mxu0 0
        %788 = vmatpush1.bf16.xpose.msra.mxu0 0
        %789 = vmatprep.subr.bf16.mxu0 0
        %790 = vmatpush1.bf16.xpose.msra.mxu0 0
        %791 = vmatprep.subr.bf16.mxu0 0
        %792 = vmatpush1.bf16.xpose.msra.mxu0 0
        %793 = vmatprep.subr.bf16.mxu0 0
        %794 = vmatpush1.bf16.xpose.msra.mxu0 0
        %795 = vmatprep.subr.bf16.mxu0 0
        %796 = vmatpush1.bf16.xpose.msra.mxu0 0
        %797 = vmatprep.subr.bf16.mxu0 0
        %798 = vmatpush1.bf16.xpose.msra.mxu0 0
        %799 = vmatprep.subr.bf16.mxu0 0
        %800 = vmatpush1.bf16.xpose.msra.mxu0 0
        %801 = vmatprep.subr.bf16.mxu0 0
        %802 = vmatpush1.bf16.xpose.msra.mxu0 0
        %803 = vmatprep.subr.bf16.mxu0 0
        %804 = vmatpush1.bf16.xpose.msra.mxu0 0
        %805 = vmatprep.mubr.bf16.mxu0 0
        %806 = vmatmul.mubr.bf16.gmra.mrb[0].mxu0 %v768
        %v807 = vpop.f32.mrb[0].mxu0
        %v808 = vadd.f32 0.0, %v807
        %v809 = vpop.f32.mrb[0].mxu0
        %v810 = vpop.f32.mrb[0].mxu0
        %v811 = vpop.f32.mrb[0].mxu0
        %812 = vdwg.mxu0
        %v814 = vsel %vm720, %v718, 0
        %v817 = vsel %vm720, %v710, 0
        %819 = vmatprep.subr.bf16.mxu0 0
        %820 = vmatpush1.bf16.xpose.msra.mxu0 %v817
        %821 = vmatprep.subr.bf16.mxu0 0
        %822 = vmatpush1.bf16.xpose.msra.mxu0 0
        %823 = vmatprep.subr.bf16.mxu0 0
        %824 = vmatpush1.bf16.xpose.msra.mxu0 0
        %825 = vmatprep.subr.bf16.mxu0 0
        %826 = vmatpush1.bf16.xpose.msra.mxu0 0
        %827 = vmatprep.subr.bf16.mxu0 0
        %828 = vmatpush1.bf16.xpose.msra.mxu0 0
        %829 = vmatprep.subr.bf16.mxu0 0
        %830 = vmatpush1.bf16.xpose.msra.mxu0 0
        %831 = vmatprep.subr.bf16.mxu0 0
        %832 = vmatpush1.bf16.xpose.msra.mxu0 0
        %833 = vmatprep.subr.bf16.mxu0 0
        %834 = vmatpush1.bf16.xpose.msra.mxu0 0
        %835 = vmatprep.subr.bf16.mxu0 0
        %836 = vmatpush1.bf16.xpose.msra.mxu0 0
        %837 = vmatprep.subr.bf16.mxu0 0
        %838 = vmatpush1.bf16.xpose.msra.mxu0 0
        %839 = vmatprep.subr.bf16.mxu0 0
        %840 = vmatpush1.bf16.xpose.msra.mxu0 0
        %841 = vmatprep.subr.bf16.mxu0 0
        %842 = vmatpush1.bf16.xpose.msra.mxu0 0
        %843 = vmatprep.subr.bf16.mxu0 0
        %844 = vmatpush1.bf16.xpose.msra.mxu0 0
        %845 = vmatprep.subr.bf16.mxu0 0
        %846 = vmatpush1.bf16.xpose.msra.mxu0 0
        %847 = vmatprep.subr.bf16.mxu0 0
        %848 = vmatpush1.bf16.xpose.msra.mxu0 0
        %849 = vmatprep.subr.bf16.mxu0 0
        %850 = vmatpush1.bf16.xpose.msra.mxu0 0
        %851 = vmatprep.mubr.bf16.mxu0 0
        %852 = vmatmul.mubr.bf16.gmra.mrb[0].mxu0 %v814
        %v853 = vpop.f32.mrb[0].mxu0
        %v854 = vadd.f32 0.0, %v853
        %v855 = vpop.f32.mrb[0].mxu0
        %v856 = vpop.f32.mrb[0].mxu0
        %v857 = vpop.f32.mrb[0].mxu0
        %858 = vdwg.mxu0
        %v860 = vsel %vm720, %v719, 0
        %v863 = vsel %vm720, %v711, 0
        %865 = vmatprep.subr.bf16.mxu0 0
        %866 = vmatpush1.bf16.xpose.msra.mxu0 %v863
        %867 = vmatprep.subr.bf16.mxu0 0
        %868 = vmatpush1.bf16.xpose.msra.mxu0 0
        %869 = vmatprep.subr.bf16.mxu0 0
        %870 = vmatpush1.bf16.xpose.msra.mxu0 0
        %871 = vmatprep.subr.bf16.mxu0 0
        %872 = vmatpush1.bf16.xpose.msra.mxu0 0
        %873 = vmatprep.subr.bf16.mxu0 0
        %874 = vmatpush1.bf16.xpose.msra.mxu0 0
        %875 = vmatprep.subr.bf16.mxu0 0
        %876 = vmatpush1.bf16.xpose.msra.mxu0 0
        %877 = vmatprep.subr.bf16.mxu0 0
        %878 = vmatpush1.bf16.xpose.msra.mxu0 0
        %879 = vmatprep.subr.bf16.mxu0 0
        %880 = vmatpush1.bf16.xpose.msra.mxu0 0
        %881 = vmatprep.subr.bf16.mxu0 0
        %882 = vmatpush1.bf16.xpose.msra.mxu0 0
        %883 = vmatprep.subr.bf16.mxu0 0
        %884 = vmatpush1.bf16.xpose.msra.mxu0 0
        %885 = vmatprep.subr.bf16.mxu0 0
        %886 = vmatpush1.bf16.xpose.msra.mxu0 0
        %887 = vmatprep.subr.bf16.mxu0 0
        %888 = vmatpush1.bf16.xpose.msra.mxu0 0
        %889 = vmatprep.subr.bf16.mxu0 0
        %890 = vmatpush1.bf16.xpose.msra.mxu0 0
        %891 = vmatprep.subr.bf16.mxu0 0
        %892 = vmatpush1.bf16.xpose.msra.mxu0 0
        %893 = vmatprep.subr.bf16.mxu0 0
        %894 = vmatpush1.bf16.xpose.msra.mxu0 0
        %895 = vmatprep.subr.bf16.mxu0 0
        %896 = vmatpush1.bf16.xpose.msra.mxu0 0
        %897 = vmatprep.mubr.bf16.mxu0 0
        %898 = vmatmul.mubr.bf16.gmra.mrb[0].mxu0 %v860
        %v899 = vpop.f32.mrb[0].mxu0
        %v900 = vadd.f32 0.0, %v899
        %v901 = vpop.f32.mrb[0].mxu0
        %v902 = vpop.f32.mrb[0].mxu0
        %v903 = vpop.f32.mrb[0].mxu0
        %904 = vdwg.mxu0
        %v905 = vlaneseq
        %v906 = vshrl.u32 %v905, 7
        %v907 = vstv %s544
        %v908 = vadd.s32 %v907, %v906
        %v909 = vlaneseq
        %v910 = vand.u32 %v909, 127
        %v911 = vstv %s545
        %v912 = vadd.s32 %v911, %v910
        %v913 = vld [vmem:[%s482] sm:$0x1]
        %vm914 = vcmp.gt.s32.totalorder %v913, 0
        %vm915 = vcmp.le.s32.totalorder %v912, %v908
        %v916 = vsel %vm914, 1, 0
        %v917 = vlaneseq
        %v918 = vshrl.u32 %v917, 7
        %v919 = vsub.s32 0, %v918
        %v920 = vrot.slane %v916, %v919
        %vm921 = vcmp.eq.s32.totalorder %v920, 1
        %vm922 = vmand %vm915, %vm921
        %v923 = vsel %vm922, 1, 0
        %vm924 = vcmp.eq.s32.totalorder %v923, 1
        %v925 = vsel %vm924, %v762, -1e+30
        %v926 = vsel %vm924, %v808, -1e+30
        %v927 = vsel %vm924, %v854, -1e+30
        %v928 = vsel %vm924, %v900, -1e+30
        %v929 = vld [vmem:[#allocation3] sm:$0xff]
        %v930 = vld [vmem:[#allocation3 + $0x8] sm:$0xff]
        %v931 = vld [vmem:[#allocation3 + $0x10] sm:$0xff]
        %v932 = vld [vmem:[#allocation3 + $0x18] sm:$0xff]
        %v933 = vsel %vm720, %v925, -inf
        %934 = vmax.xlane.f32.xlu0 %v933
        %v935 = vpop.xlane.xlu0 %934
        %v936 = vsel %vm720, %v926, -inf
        %937 = vmax.xlane.f32.xlu0 %v936
        %v938 = vpop.xlane.xlu0 %937
        %v939 = vsel %vm720, %v927, -inf
        %940 = vmax.xlane.f32.xlu0 %v939
        %v941 = vpop.xlane.xlu0 %940
        %v942 = vsel %vm720, %v928, -inf
        %943 = vmax.xlane.f32.xlu0 %v942
        %v944 = vpop.xlane.xlu0 %943
        %v945 = vmax.f32 %v929, %v935
        %v946 = vmax.f32 %v930, %v938
        %v947 = vmax.f32 %v931, %v941
        %v948 = vmax.f32 %v932, %v944
        %v949 = vsub.f32 %v929, %v945
        %v950 = vsub.f32 %v930, %v946
        %v951 = vsub.f32 %v931, %v947
        %v952 = vsub.f32 %v932, %v948
        %v953 = vmul.f32 %v949, 1.442695
        %v954 = vpow.pop %v953
        %v955 = vmul.f32 %v950, 1.442695
        %v956 = vpow.pop %v955
        %v957 = vmul.f32 %v951, 1.442695
        %v958 = vpow.pop %v957
        %v959 = vmul.f32 %v952, 1.442695
        %v960 = vpow.pop %v959
        %962 = vset.pattern.permute.xlu0 0
        %963 = vperm.xlu0 %962, %v945
        %v964 = vpop.permute.xlu0 %963
        %967 = vset.pattern.permute.xlu0 0
        %968 = vperm.xlu0 %967, %v946
        %v969 = vpop.permute.xlu0 %968
        %972 = vset.pattern.permute.xlu0 0
        %973 = vperm.xlu0 %972, %v947
        %v974 = vpop.permute.xlu0 %973
        %977 = vset.pattern.permute.xlu0 0
        %978 = vperm.xlu0 %977, %v948
        %v979 = vpop.permute.xlu0 %978
        %v981 = vsub.f32 %v925, %v964
        %v982 = vsub.f32 %v926, %v969
        %v983 = vsub.f32 %v927, %v974
        %v984 = vsub.f32 %v928, %v979
        %v985 = vmul.f32 %v981, 1.442695
        %v986 = vpow.pop %v985
        %v987 = vmul.f32 %v982, 1.442695
        %v988 = vpow.pop %v987
        %v989 = vmul.f32 %v983, 1.442695
        %v990 = vpow.pop %v989
        %v991 = vmul.f32 %v984, 1.442695
        %v992 = vpow.pop %v991
        %v993 = vld [vmem:[#allocation4] sm:$0xff]
        %v994 = vld [vmem:[#allocation4 + $0x8] sm:$0xff]
        %v995 = vld [vmem:[#allocation4 + $0x10] sm:$0xff]
        %v996 = vld [vmem:[#allocation4 + $0x18] sm:$0xff]
        %v997 = vmul.f32 %v954, %v993
        %v998 = vmul.f32 %v956, %v994
        %v999 = vmul.f32 %v958, %v995
        %v1000 = vmul.f32 %v960, %v996
        %v1001 = vsel %vm720, %v986, 0.0
        %1002 = vadd.xlane.f32.xlu0 %v1001
        %v1003 = vpop.xlane.xlu0 %1002
        %v1004 = vsel %vm720, %v988, 0.0
        %1005 = vadd.xlane.f32.xlu0 %v1004
        %v1006 = vpop.xlane.xlu0 %1005
        %v1007 = vsel %vm720, %v990, 0.0
        %1008 = vadd.xlane.f32.xlu0 %v1007
        %v1009 = vpop.xlane.xlu0 %1008
        %v1010 = vsel %vm720, %v992, 0.0
        %1011 = vadd.xlane.f32.xlu0 %v1010
        %v1012 = vpop.xlane.xlu0 %1011
        %v1013 = vadd.f32 %v997, %v1003
        %v1014 = vadd.f32 %v998, %v1006
        %v1015 = vadd.f32 %v999, %v1009
        %v1016 = vadd.f32 %v1000, %v1012
        %vm1017 = vcmask 7168
        %1018 = vst.msk [vmem:[#allocation4] sm:$0xff] %vm1017, %v1013
        %1019 = vst.msk [vmem:[#allocation4 + $0x8] sm:$0xff] %vm1017, %v1014
        %1020 = vst.msk [vmem:[#allocation4 + $0x10] sm:$0xff] %vm1017, %v1015
        %1021 = vst.msk [vmem:[#allocation4 + $0x18] sm:$0xff] %vm1017, %v1016
        %v1022 = vld [vmem:[#allocation5] sm:$0xff]
        %v1023 = vld [vmem:[#allocation5 + $0x8] sm:$0xff]
        %v1024 = vld [vmem:[#allocation5 + $0x10] sm:$0xff]
        %v1025 = vld [vmem:[#allocation5 + $0x18] sm:$0xff]
        %1027 = vset.pattern.permute.xlu0 0
        %1028 = vperm.xlu0 %1027, %v954
        %v1029 = vpop.permute.xlu0 %1028
        %1032 = vset.pattern.permute.xlu0 0
        %1033 = vperm.xlu0 %1032, %v956
        %v1034 = vpop.permute.xlu0 %1033
        %1037 = vset.pattern.permute.xlu0 0
        %1038 = vperm.xlu0 %1037, %v958
        %v1039 = vpop.permute.xlu0 %1038
        %1042 = vset.pattern.permute.xlu0 0
        %1043 = vperm.xlu0 %1042, %v960
        %v1044 = vpop.permute.xlu0 %1043
        %v1046 = vmul.f32 %v1029, %v1022
        %v1047 = vmul.f32 %v1034, %v1023
        %v1048 = vmul.f32 %v1039, %v1024
        %v1049 = vmul.f32 %v1044, %v1025
        %v1050 = vpack.c.bf16 %v986, %v986
        %v1051 = vpack.c.bf16 %v988, %v988
        %v1052 = vpack.c.bf16 %v990, %v990
        %v1053 = vpack.c.bf16 %v992, %v992
        %v1055 = vsel %vm720, %v1050, 0
        %vm1057 = vcmask 1043456
        %v1059 = vsel %vm1057, %v712, 0
        %1061 = vmatprep.subr.bf16.mxu0 0
        %1062 = vmatpush1.bf16.msra.mxu0 %v1059
        %1063 = vmatprep.subr.bf16.mxu0 0
        %1064 = vmatpush1.bf16.msra.mxu0 0
        %1065 = vmatprep.subr.bf16.mxu0 0
        %1066 = vmatpush1.bf16.msra.mxu0 0
        %1067 = vmatprep.subr.bf16.mxu0 0
        %1068 = vmatpush1.bf16.msra.mxu0 0
        %1069 = vmatprep.subr.bf16.mxu0 0
        %1070 = vmatpush1.bf16.msra.mxu0 0
        %1071 = vmatprep.subr.bf16.mxu0 0
        %1072 = vmatpush1.bf16.msra.mxu0 0
        %1073 = vmatprep.subr.bf16.mxu0 0
        %1074 = vmatpush1.bf16.msra.mxu0 0
        %1075 = vmatprep.subr.bf16.mxu0 0
        %1076 = vmatpush1.bf16.msra.mxu0 0
        %1077 = vmatprep.subr.bf16.mxu0 0
        %1078 = vmatpush1.bf16.msra.mxu0 0
        %1079 = vmatprep.subr.bf16.mxu0 0
        %1080 = vmatpush1.bf16.msra.mxu0 0
        %1081 = vmatprep.subr.bf16.mxu0 0
        %1082 = vmatpush1.bf16.msra.mxu0 0
        %1083 = vmatprep.subr.bf16.mxu0 0
        %1084 = vmatpush1.bf16.msra.mxu0 0
        %1085 = vmatprep.subr.bf16.mxu0 0
        %1086 = vmatpush1.bf16.msra.mxu0 0
        %1087 = vmatprep.subr.bf16.mxu0 0
        %1088 = vmatpush1.bf16.msra.mxu0 0
        %1089 = vmatprep.subr.bf16.mxu0 0
        %1090 = vmatpush1.bf16.msra.mxu0 0
        %1091 = vmatprep.subr.bf16.mxu0 0
        %1092 = vmatpush1.bf16.msra.mxu0 0
        %1093 = vmatprep.mubr.bf16.mxu0 0
        %1094 = vmatmul.mubr.bf16.gmra.mrb[0].mxu0 %v1055
        %v1095 = vpop.f32.mrb[0].mxu0
        %v1096 = vadd.f32 0.0, %v1095
        %v1097 = vpop.f32.mrb[0].mxu0
        %v1098 = vpop.f32.mrb[0].mxu0
        %v1099 = vpop.f32.mrb[0].mxu0
        %1100 = vdwg.mxu0
        %v1102 = vsel %vm720, %v1051, 0
        %v1105 = vsel %vm1057, %v713, 0
        %1107 = vmatprep.subr.bf16.mxu0 0
        %1108 = vmatpush1.bf16.msra.mxu0 %v1105
        %1109 = vmatprep.subr.bf16.mxu0 0
        %1110 = vmatpush1.bf16.msra.mxu0 0
        %1111 = vmatprep.subr.bf16.mxu0 0
        %1112 = vmatpush1.bf16.msra.mxu0 0
        %1113 = vmatprep.subr.bf16.mxu0 0
        %1114 = vmatpush1.bf16.msra.mxu0 0
        %1115 = vmatprep.subr.bf16.mxu0 0
        %1116 = vmatpush1.bf16.msra.mxu0 0
        %1117 = vmatprep.subr.bf16.mxu0 0
        %1118 = vmatpush1.bf16.msra.mxu0 0
        %1119 = vmatprep.subr.bf16.mxu0 0
        %1120 = vmatpush1.bf16.msra.mxu0 0
        %1121 = vmatprep.subr.bf16.mxu0 0
        %1122 = vmatpush1.bf16.msra.mxu0 0
        %1123 = vmatprep.subr.bf16.mxu0 0
        %1124 = vmatpush1.bf16.msra.mxu0 0
        %1125 = vmatprep.subr.bf16.mxu0 0
        %1126 = vmatpush1.bf16.msra.mxu0 0
        %1127 = vmatprep.subr.bf16.mxu0 0
        %1128 = vmatpush1.bf16.msra.mxu0 0
        %1129 = vmatprep.subr.bf16.mxu0 0
        %1130 = vmatpush1.bf16.msra.mxu0 0
        %1131 = vmatprep.subr.bf16.mxu0 0
        %1132 = vmatpush1.bf16.msra.mxu0 0
        %1133 = vmatprep.subr.bf16.mxu0 0
        %1134 = vmatpush1.bf16.msra.mxu0 0
        %1135 = vmatprep.subr.bf16.mxu0 0
        %1136 = vmatpush1.bf16.msra.mxu0 0
        %1137 = vmatprep.subr.bf16.mxu0 0
        %1138 = vmatpush1.bf16.msra.mxu0 0
        %1139 = vmatprep.mubr.bf16.mxu0 0
        %1140 = vmatmul.mubr.bf16.gmra.mrb[0].mxu0 %v1102
        %v1141 = vpop.f32.mrb[0].mxu0
        %v1142 = vadd.f32 0.0, %v1141
        %v1143 = vpop.f32.mrb[0].mxu0
        %v1144 = vpop.f32.mrb[0].mxu0
        %v1145 = vpop.f32.mrb[0].mxu0
        %1146 = vdwg.mxu0
        %v1148 = vsel %vm720, %v1052, 0
        %v1151 = vsel %vm1057, %v714, 0
        %1153 = vmatprep.subr.bf16.mxu0 0
        %1154 = vmatpush1.bf16.msra.mxu0 %v1151
        %1155 = vmatprep.subr.bf16.mxu0 0
        %1156 = vmatpush1.bf16.msra.mxu0 0
        %1157 = vmatprep.subr.bf16.mxu0 0
        %1158 = vmatpush1.bf16.msra.mxu0 0
        %1159 = vmatprep.subr.bf16.mxu0 0
        %1160 = vmatpush1.bf16.msra.mxu0 0
        %1161 = vmatprep.subr.bf16.mxu0 0
        %1162 = vmatpush1.bf16.msra.mxu0 0
        %1163 = vmatprep.subr.bf16.mxu0 0
        %1164 = vmatpush1.bf16.msra.mxu0 0
        %1165 = vmatprep.subr.bf16.mxu0 0
        %1166 = vmatpush1.bf16.msra.mxu0 0
        %1167 = vmatprep.subr.bf16.mxu0 0
        %1168 = vmatpush1.bf16.msra.mxu0 0
        %1169 = vmatprep.subr.bf16.mxu0 0
        %1170 = vmatpush1.bf16.msra.mxu0 0
        %1171 = vmatprep.subr.bf16.mxu0 0
        %1172 = vmatpush1.bf16.msra.mxu0 0
        %1173 = vmatprep.subr.bf16.mxu0 0
        %1174 = vmatpush1.bf16.msra.mxu0 0
        %1175 = vmatprep.subr.bf16.mxu0 0
        %1176 = vmatpush1.bf16.msra.mxu0 0
        %1177 = vmatprep.subr.bf16.mxu0 0
        %1178 = vmatpush1.bf16.msra.mxu0 0
        %1179 = vmatprep.subr.bf16.mxu0 0
        %1180 = vmatpush1.bf16.msra.mxu0 0
        %1181 = vmatprep.subr.bf16.mxu0 0
        %1182 = vmatpush1.bf16.msra.mxu0 0
        %1183 = vmatprep.subr.bf16.mxu0 0
        %1184 = vmatpush1.bf16.msra.mxu0 0
        %1185 = vmatprep.mubr.bf16.mxu0 0
        %1186 = vmatmul.mubr.bf16.gmra.mrb[0].mxu0 %v1148
        %v1187 = vpop.f32.mrb[0].mxu0
        %v1188 = vadd.f32 0.0, %v1187
        %v1189 = vpop.f32.mrb[0].mxu0
        %v1190 = vpop.f32.mrb[0].mxu0
        %v1191 = vpop.f32.mrb[0].mxu0
        %1192 = vdwg.mxu0
        %v1194 = vsel %vm720, %v1053, 0
        %v1197 = vsel %vm1057, %v715, 0
        %1199 = vmatprep.subr.bf16.mxu0 0
        %1200 = vmatpush1.bf16.msra.mxu0 %v1197
        %1201 = vmatprep.subr.bf16.mxu0 0
        %1202 = vmatpush1.bf16.msra.mxu0 0
        %1203 = vmatprep.subr.bf16.mxu0 0
        %1204 = vmatpush1.bf16.msra.mxu0 0
        %1205 = vmatprep.subr.bf16.mxu0 0
        %1206 = vmatpush1.bf16.msra.mxu0 0
        %1207 = vmatprep.subr.bf16.mxu0 0
        %1208 = vmatpush1.bf16.msra.mxu0 0
        %1209 = vmatprep.subr.bf16.mxu0 0
        %1210 = vmatpush1.bf16.msra.mxu0 0
        %1211 = vmatprep.subr.bf16.mxu0 0
        %1212 = vmatpush1.bf16.msra.mxu0 0
        %1213 = vmatprep.subr.bf16.mxu0 0
        %1214 = vmatpush1.bf16.msra.mxu0 0
        %1215 = vmatprep.subr.bf16.mxu0 0
        %1216 = vmatpush1.bf16.msra.mxu0 0
        %1217 = vmatprep.subr.bf16.mxu0 0
        %1218 = vmatpush1.bf16.msra.mxu0 0
        %1219 = vmatprep.subr.bf16.mxu0 0
        %1220 = vmatpush1.bf16.msra.mxu0 0
        %1221 = vmatprep.subr.bf16.mxu0 0
        %1222 = vmatpush1.bf16.msra.mxu0 0
        %1223 = vmatprep.subr.bf16.mxu0 0
        %1224 = vmatpush1.bf16.msra.mxu0 0
        %1225 = vmatprep.subr.bf16.mxu0 0
        %1226 = vmatpush1.bf16.msra.mxu0 0
        %1227 = vmatprep.subr.bf16.mxu0 0
        %1228 = vmatpush1.bf16.msra.mxu0 0
        %1229 = vmatprep.subr.bf16.mxu0 0
        %1230 = vmatpush1.bf16.msra.mxu0 0
        %1231 = vmatprep.mubr.bf16.mxu0 0
        %1232 = vmatmul.mubr.bf16.gmra.mrb[0].mxu0 %v1194
        %v1233 = vpop.f32.mrb[0].mxu0
        %v1234 = vadd.f32 0.0, %v1233
        %v1235 = vpop.f32.mrb[0].mxu0
        %v1236 = vpop.f32.mrb[0].mxu0
        %v1237 = vpop.f32.mrb[0].mxu0
        %1238 = vdwg.mxu0
        %v1239 = vadd.f32 %v1046, %v1096
        %v1240 = vadd.f32 %v1047, %v1142
        %v1241 = vadd.f32 %v1048, %v1188
        %v1242 = vadd.f32 %v1049, %v1234
        %1243 = vst.msk [vmem:[#allocation5] sm:$0xff] %vm720, %v1239
        %1244 = vst.msk [vmem:[#allocation5 + $0x8] sm:$0xff] %vm720, %v1240
        %1245 = vst.msk [vmem:[#allocation5 + $0x10] sm:$0xff] %vm720, %v1241
        %1246 = vst.msk [vmem:[#allocation5 + $0x18] sm:$0xff] %vm720, %v1242
        %1247 = vst.msk [vmem:[#allocation3] sm:$0xff] %vm1017, %v945
        %1248 = vst.msk [vmem:[#allocation3 + $0x8] sm:$0xff] %vm1017, %v946
        %1249 = vst.msk [vmem:[#allocation3 + $0x10] sm:$0xff] %vm1017, %v947
        %1250 = vst.msk [vmem:[#allocation3 + $0x18] sm:$0xff] %vm1017, %v948
      $region60: #{forward.13} parent=51 // pred_fallthru
        _
      // Predicated region
      $region61: #{forward.13} parent=51 // pred_check
        %p1251 = pneg %p546
      $region62: #{forward.13} parent=51 // pred_check_branch
        %1253 = sbr.rel (%p1251) target = $region64
      $region63: #{forward.13} parent=51 // pred_region
        %v1254 = vld [vmem:[#allocation4] sm:$0xff]
        %v1255 = vld [vmem:[#allocation4 + $0x8] sm:$0xff]
        %v1256 = vld [vmem:[#allocation4 + $0x10] sm:$0xff]
        %v1257 = vld [vmem:[#allocation4 + $0x18] sm:$0xff]
        %v1258 = vrcp.pop %v1254
        %v1259 = vrcp.pop %v1255
        %v1260 = vrcp.pop %v1256
        %v1261 = vrcp.pop %v1257
        %v1262 = vld [vmem:[#allocation5] sm:$0xff]
        %v1263 = vld [vmem:[#allocation5 + $0x8] sm:$0xff]
        %v1264 = vld [vmem:[#allocation5 + $0x10] sm:$0xff]
        %v1265 = vld [vmem:[#allocation5 + $0x18] sm:$0xff]
        %1267 = vset.pattern.permute.xlu0 0
        %1268 = vperm.xlu0 %1267, %v1258
        %v1269 = vpop.permute.xlu0 %1268
        %1272 = vset.pattern.permute.xlu0 0
        %1273 = vperm.xlu0 %1272, %v1259
        %v1274 = vpop.permute.xlu0 %1273
        %1277 = vset.pattern.permute.xlu0 0
        %1278 = vperm.xlu0 %1277, %v1260
        %v1279 = vpop.permute.xlu0 %1278
        %1282 = vset.pattern.permute.xlu0 0
        %1283 = vperm.xlu0 %1282, %v1261
        %v1284 = vpop.permute.xlu0 %1283
        %v1286 = vmul.f32 %v1262, %v1269
        %v1287 = vmul.f32 %v1263, %v1274
        %v1288 = vmul.f32 %v1264, %v1279
        %v1289 = vmul.f32 %v1265, %v1284
        %v1290 = vpack.c.bf16 %v1286, %v1286
        %v1291 = vpack.c.bf16 %v1287, %v1287
        %v1292 = vpack.c.bf16 %v1288, %v1288
        %v1293 = vpack.c.bf16 %v1289, %v1289
        %vm1294 = vcmask 60416
        %1295 = vst.msk [vmem:[%s542] sm:$0xf] %vm1294, %v1290
        %1296 = vst.msk [vmem:[%s542 + $0x4] sm:$0xf] %vm1294, %v1291
        %1297 = vst.msk [vmem:[%s542 + $0x8] sm:$0xf] %vm1294, %v1292
        %1298 = vst.msk [vmem:[%s542 + $0xc] sm:$0xf] %vm1294, %v1293
      $region64: #{forward.13} parent=51 // pred_fallthru
        _
      %p1299 = scmp.lt.s32.totalorder %s24, 1
      %s1300 = scalar_select %p1299, %s24, 1
      %p1301 = scmp.lt.s32.totalorder %s25, 0
      %s1302 = scalar_select %p1301, %s25, 0
      %s1303 = smul.addr %s1300, 4
      %s1304 = sadd.s32 %s1302, %s1303
      %s1305 = smul.addr %s1304, 4
      %s1306 = scalar_lea.vmem %s8, %s1305
      // Predicated region
      $region65: #{forward.13} parent=51 // pred_check
        %p1307 = pneg %p282
      $region66: #{forward.13} parent=51 // pred_check_branch
        %1309 = sbr.rel (%p1307) target = $region68
      $region67: #{forward.13} parent=51 // pred_region
        _
      $region68: #{forward.13} parent=51 // pred_fallthru
        _
    $region52: #{forward.13} parent=5 // pred_fallthru
      _
    %p1310 = scmp.le.s32.totalorder 2, %s14
    // Predicated region
    $region69: #{forward.13} parent=5 // pred_check
      %p1311 = pneg %p1310
    $region70: #{forward.13} parent=5 // pred_check_branch
      %1313 = sbr.rel (%p1311) target = $region72
    $region71: #{forward.13} parent=5 // pred_region
      %s1314 = ssub.s32 %s14, 2
      // Predicated region
      $region73: #{forward.13} parent=71 // pred_check
        %p1315 = pneg %p288
      $region74: #{forward.13} parent=71 // pred_check_branch
        %1317 = sbr.rel (%p1315) target = $region76
      $region75: #{forward.13} parent=71 // pred_region
        %p1318 = scmp.lt.s32.totalorder %s27, 1
        %s1319 = scalar_select %p1318, %s27, 1
        %p1320 = scmp.lt.s32.totalorder %s28, 0
        %s1321 = scalar_select %p1320, %s28, 0
        %s1322 = smul.addr %s1319, 4
        %s1323 = sadd.s32 %s1321, %s1322
        %s1324 = smul.addr %s1323, 4
        %s1325 = scalar_lea.vmem %s8, %s1324
      $region76: #{forward.13} parent=71 // pred_fallthru
        _
    $region72: #{forward.13} parent=5 // pred_fallthru
      _
  $region6: #{forward.13} parent=0 // loop_footer
    %s18 = sadd.s32 1, %s14
  $region7: #{forward.13} parent=0 // loop_footer_branch
    %13 = sbr.rel target = $region3
  $region8: #{forward.13} parent=0 // loop_exit
    _

</llo_original>
